<compile_context>
chip_gen: v7x
topology: tpu7x:2x2x1
jax: 0.10.0
libtpu: 0.0.40
codegen_flags: <defaults>
</compile_context>

<pallas_src>
import functools

import jax
import jax.numpy as jnp
from jax.experimental import pallas as pl
from jax.experimental.pallas import tpu as pltpu

LANE = 128
ALPHA = 0.2                      # LeakyReLU negative slope
BN_EPS = 1e-5                    # PyTorch BatchNorm2d default
VMEM_LIMIT = 32 * 1024 * 1024    # safe on v5e / v6e / v7x


def _ceil_to(x, m):
    return ((x + m - 1) // m) * m


def _cost(flops, nbytes):
    return pl.CostEstimate(flops=int(flops), transcendentals=0,
                           bytes_accessed=int(nbytes))


# ------------------------------ Pallas kernels --------------------------------

def _gemm_bias_act_kernel(a_ref, w_ref, b_ref, o_ref, *, alpha, apply_act):
    # (tile_m, K) @ (K, N) with bf16 operands, f32 accumulation, fused bias+LeakyReLU.
    acc = jnp.dot(a_ref[...], w_ref[...], preferred_element_type=jnp.float32)
    acc = acc + b_ref[...]
    if apply_act:
        acc = jnp.where(acc > 0, acc, alpha * acc)
    o_ref[...] = acc.astype(o_ref.dtype)


def _gemm_bn_act_kernel(a_ref, w_ref, g_ref, b_ref, o_ref, *, alpha, eps, m_real):
    # GEMM + training-mode BatchNorm (two-pass stats, biased var) + LeakyReLU, fused.
    acc = jnp.dot(a_ref[...], w_ref[...], preferred_element_type=jnp.float32)
    inv_m = 1.0 / m_real
    mean = jnp.sum(acc, axis=0, keepdims=True) * inv_m
    xc = acc - mean
    var = jnp.sum(xc * xc, axis=0, keepdims=True) * inv_m
    y = xc * jax.lax.rsqrt(var + eps) * g_ref[...] + b_ref[...]
    o_ref[...] = jnp.where(y > 0, y, alpha * y).astype(o_ref.dtype)


def _s2d_conv_bn_act_kernel(x_ref, w_ref, g_ref, b_ref, o_ref, *,
                            n, ho, wo, alpha, eps):
    # Stride-2 4x4 conv expressed as a 2x2-tap conv over the space-to-depth input;
    # the tap loop (i.e. all activation reuse) lives inside the kernel, so the
    # activation is read from HBM exactly once (no im2col).  BN + LeakyReLU fused.
    c4 = x_ref.shape[-1]
    m = n * ho * wo
    # f32 keeps the native (8,128) layout so the tap slices / leading-dim collapse
    # below are layout-preserving; operands are cast back to bf16 right before the MXU.
    x = x_ref[...].astype(jnp.float32)
    acc = jnp.zeros((m, w_ref.shape[-1]), jnp.float32)
    for a in range(2):
        for b in range(2):
            tap = x[:, a:a + ho, b:b + wo, :].reshape(m, c4)
            acc = acc + jnp.dot(tap.astype(jnp.bfloat16), w_ref[a, b],
                                preferred_element_type=jnp.float32)
    inv_m = 1.0 / m
    mean = jnp.sum(acc, axis=0, keepdims=True) * inv_m
    xc = acc - mean
    var = jnp.sum(xc * xc, axis=0, keepdims=True) * inv_m
    y = xc * jax.lax.rsqrt(var + eps) * g_ref[...] + b_ref[...]
    o_ref[...] = jnp.where(y > 0, y, alpha * y).astype(o_ref.dtype)


def _matvec_bias_kernel(a_ref, w_ref, b_ref, o_ref):
    # Final Conv(4NF -> 1): one output channel, so do a per-row weighted sum on the
    # VPU/XLU instead of a 128-column-padded MXU matmul.
    prod = a_ref[...].astype(jnp.float32) * w_ref[...]
    o_ref[...] = jnp.sum(prod, axis=1, keepdims=True) + b_ref[...]


# ------------------------------ layer wrappers --------------------------------

def _first_conv(x_nhwc, w, b, *, alpha=ALPHA):
    """Conv(3 -> NF, k3 s1 p1) + LeakyReLU.  K = 27 is tiny, so a host-side im2col
    costs nothing; GEMM + bias + activation run in one fused kernel."""
    n, h, wd, cin = x_nhwc.shape
    f = w.shape[0]
    fp = _ceil_to(f, LANE)
    xp = jnp.pad(x_nhwc, ((0, 0), (1, 1), (1, 1), (0, 0)))
    taps = [xp[:, ki:ki + h, kj:kj + wd, :] for ki in range(3) for kj in range(3)]
    k = 9 * cin
    kp = _ceil_to(k, 8)
    m = n * h * wd
    a_mat = jnp.concatenate(taps, axis=-1).reshape(m, k)
    a_mat = jnp.pad(a_mat, ((0, 0), (0, kp - k))).astype(jnp.bfloat16)
    w_mat = jnp.transpose(w, (2, 3, 1, 0)).reshape(k, f)
    w_mat = jnp.pad(w_mat, ((0, kp - k), (0, fp - f))).astype(jnp.bfloat16)
    bias = jnp.pad(b, (0, fp - f)).reshape(1, fp).astype(jnp.float32)

    tile_m = 256 if (m % 256 == 0 and m > 256) else m
    grid = (m // tile_m,)
    out = pl.pallas_call(
        functools.partial(_gemm_bias_act_kernel, alpha=alpha, apply_act=True),
        out_shape=jax.ShapeDtypeStruct((m, fp), jnp.bfloat16),
        grid=grid,
        in_specs=[
            pl.BlockSpec((tile_m, kp), lambda i: (i, 0)),
            pl.BlockSpec((kp, fp), lambda i: (0, 0)),
            pl.BlockSpec((1, fp), lambda i: (0, 0)),
        ],
        out_specs=pl.BlockSpec((tile_m, fp), lambda i: (i, 0)),
        compiler_params=pltpu.CompilerParams(
            dimension_semantics=("parallel",), vmem_limit_bytes=VMEM_LIMIT),
        cost_estimate=_cost(2 * m * kp * fp, 2 * (m * kp + kp * fp + m * fp)),
    )(a_mat, w_mat, bias)
    return out.reshape(n, h, wd, fp)     # channel-padded (lane-dense), bf16


# TODO(synk): for large images, tile the BN-fused kernels over M (per-tile partial
# stats + a second normalize pass) so the block stays within v7x's 64 MiB VMEM and
# both TensorCores are used; at these shapes a single block is < 1 MiB.
def _down_block(h_nhwc, w, gamma, beta, *, alpha=ALPHA, eps=BN_EPS):
    """Conv(C -> F, k4 s2 p1, no bias) + BatchNorm(train) + LeakyReLU, one kernel.

    The stride-2 4x4 conv is a stride-1 2x2 conv over the space-to-depth
    rearrangement of the spatially padded input.  Activations stay channel-padded
    to 128 lanes (padded gamma/beta are zero, so padded channels remain zero)."""
    n, hh, ww, cp = h_nhwc.shape
    f, cin = w.shape[0], w.shape[1]
    fp = _ceil_to(f, LANE)
    ho, wo = hh // 2, ww // 2
    m = n * ho * wo

    # spatial pad + space-to-depth (block 2):  (N, H+2, W+2, Cp) -> (N, Hs, Ws, 4*Cp)
    hp = jnp.pad(h_nhwc, ((0, 0), (1, 1), (1, 1), (0, 0)))
    hs, ws = (hh + 2) // 2, (ww + 2) // 2
    y = hp.reshape(n, hs, 2, ws, 2, cp).transpose(0, 1, 3, 2, 4, 5)
    y = y.reshape(n, hs, ws, 4 * cp).astype(jnp.bfloat16)

    # weight (F, Cin, 4, 4) -> (a, b, (p, q, c_padded), F_padded)
    wt = jnp.transpose(w, (2, 3, 1, 0)).reshape(2, 2, 2, 2, cin, f)   # (a,p,b,q,C,F)
    wt = jnp.transpose(wt, (0, 2, 1, 3, 4, 5))                        # (a,b,p,q,C,F)
    wt = jnp.pad(wt, ((0, 0),) * 4 + ((0, cp - cin), (0, fp - f)))
    w_s2d = wt.reshape(2, 2, 4 * cp, fp).astype(jnp.bfloat16)

    g_pad = jnp.pad(gamma, (0, fp - f)).reshape(1, fp).astype(jnp.float32)
    b_pad = jnp.pad(beta, (0, fp - f)).reshape(1, fp).astype(jnp.float32)

    flops = 2 * m * (4 * cp) * fp * 4
    if wo % 8 == 0:
        # All taps sliced inside the kernel: single HBM read of the activation.
        out = pl.pallas_call(
            functools.partial(_s2d_conv_bn_act_kernel,
                              n=n, ho=ho, wo=wo, alpha=alpha, eps=eps),
            out_shape=jax.ShapeDtypeStruct((m, fp), jnp.bfloat16),
            grid=(1,),
            in_specs=[
                pl.BlockSpec((n, hs, ws, 4 * cp), lambda i: (0, 0, 0, 0)),
                pl.BlockSpec((2, 2, 4 * cp, fp), lambda i: (0, 0, 0, 0)),
                pl.BlockSpec((1, fp), lambda i: (0, 0)),
                pl.BlockSpec((1, fp), lambda i: (0, 0)),
            ],
            out_specs=pl.BlockSpec((m, fp), lambda i: (0, 0)),
            compiler_params=pltpu.CompilerParams(
                dimension_semantics=("arbitrary",), vmem_limit_bytes=VMEM_LIMIT),
            cost_estimate=_cost(
                flops, 2 * (n * hs * ws * 4 * cp + 16 * cp * fp + m * fp)),
        )(y, w_s2d, g_pad, b_pad)
    else:
        # Output width too small for a layout-free in-kernel tap collapse (only hits
        # the tiny last down block at toy sizes): still a single fused GEMM+BN+LReLU
        # kernel, fed by a 4-tap im2col of the space-to-depth tensor.
        taps = [y[:, a:a + ho, b:b + wo, :] for a in range(2) for b in range(2)]
        a_mat = jnp.concatenate(taps, axis=-1).reshape(m, 16 * cp)
        w_mat = w_s2d.reshape(16 * cp, fp)
        out = pl.pallas_call(
            functools.partial(_gemm_bn_act_kernel,
                              alpha=alpha, eps=eps, m_real=float(m)),
            out_shape=jax.ShapeDtypeStruct((m, fp), jnp.bfloat16),
            grid=(1,),
            in_specs=[
                pl.BlockSpec((m, 16 * cp), lambda i: (0, 0)),
                pl.BlockSpec((16 * cp, fp), lambda i: (0, 0)),
                pl.BlockSpec((1, fp), lambda i: (0, 0)),
                pl.BlockSpec((1, fp), lambda i: (0, 0)),
            ],
            out_specs=pl.BlockSpec((m, fp), lambda i: (0, 0)),
            compiler_params=pltpu.CompilerParams(
                dimension_semantics=("arbitrary",), vmem_limit_bytes=VMEM_LIMIT),
            cost_estimate=_cost(flops, 2 * (m * 16 * cp + 16 * cp * fp + m * fp)),
        )(a_mat, w_mat, g_pad, b_pad)
    return out.reshape(n, ho, wo, fp)


def _final_conv(h_nhwc, w, b):
    """Conv(4NF -> 1, k3 s1 p1): single output channel -> VPU weighted-sum kernel."""
    n, hh, ww, cp = h_nhwc.shape
    cin = w.shape[1]
    hp = jnp.pad(h_nhwc, ((0, 0), (1, 1), (1, 1), (0, 0)))
    taps = [hp[:, ki:ki + hh, kj:kj + ww, :] for ki in range(3) for kj in range(3)]
    m = n * hh * ww
    k = 9 * cp
    a_mat = jnp.concatenate(taps, axis=-1).reshape(m, k).astype(jnp.bfloat16)
    w_vec = jnp.transpose(w, (2, 3, 1, 0))[..., 0]                    # (3, 3, Cin)
    w_vec = jnp.pad(w_vec, ((0, 0), (0, 0), (0, cp - cin)))
    w_vec = w_vec.reshape(1, k).astype(jnp.float32)
    bias = jnp.reshape(b, (1, 1)).astype(jnp.float32)

    out = pl.pallas_call(
        _matvec_bias_kernel,
        out_shape=jax.ShapeDtypeStruct((m, 1), jnp.float32),
        grid=(1,),
        in_specs=[
            pl.BlockSpec((m, k), lambda i: (0, 0)),
            pl.BlockSpec((1, k), lambda i: (0, 0)),
            pl.BlockSpec((1, 1), lambda i: (0, 0)),
        ],
        out_specs=pl.BlockSpec((m, 1), lambda i: (0, 0)),
        compiler_params=pltpu.CompilerParams(
            dimension_semantics=("arbitrary",), vmem_limit_bytes=VMEM_LIMIT),
        cost_estimate=_cost(2 * m * k, 2 * m * k + 4 * k + 4 * m),
    )(a_mat, w_vec, bias)
    return out.reshape(n, hh, ww, 1)


# ------------------------------ the discriminator -----------------------------

def init_params(key, num_filters_last=16):
    nf = num_filters_last
    ks = jax.random.split(key, 6)
    return {
        "w1": 0.05 * jax.random.normal(ks[0], (nf, 3, 3, 3), jnp.float32),
        "b1": 0.05 * jax.random.normal(ks[1], (nf,), jnp.float32),
        "w2": 0.05 * jax.random.normal(ks[2], (2 * nf, nf, 4, 4), jnp.float32),
        "g2": jnp.ones((2 * nf,), jnp.float32),
        "be2": jnp.zeros((2 * nf,), jnp.float32),
        "w3": 0.05 * jax.random.normal(ks[3], (4 * nf, 2 * nf, 4, 4), jnp.float32),
        "g3": jnp.ones((4 * nf,), jnp.float32),
        "be3": jnp.zeros((4 * nf,), jnp.float32),
        "w4": 0.05 * jax.random.normal(ks[4], (1, 4 * nf, 3, 3), jnp.float32),
        "b4": 0.05 * jax.random.normal(ks[5], (1,), jnp.float32),
    }


def vq_discriminator_forward(x_nchw, params):
    # NCHW at the interface (PyTorch convention); NHWC with 128-lane channel padding
    # and bf16 activations inside.
    x = jnp.transpose(x_nchw, (0, 2, 3, 1)).astype(jnp.float32)

    h = _first_conv(x, params["w1"], params["b1"])                    # (N,16,16,128)
    h = _down_block(h, params["w2"], params["g2"], params["be2"])     # (N, 8, 8,128)
    h = _down_block(h, params["w3"], params["g3"], params["be3"])     # (N, 4, 4,128)
    out = _final_conv(h, params["w4"], params["b4"])                  # (N, 4, 4, 1)

    return jnp.transpose(out, (0, 3, 1, 2))                           # NCHW


if __name__ == "__main__":
    key = jax.random.PRNGKey(0)
    k_x, k_p = jax.random.split(key)

    # Module-consistent small shapes: batch=2, 3 input channels (RGB), 16x16 spatial,
    # num_filters_last=16, n_downs=2  ->  output (2, 1, 4, 4).
    x = jax.random.normal(k_x, (2, 3, 16, 16), jnp.float32)
    params = init_params(k_p, num_filters_last=16)

    fwd = jax.jit(vq_discriminator_forward)
    out = fwd(x, params)
    jax.block_until_ready(out)

    assert out.shape == (2, 1, 4, 4), out.shape
    assert out.dtype == jnp.float32
    assert bool(jnp.all(jnp.isfinite(out)))
    print("KERNEL_OK")
</pallas_src>

<mosaic_0001>
module attributes {stable_mosaic.version = 11 : i64} {
  func.func @_gemm_bias_act_kernel(%arg0: i32, %arg1: memref<256x32xbf16, #tpu.memory_space<vmem>>, %arg2: memref<32x128xbf16, #tpu.memory_space<vmem>>, %arg3: memref<1x128xf32, #tpu.memory_space<vmem>>, %arg4: memref<256x128xbf16, #tpu.memory_space<vmem>>) attributes {dimension_semantics = [#tpu.dimension_semantics<parallel>], iteration_bounds = array<i64: 2>, scalar_prefetch = 0 : i64, scratch_operands = 0 : i64, tpu.core_type = #tpu.core_type<tc>, window_params = [{transform_indices = @transform_0, window_bounds = array<i64: 256, 32>}, {pipeline_mode = #tpu.pipeline_mode<synchronous>, transform_indices = @transform_1, window_bounds = array<i64: 32, 128>}, {pipeline_mode = #tpu.pipeline_mode<synchronous>, transform_indices = @transform_2, window_bounds = array<i64: 1, 128>}, {transform_indices = @transform_3, window_bounds = array<i64: 256, 128>}]} {
    %c0 = arith.constant 0 : index
    %c0_0 = arith.constant 0 : index
    %0 = vector.load %arg1[%c0, %c0_0] : memref<256x32xbf16, #tpu.memory_space<vmem>>, vector<256x32xbf16>
    %c0_1 = arith.constant 0 : index
    %c0_2 = arith.constant 0 : index
    %1 = vector.load %arg2[%c0_1, %c0_2] : memref<32x128xbf16, #tpu.memory_space<vmem>>, vector<32x128xbf16>
    %cst = arith.constant dense<0.000000e+00> : vector<256x128xf32>
    %2 = tpu.matmul %0, %1, %cst {dimension_numbers = #tpu.dot_dimension_numbers<[1], [0], [0], [1], [0, 0, 1, 1], [], []>} : vector<256x32xbf16>, vector<32x128xbf16>, vector<256x128xf32> -> vector<256x128xf32>
    %c0_3 = arith.constant 0 : index
    %c0_4 = arith.constant 0 : index
    %3 = vector.load %arg3[%c0_3, %c0_4] : memref<1x128xf32, #tpu.memory_space<vmem>>, vector<1x128xf32>
    %4 = vector.broadcast %3 : vector<1x128xf32> to vector<256x128xf32>
    %5 = arith.addf %2, %4 : vector<256x128xf32>
    %cst_5 = arith.constant 0.000000e+00 : f32
    %6 = vector.broadcast %cst_5 : f32 to vector<256x128xf32>
    %7 = arith.cmpf ogt, %5, %6 : vector<256x128xf32>
    %cst_6 = arith.constant 2.000000e-01 : f32
    %8 = vector.broadcast %cst_6 : f32 to vector<256x128xf32>
    %9 = arith.mulf %8, %5 : vector<256x128xf32>
    %10 = arith.select %7, %5, %9 : vector<256x128xi1>, vector<256x128xf32>
    %11 = arith.truncf %10 : vector<256x128xf32> to vector<256x128xbf16>
    %c0_7 = arith.constant 0 : index
    %c0_8 = arith.constant 0 : index
    %12 = vector.load %arg4[%c0_7, %c0_8] : memref<256x128xbf16, #tpu.memory_space<vmem>>, vector<256x128xbf16>
    tpu.vector_store %arg4[%c0_7, %c0_8], %11 {strides = array<i32>} : memref<256x128xbf16, #tpu.memory_space<vmem>>, vector<256x128xbf16>,
    return
  }
  func.func @transform_0(%arg0: i32) -> (i32, i32) {
    %c0_i32 = arith.constant 0 : i32
    %c0_i32_0 = arith.constant 0 : i32
    return %arg0, %c0_i32 : i32, i32
  }
  func.func @transform_1(%arg0: i32) -> (i32, i32) {
    %c0_i32 = arith.constant 0 : i32
    %c0_i32_0 = arith.constant 0 : i32
    %c0_i32_1 = arith.constant 0 : i32
    return %c0_i32, %c0_i32_0 : i32, i32
  }
  func.func @transform_2(%arg0: i32) -> (i32, i32) {
    %c0_i32 = arith.constant 0 : i32
    %c0_i32_0 = arith.constant 0 : i32
    %c0_i32_1 = arith.constant 0 : i32
    return %c0_i32, %c0_i32_0 : i32, i32
  }
  func.func @transform_3(%arg0: i32) -> (i32, i32) {
    %c0_i32 = arith.constant 0 : i32
    %c0_i32_0 = arith.constant 0 : i32
    return %arg0, %c0_i32 : i32, i32
  }
}

module attributes {stable_mosaic.version = 11 : i64} {
  func.func @_s2d_conv_bn_act_kernel(%arg0: i32, %arg1: memref<2x9x9x512xbf16, #tpu.memory_space<vmem>>, %arg2: memref<2x2x512x128xbf16, #tpu.memory_space<vmem>>, %arg3: memref<1x128xf32, #tpu.memory_space<vmem>>, %arg4: memref<1x128xf32, #tpu.memory_space<vmem>>, %arg5: memref<128x128xbf16, #tpu.memory_space<vmem>>) attributes {dimension_semantics = [#tpu.dimension_semantics<arbitrary>], iteration_bounds = array<i64: 1>, scalar_prefetch = 0 : i64, scratch_operands = 0 : i64, tpu.core_type = #tpu.core_type<tc>, window_params = [{pipeline_mode = #tpu.pipeline_mode<synchronous>, transform_indices = @transform_0, window_bounds = array<i64: 2, 9, 9, 512>}, {pipeline_mode = #tpu.pipeline_mode<synchronous>, transform_indices = @transform_1, window_bounds = array<i64: 2, 2, 512, 128>}, {pipeline_mode = #tpu.pipeline_mode<synchronous>, transform_indices = @transform_2, window_bounds = array<i64: 1, 128>}, {pipeline_mode = #tpu.pipeline_mode<synchronous>, transform_indices = @transform_3, window_bounds = array<i64: 1, 128>}, {pipeline_mode = #tpu.pipeline_mode<synchronous>, transform_indices = @transform_4, window_bounds = array<i64: 128, 128>}]} {
    %c0 = arith.constant 0 : index
    %c0_0 = arith.constant 0 : index
    %c0_1 = arith.constant 0 : index
    %c0_2 = arith.constant 0 : index
    %0 = vector.load %arg1[%c0, %c0_0, %c0_1, %c0_2] : memref<2x9x9x512xbf16, #tpu.memory_space<vmem>>, vector<2x9x9x512xbf16>
    %1 = arith.extf %0 : vector<2x9x9x512xbf16> to vector<2x9x9x512xf32>
    %cst = arith.constant 0.000000e+00 : f32
    %2 = vector.broadcast %cst : f32 to vector<128x128xf32>
    %3 = vector.extract_strided_slice %1 {offsets = [0, 0, 0, 0], sizes = [2, 8, 8, 512], strides = [1, 1, 1, 1]} : vector<2x9x9x512xf32> to vector<2x8x8x512xf32>
    %4 = vector.shape_cast %3 : vector<2x8x8x512xf32> to vector<128x512xf32>
    %5 = arith.truncf %4 : vector<128x512xf32> to vector<128x512xbf16>
    %c0_3 = arith.constant 0 : index
    %c0_4 = arith.constant 0 : index
    %c0_5 = arith.constant 0 : index
    %c0_6 = arith.constant 0 : index
    %6 = vector.load %arg2[%c0_3, %c0_4, %c0_5, %c0_6] : memref<2x2x512x128xbf16, #tpu.memory_space<vmem>>, vector<1x1x512x128xbf16>
    %7 = vector.shape_cast %6 : vector<1x1x512x128xbf16> to vector<512x128xbf16>
    %cst_7 = arith.constant dense<0.000000e+00> : vector<128x128xf32>
    %8 = tpu.matmul %5, %7, %cst_7 {dimension_numbers = #tpu.dot_dimension_numbers<[1], [0], [0], [1], [0, 0, 1, 1], [], []>} : vector<128x512xbf16>, vector<512x128xbf16>, vector<128x128xf32> -> vector<128x128xf32>
    %9 = arith.addf %2, %8 : vector<128x128xf32>
    %10 = vector.extract_strided_slice %1 {offsets = [0, 0, 1, 0], sizes = [2, 8, 8, 512], strides = [1, 1, 1, 1]} : vector<2x9x9x512xf32> to vector<2x8x8x512xf32>
    %11 = vector.shape_cast %10 : vector<2x8x8x512xf32> to vector<128x512xf32>
    %12 = arith.truncf %11 : vector<128x512xf32> to vector<128x512xbf16>
    %c0_8 = arith.constant 0 : index
    %c1 = arith.constant 1 : index
    %c0_9 = arith.constant 0 : index
    %c0_10 = arith.constant 0 : index
    %13 = vector.load %arg2[%c0_8, %c1, %c0_9, %c0_10] : memref<2x2x512x128xbf16, #tpu.memory_space<vmem>>, vector<1x1x512x128xbf16>
    %14 = vector.shape_cast %13 : vector<1x1x512x128xbf16> to vector<512x128xbf16>
    %cst_11 = arith.constant dense<0.000000e+00> : vector<128x128xf32>
    %15 = tpu.matmul %12, %14, %cst_11 {dimension_numbers = #tpu.dot_dimension_numbers<[1], [0], [0], [1], [0, 0, 1, 1], [], []>} : vector<128x512xbf16>, vector<512x128xbf16>, vector<128x128xf32> -> vector<128x128xf32>
    %16 = arith.addf %9, %15 : vector<128x128xf32>
    %17 = vector.extract_strided_slice %1 {offsets = [0, 1, 0, 0], sizes = [2, 8, 8, 512], strides = [1, 1, 1, 1]} : vector<2x9x9x512xf32> to vector<2x8x8x512xf32>
    %18 = vector.shape_cast %17 : vector<2x8x8x512xf32> to vector<128x512xf32>
    %19 = arith.truncf %18 : vector<128x512xf32> to vector<128x512xbf16>
    %c1_12 = arith.constant 1 : index
    %c0_13 = arith.constant 0 : index
    %c0_14 = arith.constant 0 : index
    %c0_15 = arith.constant 0 : index
    %20 = vector.load %arg2[%c1_12, %c0_13, %c0_14, %c0_15] : memref<2x2x512x128xbf16, #tpu.memory_space<vmem>>, vector<1x1x512x128xbf16>
    %21 = vector.shape_cast %20 : vector<1x1x512x128xbf16> to vector<512x128xbf16>
    %cst_16 = arith.constant dense<0.000000e+00> : vector<128x128xf32>
    %22 = tpu.matmul %19, %21, %cst_16 {dimension_numbers = #tpu.dot_dimension_numbers<[1], [0], [0], [1], [0, 0, 1, 1], [], []>} : vector<128x512xbf16>, vector<512x128xbf16>, vector<128x128xf32> -> vector<128x128xf32>
    %23 = arith.addf %16, %22 : vector<128x128xf32>
    %24 = vector.extract_strided_slice %1 {offsets = [0, 1, 1, 0], sizes = [2, 8, 8, 512], strides = [1, 1, 1, 1]} : vector<2x9x9x512xf32> to vector<2x8x8x512xf32>
    %25 = vector.shape_cast %24 : vector<2x8x8x512xf32> to vector<128x512xf32>
    %26 = arith.truncf %25 : vector<128x512xf32> to vector<128x512xbf16>
    %c1_17 = arith.constant 1 : index
    %c1_18 = arith.constant 1 : index
    %c0_19 = arith.constant 0 : index
    %c0_20 = arith.constant 0 : index
    %27 = vector.load %arg2[%c1_17, %c1_18, %c0_19, %c0_20] : memref<2x2x512x128xbf16, #tpu.memory_space<vmem>>, vector<1x1x512x128xbf16>
    %28 = vector.shape_cast %27 : vector<1x1x512x128xbf16> to vector<512x128xbf16>
    %cst_21 = arith.constant dense<0.000000e+00> : vector<128x128xf32>
    %29 = tpu.matmul %26, %28, %cst_21 {dimension_numbers = #tpu.dot_dimension_numbers<[1], [0], [0], [1], [0, 0, 1, 1], [], []>} : vector<128x512xbf16>, vector<512x128xbf16>, vector<128x128xf32> -> vector<128x128xf32>
    %30 = arith.addf %23, %29 : vector<128x128xf32>
    %cst_22 = arith.constant dense<0.000000e+00> : vector<128xf32>
    %31 = vector.multi_reduction <add>, %30, %cst_22 [0] : vector<128x128xf32> to vector<128xf32>
    %32 = vector.shape_cast %31 : vector<128xf32> to vector<1x128xf32>
    %cst_23 = arith.constant 7.812500e-03 : f32
    %33 = vector.broadcast %cst_23 : f32 to vector<1x128xf32>
    %34 = arith.mulf %32, %33 : vector<1x128xf32>
    %35 = vector.broadcast %34 : vector<1x128xf32> to vector<128x128xf32>
    %36 = arith.subf %30, %35 : vector<128x128xf32>
    %37 = arith.mulf %36, %36 : vector<128x128xf32>
    %cst_24 = arith.constant dense<0.000000e+00> : vector<128xf32>
    %38 = vector.multi_reduction <add>, %37, %cst_24 [0] : vector<128x128xf32> to vector<128xf32>
    %39 = vector.shape_cast %38 : vector<128xf32> to vector<1x128xf32>
    %cst_25 = arith.constant 7.812500e-03 : f32
    %40 = vector.broadcast %cst_25 : f32 to vector<1x128xf32>
    %41 = arith.mulf %39, %40 : vector<1x128xf32>
    %cst_26 = arith.constant 9.99999974E-6 : f32
    %42 = vector.broadcast %cst_26 : f32 to vector<1x128xf32>
    %43 = arith.addf %41, %42 : vector<1x128xf32>
    %44 = math.rsqrt %43 : vector<1x128xf32>
    %45 = vector.broadcast %44 : vector<1x128xf32> to vector<128x128xf32>
    %46 = arith.mulf %36, %45 : vector<128x128xf32>
    %c0_27 = arith.constant 0 : index
    %c0_28 = arith.constant 0 : index
    %47 = vector.load %arg3[%c0_27, %c0_28] : memref<1x128xf32, #tpu.memory_space<vmem>>, vector<1x128xf32>
    %48 = vector.broadcast %47 : vector<1x128xf32> to vector<128x128xf32>
    %49 = arith.mulf %46, %48 : vector<128x128xf32>
    %c0_29 = arith.constant 0 : index
    %c0_30 = arith.constant 0 : index
    %50 = vector.load %arg4[%c0_29, %c0_30] : memref<1x128xf32, #tpu.memory_space<vmem>>, vector<1x128xf32>
    %51 = vector.broadcast %50 : vector<1x128xf32> to vector<128x128xf32>
    %52 = arith.addf %49, %51 : vector<128x128xf32>
    %cst_31 = arith.constant 0.000000e+00 : f32
    %53 = vector.broadcast %cst_31 : f32 to vector<128x128xf32>
    %54 = arith.cmpf ogt, %52, %53 : vector<128x128xf32>
    %cst_32 = arith.constant 2.000000e-01 : f32
    %55 = vector.broadcast %cst_32 : f32 to vector<128x128xf32>
    %56 = arith.mulf %55, %52 : vector<128x128xf32>
    %57 = arith.select %54, %52, %56 : vector<128x128xi1>, vector<128x128xf32>
    %58 = arith.truncf %57 : vector<128x128xf32> to vector<128x128xbf16>
    %c0_33 = arith.constant 0 : index
    %c0_34 = arith.constant 0 : index
    %59 = vector.load %arg5[%c0_33, %c0_34] : memref<128x128xbf16, #tpu.memory_space<vmem>>, vector<128x128xbf16>
    tpu.vector_store %arg5[%c0_33, %c0_34], %58 {strides = array<i32>} : memref<128x128xbf16, #tpu.memory_space<vmem>>, vector<128x128xbf16>,
    return
  }
  func.func @transform_0(%arg0: i32) -> (i32, i32, i32, i32) {
    %c0_i32 = arith.constant 0 : i32
    %c0_i32_0 = arith.constant 0 : i32
    %c0_i32_1 = arith.constant 0 : i32
    %c0_i32_2 = arith.constant 0 : i32
    %c0_i32_3 = arith.constant 0 : i32
    return %c0_i32, %c0_i32_0, %c0_i32_1, %c0_i32_2 : i32, i32, i32, i32
  }
  func.func @transform_1(%arg0: i32) -> (i32, i32, i32, i32) {
    %c0_i32 = arith.constant 0 : i32
    %c0_i32_0 = arith.constant 0 : i32
    %c0_i32_1 = arith.constant 0 : i32
    %c0_i32_2 = arith.constant 0 : i32
    %c0_i32_3 = arith.constant 0 : i32
    return %c0_i32, %c0_i32_0, %c0_i32_1, %c0_i32_2 : i32, i32, i32, i32
  }
  func.func @transform_2(%arg0: i32) -> (i32, i32) {
    %c0_i32 = arith.constant 0 : i32
    %c0_i32_0 = arith.constant 0 : i32
    %c0_i32_1 = arith.constant 0 : i32
    return %c0_i32, %c0_i32_0 : i32, i32
  }
  func.func @transform_3(%arg0: i32) -> (i32, i32) {
    %c0_i32 = arith.constant 0 : i32
    %c0_i32_0 = arith.constant 0 : i32
    %c0_i32_1 = arith.constant 0 : i32
    return %c0_i32, %c0_i32_0 : i32, i32
  }
  func.func @transform_4(%arg0: i32) -> (i32, i32) {
    %c0_i32 = arith.constant 0 : i32
    %c0_i32_0 = arith.constant 0 : i32
    %c0_i32_1 = arith.constant 0 : i32
    return %c0_i32, %c0_i32_0 : i32, i32
  }
}

module attributes {stable_mosaic.version = 11 : i64} {
  func.func @_gemm_bn_act_kernel(%arg0: i32, %arg1: memref<32x2048xbf16, #tpu.memory_space<vmem>>, %arg2: memref<2048x128xbf16, #tpu.memory_space<vmem>>, %arg3: memref<1x128xf32, #tpu.memory_space<vmem>>, %arg4: memref<1x128xf32, #tpu.memory_space<vmem>>, %arg5: memref<32x128xbf16, #tpu.memory_space<vmem>>) attributes {dimension_semantics = [#tpu.dimension_semantics<arbitrary>], iteration_bounds = array<i64: 1>, scalar_prefetch = 0 : i64, scratch_operands = 0 : i64, tpu.core_type = #tpu.core_type<tc>, window_params = [{pipeline_mode = #tpu.pipeline_mode<synchronous>, transform_indices = @transform_0, window_bounds = array<i64: 32, 2048>}, {pipeline_mode = #tpu.pipeline_mode<synchronous>, transform_indices = @transform_1, window_bounds = array<i64: 2048, 128>}, {pipeline_mode = #tpu.pipeline_mode<synchronous>, transform_indices = @transform_2, window_bounds = array<i64: 1, 128>}, {pipeline_mode = #tpu.pipeline_mode<synchronous>, transform_indices = @transform_3, window_bounds = array<i64: 1, 128>}, {pipeline_mode = #tpu.pipeline_mode<synchronous>, transform_indices = @transform_4, window_bounds = array<i64: 32, 128>}]} {
    %c0 = arith.constant 0 : index
    %c0_0 = arith.constant 0 : index
    %0 = vector.load %arg1[%c0, %c0_0] : memref<32x2048xbf16, #tpu.memory_space<vmem>>, vector<32x2048xbf16>
    %c0_1 = arith.constant 0 : index
    %c0_2 = arith.constant 0 : index
    %1 = vector.load %arg2[%c0_1, %c0_2] : memref<2048x128xbf16, #tpu.memory_space<vmem>>, vector<2048x128xbf16>
    %cst = arith.constant dense<0.000000e+00> : vector<32x128xf32>
    %2 = tpu.matmul %0, %1, %cst {dimension_numbers = #tpu.dot_dimension_numbers<[1], [0], [0], [1], [0, 0, 1, 1], [], []>} : vector<32x2048xbf16>, vector<2048x128xbf16>, vector<32x128xf32> -> vector<32x128xf32>
    %cst_3 = arith.constant dense<0.000000e+00> : vector<128xf32>
    %3 = vector.multi_reduction <add>, %2, %cst_3 [0] : vector<32x128xf32> to vector<128xf32>
    %4 = vector.shape_cast %3 : vector<128xf32> to vector<1x128xf32>
    %cst_4 = arith.constant 3.125000e-02 : f32
    %5 = vector.broadcast %cst_4 : f32 to vector<1x128xf32>
    %6 = arith.mulf %4, %5 : vector<1x128xf32>
    %7 = vector.broadcast %6 : vector<1x128xf32> to vector<32x128xf32>
    %8 = arith.subf %2, %7 : vector<32x128xf32>
    %9 = arith.mulf %8, %8 : vector<32x128xf32>
    %cst_5 = arith.constant dense<0.000000e+00> : vector<128xf32>
    %10 = vector.multi_reduction <add>, %9, %cst_5 [0] : vector<32x128xf32> to vector<128xf32>
    %11 = vector.shape_cast %10 : vector<128xf32> to vector<1x128xf32>
    %cst_6 = arith.constant 3.125000e-02 : f32
    %12 = vector.broadcast %cst_6 : f32 to vector<1x128xf32>
    %13 = arith.mulf %11, %12 : vector<1x128xf32>
    %cst_7 = arith.constant 9.99999974E-6 : f32
    %14 = vector.broadcast %cst_7 : f32 to vector<1x128xf32>
    %15 = arith.addf %13, %14 : vector<1x128xf32>
    %16 = math.rsqrt %15 : vector<1x128xf32>
    %17 = vector.broadcast %16 : vector<1x128xf32> to vector<32x128xf32>
    %18 = arith.mulf %8, %17 : vector<32x128xf32>
    %c0_8 = arith.constant 0 : index
    %c0_9 = arith.constant 0 : index
    %19 = vector.load %arg3[%c0_8, %c0_9] : memref<1x128xf32, #tpu.memory_space<vmem>>, vector<1x128xf32>
    %20 = vector.broadcast %19 : vector<1x128xf32> to vector<32x128xf32>
    %21 = arith.mulf %18, %20 : vector<32x128xf32>
    %c0_10 = arith.constant 0 : index
    %c0_11 = arith.constant 0 : index
    %22 = vector.load %arg4[%c0_10, %c0_11] : memref<1x128xf32, #tpu.memory_space<vmem>>, vector<1x128xf32>
    %23 = vector.broadcast %22 : vector<1x128xf32> to vector<32x128xf32>
    %24 = arith.addf %21, %23 : vector<32x128xf32>
    %cst_12 = arith.constant 0.000000e+00 : f32
    %25 = vector.broadcast %cst_12 : f32 to vector<32x128xf32>
    %26 = arith.cmpf ogt, %24, %25 : vector<32x128xf32>
    %cst_13 = arith.constant 2.000000e-01 : f32
    %27 = vector.broadcast %cst_13 : f32 to vector<32x128xf32>
    %28 = arith.mulf %27, %24 : vector<32x128xf32>
    %29 = arith.select %26, %24, %28 : vector<32x128xi1>, vector<32x128xf32>
    %30 = arith.truncf %29 : vector<32x128xf32> to vector<32x128xbf16>
    %c0_14 = arith.constant 0 : index
    %c0_15 = arith.constant 0 : index
    %31 = vector.load %arg5[%c0_14, %c0_15] : memref<32x128xbf16, #tpu.memory_space<vmem>>, vector<32x128xbf16>
    tpu.vector_store %arg5[%c0_14, %c0_15], %30 {strides = array<i32>} : memref<32x128xbf16, #tpu.memory_space<vmem>>, vector<32x128xbf16>,
    return
  }
  func.func @transform_0(%arg0: i32) -> (i32, i32) {
    %c0_i32 = arith.constant 0 : i32
    %c0_i32_0 = arith.constant 0 : i32
    %c0_i32_1 = arith.constant 0 : i32
    return %c0_i32, %c0_i32_0 : i32, i32
  }
  func.func @transform_1(%arg0: i32) -> (i32, i32) {
    %c0_i32 = arith.constant 0 : i32
    %c0_i32_0 = arith.constant 0 : i32
    %c0_i32_1 = arith.constant 0 : i32
    return %c0_i32, %c0_i32_0 : i32, i32
  }
  func.func @transform_2(%arg0: i32) -> (i32, i32) {
    %c0_i32 = arith.constant 0 : i32
    %c0_i32_0 = arith.constant 0 : i32
    %c0_i32_1 = arith.constant 0 : i32
    return %c0_i32, %c0_i32_0 : i32, i32
  }
  func.func @transform_3(%arg0: i32) -> (i32, i32) {
    %c0_i32 = arith.constant 0 : i32
    %c0_i32_0 = arith.constant 0 : i32
    %c0_i32_1 = arith.constant 0 : i32
    return %c0_i32, %c0_i32_0 : i32, i32
  }
  func.func @transform_4(%arg0: i32) -> (i32, i32) {
    %c0_i32 = arith.constant 0 : i32
    %c0_i32_0 = arith.constant 0 : i32
    %c0_i32_1 = arith.constant 0 : i32
    return %c0_i32, %c0_i32_0 : i32, i32
  }
}

module attributes {stable_mosaic.version = 11 : i64} {
  func.func @_matvec_bias_kernel(%arg0: i32, %arg1: memref<32x1152xbf16, #tpu.memory_space<vmem>>, %arg2: memref<1x1152xf32, #tpu.memory_space<vmem>>, %arg3: memref<1x1xf32, #tpu.memory_space<vmem>>, %arg4: memref<32x1xf32, #tpu.memory_space<vmem>>) attributes {dimension_semantics = [#tpu.dimension_semantics<arbitrary>], iteration_bounds = array<i64: 1>, scalar_prefetch = 0 : i64, scratch_operands = 0 : i64, tpu.core_type = #tpu.core_type<tc>, window_params = [{pipeline_mode = #tpu.pipeline_mode<synchronous>, transform_indices = @transform_0, window_bounds = array<i64: 32, 1152>}, {pipeline_mode = #tpu.pipeline_mode<synchronous>, transform_indices = @transform_1, window_bounds = array<i64: 1, 1152>}, {pipeline_mode = #tpu.pipeline_mode<synchronous>, transform_indices = @transform_2, window_bounds = array<i64: 1, 1>}, {pipeline_mode = #tpu.pipeline_mode<synchronous>, transform_indices = @transform_3, window_bounds = array<i64: 32, 1>}]} {
    %c0 = arith.constant 0 : index
    %c0_0 = arith.constant 0 : index
    %0 = vector.load %arg1[%c0, %c0_0] : memref<32x1152xbf16, #tpu.memory_space<vmem>>, vector<32x1152xbf16>
    %1 = arith.extf %0 : vector<32x1152xbf16> to vector<32x1152xf32>
    %c0_1 = arith.constant 0 : index
    %c0_2 = arith.constant 0 : index
    %2 = vector.load %arg2[%c0_1, %c0_2] : memref<1x1152xf32, #tpu.memory_space<vmem>>, vector<1x1152xf32>
    %3 = vector.broadcast %2 : vector<1x1152xf32> to vector<32x1152xf32>
    %4 = arith.mulf %1, %3 : vector<32x1152xf32>
    %cst = arith.constant dense<0.000000e+00> : vector<32xf32>
    %5 = vector.multi_reduction <add>, %4, %cst [1] : vector<32x1152xf32> to vector<32xf32>
    %6 = vector.shape_cast %5 : vector<32xf32> to vector<32x1xf32>
    %c0_3 = arith.constant 0 : index
    %c0_4 = arith.constant 0 : index
    %7 = vector.load %arg3[%c0_3, %c0_4] : memref<1x1xf32, #tpu.memory_space<vmem>>, vector<1x1xf32>
    %8 = vector.broadcast %7 : vector<1x1xf32> to vector<32x1xf32>
    %9 = arith.addf %6, %8 : vector<32x1xf32>
    %c0_5 = arith.constant 0 : index
    %c0_6 = arith.constant 0 : index
    %10 = vector.load %arg4[%c0_5, %c0_6] : memref<32x1xf32, #tpu.memory_space<vmem>>, vector<32x1xf32>
    tpu.vector_store %arg4[%c0_5, %c0_6], %9 {strides = array<i32>} : memref<32x1xf32, #tpu.memory_space<vmem>>, vector<32x1xf32>,
    return
  }
  func.func @transform_0(%arg0: i32) -> (i32, i32) {
    %c0_i32 = arith.constant 0 : i32
    %c0_i32_0 = arith.constant 0 : i32
    %c0_i32_1 = arith.constant 0 : i32
    return %c0_i32, %c0_i32_0 : i32, i32
  }
  func.func @transform_1(%arg0: i32) -> (i32, i32) {
    %c0_i32 = arith.constant 0 : i32
    %c0_i32_0 = arith.constant 0 : i32
    %c0_i32_1 = arith.constant 0 : i32
    return %c0_i32, %c0_i32_0 : i32, i32
  }
  func.func @transform_2(%arg0: i32) -> (i32, i32) {
    %c0_i32 = arith.constant 0 : i32
    %c0_i32_0 = arith.constant 0 : i32
    %c0_i32_1 = arith.constant 0 : i32
    return %c0_i32, %c0_i32_0 : i32, i32
  }
  func.func @transform_3(%arg0: i32) -> (i32, i32) {
    %c0_i32 = arith.constant 0 : i32
    %c0_i32_0 = arith.constant 0 : i32
    %c0_i32_1 = arith.constant 0 : i32
    return %c0_i32, %c0_i32_0 : i32, i32
  }
}

</mosaic_0001>

<llo_original>
// kernel: vq_discriminator_forward.4
$region0: #{vq_discriminator_forward.4}
  #allocation0 [shape = 'u32[]', space=smem, size = 0x4, offset = 0x4, fixed_abs, tag = 'smem constant byte address 0x4 - core index']
  #allocation1 [shape = 'u32[144,128]{1,0:T(1,128)}', space=vmem, size = 0x12000, scoped, tag = 'internal scratch']
  %s0 = inlined_call_operand.vmem [shape: bf16[512,32], index: 0, kind: input, shape index: {}]
  %s1 = inlined_call_operand.vmem [shape: bf16[32,128], index: 1, kind: input, shape index: {}]
  %s2 = inlined_call_operand.vmem [shape: f32[1,128], index: 2, kind: input, shape index: {}]
  %s3 = inlined_call_operand.vmem [shape: bf16[512,128], index: 3, kind: output, shape index: {}]
  %s4 = sld [smem:[#allocation0]]
  $region45: #{vq_discriminator_forward.4} parent=0
    _
  %s6 = ssub.s32 1, %s4
  %s7 = scalar_select 0, %s6, %s4
  loop: start=0, step=1, limit=4
  $region2: #{vq_discriminator_forward.4} parent=0 // loop_pre_header
    _
  $region3: #{vq_discriminator_forward.4} parent=0 // loop_header
    %s9 = sphi 0, %s13
    %p10 = scmp.ge.s32.totalorder %s9, 4
    %s19 = sphi 0, %s21
    %s22 = sphi 0, %s19
    %s23 = sphi 0, %s22
    %s39 = sphi 0, %s23
    %s43 = sphi 0, %s43
    %s45 = sphi 0, %s43
    %s46 = sphi 0, %s45
    %s60 = sphi 0, %s46
    %s64 = sphi 0, %s64
    %s66 = sphi 0, %s64
    %s67 = sphi 0, %s66
    %s81 = sphi 0, %s67
    %s87 = sphi 0, %s89
    %s90 = sphi 0, %s87
    %s91 = sphi 0, %s90
    %s107 = sphi 0, %s91
  $region4: #{vq_discriminator_forward.4} parent=0 // loop_header_branch
    %12 = sbr.rel (%p10) target = $region8
  $region5: #{vq_discriminator_forward.4} parent=0 // loop_body
    %s14 = ssub.s32 %s9, 1
    %s15 = ssub.s32 %s9, 2
    %s16 = sadd.s32 %s9, 1
    %s17 = ssub.s32 %s9, %s16
    %p18 = scmp.eq.s32.totalorder %s17, 0
    %s20 = sadd.s32 %s19, 1
    %s21 = scalar_select %p18, %s19, %s20
    %p24 = pneg %p18
    %p25 = scmp.eq.s32.totalorder %s9, 1
    %p26 = por %p24, %p25
    %p27 = scmp.ne.s32.totalorder %s19, %s22
    %p28 = scmp.eq.s32.totalorder %s9, 0
    %p29 = por %p27, %p28
    %p30 = scmp.ne.s32.totalorder %s19, %s22
    %p31 = scmp.eq.s32.totalorder %s14, 1
    %p32 = por %p30, %p31
    %p33 = scmp.ne.s32.totalorder %s22, %s23
    %p34 = scmp.eq.s32.totalorder %s14, 0
    %p35 = por %p33, %p34
    %p36 = scmp.ne.s32.totalorder %s22, %s23
    %p37 = scmp.eq.s32.totalorder %s15, 1
    %p38 = por %p36, %p37
    %p40 = scmp.ne.s32.totalorder %s23, %s39
    %p41 = scmp.eq.s32.totalorder %s15, 0
    %p42 = por %p40, %p41
    %s44 = sadd.s32 %s43, 1
    %p47 = scmp.eq.s32.totalorder %s9, 1
    %p48 = scmp.ne.s32.totalorder %s43, %s45
    %p49 = scmp.eq.s32.totalorder %s9, 0
    %p50 = por %p48, %p49
    %p51 = scmp.ne.s32.totalorder %s43, %s45
    %p52 = scmp.eq.s32.totalorder %s14, 1
    %p53 = por %p51, %p52
    %p54 = scmp.ne.s32.totalorder %s45, %s46
    %p55 = scmp.eq.s32.totalorder %s14, 0
    %p56 = por %p54, %p55
    %p57 = scmp.ne.s32.totalorder %s45, %s46
    %p58 = scmp.eq.s32.totalorder %s15, 1
    %p59 = por %p57, %p58
    %p61 = scmp.ne.s32.totalorder %s46, %s60
    %p62 = scmp.eq.s32.totalorder %s15, 0
    %p63 = por %p61, %p62
    %s65 = sadd.s32 %s64, 1
    %p68 = scmp.eq.s32.totalorder %s9, 1
    %p69 = scmp.ne.s32.totalorder %s64, %s66
    %p70 = scmp.eq.s32.totalorder %s9, 0
    %p71 = por %p69, %p70
    %p72 = scmp.ne.s32.totalorder %s64, %s66
    %p73 = scmp.eq.s32.totalorder %s14, 1
    %p74 = por %p72, %p73
    %p75 = scmp.ne.s32.totalorder %s66, %s67
    %p76 = scmp.eq.s32.totalorder %s14, 0
    %p77 = por %p75, %p76
    %p78 = scmp.ne.s32.totalorder %s66, %s67
    %p79 = scmp.eq.s32.totalorder %s15, 1
    %p80 = por %p78, %p79
    %p82 = scmp.ne.s32.totalorder %s67, %s81
    %p83 = scmp.eq.s32.totalorder %s15, 0
    %p84 = por %p82, %p83
    %s85 = ssub.s32 %s9, %s16
    %p86 = scmp.eq.s32.totalorder %s85, 0
    %s88 = sadd.s32 %s87, 1
    %s89 = scalar_select %p86, %s87, %s88
    %p92 = pneg %p86
    %p93 = scmp.eq.s32.totalorder %s9, 1
    %p94 = por %p92, %p93
    %p95 = scmp.ne.s32.totalorder %s87, %s90
    %p96 = scmp.eq.s32.totalorder %s9, 0
    %p97 = por %p95, %p96
    %p98 = scmp.ne.s32.totalorder %s87, %s90
    %p99 = scmp.eq.s32.totalorder %s14, 1
    %p100 = por %p98, %p99
    %p101 = scmp.ne.s32.totalorder %s90, %s91
    %p102 = scmp.eq.s32.totalorder %s14, 0
    %p103 = por %p101, %p102
    %p104 = scmp.ne.s32.totalorder %s90, %s91
    %p105 = scmp.eq.s32.totalorder %s15, 1
    %p106 = por %p104, %p105
    %p108 = scmp.ne.s32.totalorder %s91, %s107
    %p109 = scmp.eq.s32.totalorder %s15, 0
    %p110 = por %p108, %p109
    %p111 = scmp.le.s32.totalorder 1, %s9
    %p112 = scmp.lt.s32.totalorder %s9, 3
    %p113 = pnand %p111, %p112
    %p114 = pneg %p113
    // Predicated region
    $region9: #{vq_discriminator_forward.4} parent=5 // pred_check
      _
    $region10: #{vq_discriminator_forward.4} parent=5 // pred_check_branch
      %116 = sbr.rel (%p113) target = $region12
    $region11: #{vq_discriminator_forward.4} parent=5 // pred_region
      %s117 = ssub.s32 %s9, 1
      // Predicated region
      $region13: #{vq_discriminator_forward.4} parent=11 // pred_check
        %p118 = pneg %p56
      $region14: #{vq_discriminator_forward.4} parent=11 // pred_check_branch
        %120 = sbr.rel (%p118) target = $region16
      $region15: #{vq_discriminator_forward.4} parent=11 // pred_region
        _
      $region16: #{vq_discriminator_forward.4} parent=11 // pred_fallthru
        _
      // Predicated region
      $region17: #{vq_discriminator_forward.4} parent=11 // pred_check
        %p121 = pneg %p77
      $region18: #{vq_discriminator_forward.4} parent=11 // pred_check_branch
        %123 = sbr.rel (%p121) target = $region20
      $region19: #{vq_discriminator_forward.4} parent=11 // pred_region
        _
      $region20: #{vq_discriminator_forward.4} parent=11 // pred_fallthru
        _
    $region12: #{vq_discriminator_forward.4} parent=5 // pred_fallthru
      _
    %p124 = scmp.lt.s32.totalorder %s9, 2
    // Predicated region
    $region21: #{vq_discriminator_forward.4} parent=5 // pred_check
      %p125 = pneg %p124
    $region22: #{vq_discriminator_forward.4} parent=5 // pred_check_branch
      %127 = sbr.rel (%p125) target = $region24
    $region23: #{vq_discriminator_forward.4} parent=5 // pred_region
      // Predicated region
      $region25: #{vq_discriminator_forward.4} parent=23 // pred_check
        %p128 = pneg %p29
      $region26: #{vq_discriminator_forward.4} parent=23 // pred_check_branch
        %130 = sbr.rel (%p128) target = $region28
      $region27: #{vq_discriminator_forward.4} parent=23 // pred_region
        %s131 = smul.u32 32, %s9
        %p132 = scmp.lt.s32.totalorder %s131, 63
        %s133 = scalar_select %p132, %s131, 63
        %s134 = smul.addr %s133, 4
        %s135 = scalar_lea.vmem %s0, %s134
        %s136 = smul.u32 32, %s9
      $region28: #{vq_discriminator_forward.4} parent=23 // pred_fallthru
        _
    $region24: #{vq_discriminator_forward.4} parent=5 // pred_fallthru
      _
    %p137 = scmp.le.s32.totalorder 1, %s9
    %p138 = scmp.lt.s32.totalorder %s9, 3
    %p139 = pnand %p137, %p138
    %p140 = pneg %p139
    // Predicated region
    $region29: #{vq_discriminator_forward.4} parent=5 // pred_check
      _
    $region30: #{vq_discriminator_forward.4} parent=5 // pred_check_branch
      %142 = sbr.rel (%p139) target = $region32
    $region31: #{vq_discriminator_forward.4} parent=5 // pred_region
      %s143 = ssub.s32 %s9, 1
      %s144 = smul.u32 32, %s14
      %p145 = scmp.lt.s32.totalorder %s144, 63
      %s146 = scalar_select %p145, %s144, 63
      %s147 = smul.addr %s146, 4
      %s148 = scalar_lea.vmem %s0, %s147
      %p149 = pneg %p35
      %p150 = pneg %p32
      %p151 = pneg %p56
      %p152 = pneg %p53
      %p153 = pneg %p77
      %p154 = pneg %p74
      %p155 = pneg %p103
      %p156 = pneg %p100
      %s157 = smul.u32 32, %s14
      %p158 = scmp.lt.s32.totalorder %s157, 63
      %s159 = scalar_select %p158, %s157, 63
      %s160 = smul.addr %s159, 4
      %s161 = scalar_lea.vmem %s3, %s160
      %s162 = smul.u32 32, %s14
      %p163 = scmp.lt.s32.totalorder %s162, 63
      %s164 = scalar_select %p163, %s162, 63
      %s165 = smul.addr %s164, 4
      %s166 = scalar_lea.vmem %s0, %s165
      %s167 = smul.u32 32, %s14
      %s168 = smul.u32 32, %s14
      %p169 = scmp.lt.s32.totalorder %s168, 63
      %s170 = scalar_select %p169, %s168, 63
      %s171 = smul.addr %s170, 4
      %s172 = scalar_lea.vmem %s3, %s171
      %s173 = smul.u32 32, %s14
      %v175 = vld [vmem:[%s166] sm:$0xf]
      %v176 = vld [vmem:[%s166 + $0x4] sm:$0xf]
      %v177 = vld [vmem:[%s166 + $0x8] sm:$0xf]
      %v178 = vld [vmem:[%s166 + $0xc] sm:$0xf]
      %v179 = vld [vmem:[%s166 + $0x10] sm:$0xf]
      %v180 = vld [vmem:[%s166 + $0x14] sm:$0xf]
      %v181 = vld [vmem:[%s166 + $0x18] sm:$0xf]
      %v182 = vld [vmem:[%s166 + $0x1c] sm:$0xf]
      %v183 = vld [vmem:[%s166 + $0x20] sm:$0xf]
      %v184 = vld [vmem:[%s166 + $0x24] sm:$0xf]
      %v185 = vld [vmem:[%s166 + $0x28] sm:$0xf]
      %v186 = vld [vmem:[%s166 + $0x2c] sm:$0xf]
      %v187 = vld [vmem:[%s166 + $0x30] sm:$0xf]
      %v188 = vld [vmem:[%s166 + $0x34] sm:$0xf]
      %v189 = vld [vmem:[%s166 + $0x38] sm:$0xf]
      %v190 = vld [vmem:[%s166 + $0x3c] sm:$0xf]
      %v191 = vld [vmem:[%s166 + $0x40] sm:$0xf]
      %v192 = vld [vmem:[%s166 + $0x44] sm:$0xf]
      %v193 = vld [vmem:[%s166 + $0x48] sm:$0xf]
      %v194 = vld [vmem:[%s166 + $0x4c] sm:$0xf]
      %v195 = vld [vmem:[%s166 + $0x50] sm:$0xf]
      %v196 = vld [vmem:[%s166 + $0x54] sm:$0xf]
      %v197 = vld [vmem:[%s166 + $0x58] sm:$0xf]
      %v198 = vld [vmem:[%s166 + $0x5c] sm:$0xf]
      %v199 = vld [vmem:[%s166 + $0x60] sm:$0xf]
      %v200 = vld [vmem:[%s166 + $0x64] sm:$0xf]
      %v201 = vld [vmem:[%s166 + $0x68] sm:$0xf]
      %v202 = vld [vmem:[%s166 + $0x6c] sm:$0xf]
      %v203 = vld [vmem:[%s166 + $0x70] sm:$0xf]
      %v204 = vld [vmem:[%s166 + $0x74] sm:$0xf]
      %v205 = vld [vmem:[%s166 + $0x78] sm:$0xf]
      %v206 = vld [vmem:[%s166 + $0x7c] sm:$0xf]
      %v207 = vld [vmem:[%s1] sm:$0xf]
      %v208 = vld [vmem:[%s1 + $0x4] sm:$0xf]
      %v209 = vld [vmem:[%s1 + $0x8] sm:$0xf]
      %v210 = vld [vmem:[%s1 + $0xc] sm:$0xf]
      %v211 = vld [vmem:[%s2] sm:$0x1]
      %v213 = vlaneseq
      %v214 = vshrl.u32 %v213, 7
      %v215 = vsub.s32 0, %v214
      %v216 = vrot.slane %v211, %v215
      %v250 = vunpack.c.l.b16 %v175
      %v251 = vunpack.c.l.b16 %v176
      %v252 = vunpack.c.l.b16 %v177
      %v253 = vunpack.c.l.b16 %v178
      %v254 = vunpack.c.l.b16 %v179
      %v255 = vunpack.c.l.b16 %v180
      %v256 = vunpack.c.l.b16 %v181
      %v257 = vunpack.c.l.b16 %v182
      %v258 = vunpack.c.l.b16 %v183
      %v259 = vunpack.c.l.b16 %v184
      %v260 = vunpack.c.l.b16 %v185
      %v261 = vunpack.c.l.b16 %v186
      %v262 = vunpack.c.l.b16 %v187
      %v263 = vunpack.c.l.b16 %v188
      %v264 = vunpack.c.l.b16 %v189
      %v265 = vunpack.c.l.b16 %v190
      %v266 = vunpack.c.l.b16 %v191
      %v267 = vunpack.c.l.b16 %v192
      %v268 = vunpack.c.l.b16 %v193
      %v269 = vunpack.c.l.b16 %v194
      %v270 = vunpack.c.l.b16 %v195
      %v271 = vunpack.c.l.b16 %v196
      %v272 = vunpack.c.l.b16 %v197
      %v273 = vunpack.c.l.b16 %v198
      %v274 = vunpack.c.l.b16 %v199
      %v275 = vunpack.c.l.b16 %v200
      %v276 = vunpack.c.l.b16 %v201
      %v277 = vunpack.c.l.b16 %v202
      %v278 = vunpack.c.l.b16 %v203
      %v279 = vunpack.c.l.b16 %v204
      %v280 = vunpack.c.l.b16 %v205
      %v281 = vunpack.c.l.b16 %v206
      %v282 = vpack.c.b16 %v251, %v250
      %v283 = vpack.c.b16 %v253, %v252
      %v284 = vpack.c.b16 %v255, %v254
      %v285 = vpack.c.b16 %v257, %v256
      %v286 = vpack.c.b16 %v259, %v258
      %v287 = vpack.c.b16 %v261, %v260
      %v288 = vpack.c.b16 %v263, %v262
      %v289 = vpack.c.b16 %v265, %v264
      %v290 = vpack.c.b16 %v267, %v266
      %v291 = vpack.c.b16 %v269, %v268
      %v292 = vpack.c.b16 %v271, %v270
      %v293 = vpack.c.b16 %v273, %v272
      %v294 = vpack.c.b16 %v275, %v274
      %v295 = vpack.c.b16 %v277, %v276
      %v296 = vpack.c.b16 %v279, %v278
      %v297 = vpack.c.b16 %v281, %v280
      %v302 = vunpack.c.l.b16 %v207
      %v303 = vunpack.c.l.b16 %v208
      %v304 = vunpack.c.l.b16 %v209
      %v305 = vunpack.c.l.b16 %v210
      %v306 = vpack.c.b16 %v303, %v302
      %v307 = vpack.c.b16 %v305, %v304
      %vm310 = vcmask 261120
      %v312 = vsel %vm310, %v282, 0
      %v315 = vsel %vm310, %v283, 0
      %v318 = vsel %vm310, %v284, 0
      %v321 = vsel %vm310, %v285, 0
      %v324 = vsel %vm310, %v286, 0
      %v327 = vsel %vm310, %v287, 0
      %v330 = vsel %vm310, %v288, 0
      %v333 = vsel %vm310, %v289, 0
      %v336 = vsel %vm310, %v290, 0
      %v339 = vsel %vm310, %v291, 0
      %v342 = vsel %vm310, %v292, 0
      %v345 = vsel %vm310, %v293, 0
      %v348 = vsel %vm310, %v294, 0
      %v351 = vsel %vm310, %v295, 0
      %v354 = vsel %vm310, %v296, 0
      %v357 = vsel %vm310, %v297, 0
      %359 = vmatprep.subr.bf16.mxu0 0
      %360 = vmatpush1.bf16.msra.mxu0 %v306
      %361 = vmatprep.subr.bf16.mxu0 0
      %362 = vmatpush1.bf16.msra.mxu0 %v307
      %363 = vmatprep.subr.bf16.mxu0 0
      %364 = vmatpush1.bf16.msra.mxu0 0
      %365 = vmatprep.subr.bf16.mxu0 0
      %366 = vmatpush1.bf16.msra.mxu0 0
      %367 = vmatprep.subr.bf16.mxu0 0
      %368 = vmatpush1.bf16.msra.mxu0 0
      %369 = vmatprep.subr.bf16.mxu0 0
      %370 = vmatpush1.bf16.msra.mxu0 0
      %371 = vmatprep.subr.bf16.mxu0 0
      %372 = vmatpush1.bf16.msra.mxu0 0
      %373 = vmatprep.subr.bf16.mxu0 0
      %374 = vmatpush1.bf16.msra.mxu0 0
      %375 = vmatprep.subr.bf16.mxu0 0
      %376 = vmatpush1.bf16.msra.mxu0 0
      %377 = vmatprep.subr.bf16.mxu0 0
      %378 = vmatpush1.bf16.msra.mxu0 0
      %379 = vmatprep.subr.bf16.mxu0 0
      %380 = vmatpush1.bf16.msra.mxu0 0
      %381 = vmatprep.subr.bf16.mxu0 0
      %382 = vmatpush1.bf16.msra.mxu0 0
      %383 = vmatprep.subr.bf16.mxu0 0
      %384 = vmatpush1.bf16.msra.mxu0 0
      %385 = vmatprep.subr.bf16.mxu0 0
      %386 = vmatpush1.bf16.msra.mxu0 0
      %387 = vmatprep.subr.bf16.mxu0 0
      %388 = vmatpush1.bf16.msra.mxu0 0
      %389 = vmatprep.subr.bf16.mxu0 0
      %390 = vmatpush1.bf16.msra.mxu0 0
      %391 = vmatprep.mubr.bf16.mxu0 0
      %392 = vmatmul.mubr.bf16.gmra.mrb[0].mxu0 %v312
      %v393 = vpop.f32.mrb[0].mxu0
      %v394 = vadd.f32 %v216, %v393
      %v395 = vpop.f32.mrb[0].mxu0
      %v396 = vpop.f32.mrb[0].mxu0
      %v397 = vadd.f32 %v216, %v396
      %v398 = vpop.f32.mrb[0].mxu0
      %399 = vmatprep.mubr.bf16.mxu0 0
      %400 = vmatmul.mubr.bf16.gmra.mrb[0].mxu0 %v315
      %v401 = vpop.f32.mrb[0].mxu0
      %v402 = vadd.f32 %v216, %v401
      %v403 = vpop.f32.mrb[0].mxu0
      %v404 = vpop.f32.mrb[0].mxu0
      %v405 = vadd.f32 %v216, %v404
      %v406 = vpop.f32.mrb[0].mxu0
      %407 = vmatprep.mubr.bf16.mxu0 0
      %408 = vmatmul.mubr.bf16.gmra.mrb[0].mxu0 %v318
      %v409 = vpop.f32.mrb[0].mxu0
      %v410 = vadd.f32 %v216, %v409
      %v411 = vpop.f32.mrb[0].mxu0
      %v412 = vpop.f32.mrb[0].mxu0
      %v413 = vadd.f32 %v216, %v412
      %v414 = vpop.f32.mrb[0].mxu0
      %415 = vmatprep.mubr.bf16.mxu0 0
      %416 = vmatmul.mubr.bf16.gmra.mrb[0].mxu0 %v321
      %v417 = vpop.f32.mrb[0].mxu0
      %v418 = vadd.f32 %v216, %v417
      %v419 = vpop.f32.mrb[0].mxu0
      %v420 = vpop.f32.mrb[0].mxu0
      %v421 = vadd.f32 %v216, %v420
      %v422 = vpop.f32.mrb[0].mxu0
      %423 = vmatprep.mubr.bf16.mxu0 0
      %424 = vmatmul.mubr.bf16.gmra.mrb[0].mxu0 %v324
      %v425 = vpop.f32.mrb[0].mxu0
      %v426 = vadd.f32 %v216, %v425
      %v427 = vpop.f32.mrb[0].mxu0
      %v428 = vpop.f32.mrb[0].mxu0
      %v429 = vadd.f32 %v216, %v428
      %v430 = vpop.f32.mrb[0].mxu0
      %431 = vmatprep.mubr.bf16.mxu0 0
      %432 = vmatmul.mubr.bf16.gmra.mrb[0].mxu0 %v327
      %v433 = vpop.f32.mrb[0].mxu0
      %v434 = vadd.f32 %v216, %v433
      %v435 = vpop.f32.mrb[0].mxu0
      %v436 = vpop.f32.mrb[0].mxu0
      %v437 = vadd.f32 %v216, %v436
      %v438 = vpop.f32.mrb[0].mxu0
      %439 = vmatprep.mubr.bf16.mxu0 0
      %440 = vmatmul.mubr.bf16.gmra.mrb[0].mxu0 %v330
      %v441 = vpop.f32.mrb[0].mxu0
      %v442 = vadd.f32 %v216, %v441
      %v443 = vpop.f32.mrb[0].mxu0
      %v444 = vpop.f32.mrb[0].mxu0
      %v445 = vadd.f32 %v216, %v444
      %v446 = vpop.f32.mrb[0].mxu0
      %447 = vmatprep.mubr.bf16.mxu0 0
      %448 = vmatmul.mubr.bf16.gmra.mrb[0].mxu0 %v333
      %v449 = vpop.f32.mrb[0].mxu0
      %v450 = vadd.f32 %v216, %v449
      %v451 = vpop.f32.mrb[0].mxu0
      %v452 = vpop.f32.mrb[0].mxu0
      %v453 = vadd.f32 %v216, %v452
      %v454 = vpop.f32.mrb[0].mxu0
      %455 = vmatprep.mubr.bf16.mxu0 0
      %456 = vmatmul.mubr.bf16.gmra.mrb[0].mxu0 %v336
      %v457 = vpop.f32.mrb[0].mxu0
      %v458 = vadd.f32 %v216, %v457
      %v459 = vpop.f32.mrb[0].mxu0
      %v460 = vpop.f32.mrb[0].mxu0
      %v461 = vadd.f32 %v216, %v460
      %v462 = vpop.f32.mrb[0].mxu0
      %463 = vmatprep.mubr.bf16.mxu0 0
      %464 = vmatmul.mubr.bf16.gmra.mrb[0].mxu0 %v339
      %v465 = vpop.f32.mrb[0].mxu0
      %v466 = vadd.f32 %v216, %v465
      %v467 = vpop.f32.mrb[0].mxu0
      %v468 = vpop.f32.mrb[0].mxu0
      %v469 = vadd.f32 %v216, %v468
      %v470 = vpop.f32.mrb[0].mxu0
      %471 = vmatprep.mubr.bf16.mxu0 0
      %472 = vmatmul.mubr.bf16.gmra.mrb[0].mxu0 %v342
      %v473 = vpop.f32.mrb[0].mxu0
      %v474 = vadd.f32 %v216, %v473
      %v475 = vpop.f32.mrb[0].mxu0
      %v476 = vpop.f32.mrb[0].mxu0
      %v477 = vadd.f32 %v216, %v476
      %v478 = vpop.f32.mrb[0].mxu0
      %479 = vmatprep.mubr.bf16.mxu0 0
      %480 = vmatmul.mubr.bf16.gmra.mrb[0].mxu0 %v345
      %v481 = vpop.f32.mrb[0].mxu0
      %v482 = vadd.f32 %v216, %v481
      %v483 = vpop.f32.mrb[0].mxu0
      %v484 = vpop.f32.mrb[0].mxu0
      %v485 = vadd.f32 %v216, %v484
      %v486 = vpop.f32.mrb[0].mxu0
      %487 = vmatprep.mubr.bf16.mxu0 0
      %488 = vmatmul.mubr.bf16.gmra.mrb[0].mxu0 %v348
      %v489 = vpop.f32.mrb[0].mxu0
      %v490 = vadd.f32 %v216, %v489
      %v491 = vpop.f32.mrb[0].mxu0
      %v492 = vpop.f32.mrb[0].mxu0
      %v493 = vadd.f32 %v216, %v492
      %v494 = vpop.f32.mrb[0].mxu0
      %495 = vmatprep.mubr.bf16.mxu0 0
      %496 = vmatmul.mubr.bf16.gmra.mrb[0].mxu0 %v351
      %v497 = vpop.f32.mrb[0].mxu0
      %v498 = vadd.f32 %v216, %v497
      %v499 = vpop.f32.mrb[0].mxu0
      %v500 = vpop.f32.mrb[0].mxu0
      %v501 = vadd.f32 %v216, %v500
      %v502 = vpop.f32.mrb[0].mxu0
      %503 = vmatprep.mubr.bf16.mxu0 0
      %504 = vmatmul.mubr.bf16.gmra.mrb[0].mxu0 %v354
      %v505 = vpop.f32.mrb[0].mxu0
      %v506 = vadd.f32 %v216, %v505
      %v507 = vpop.f32.mrb[0].mxu0
      %v508 = vpop.f32.mrb[0].mxu0
      %v509 = vadd.f32 %v216, %v508
      %v510 = vpop.f32.mrb[0].mxu0
      %511 = vmatprep.mubr.bf16.mxu0 0
      %512 = vmatmul.mubr.bf16.gmra.mrb[0].mxu0 %v357
      %v513 = vpop.f32.mrb[0].mxu0
      %v514 = vadd.f32 %v216, %v513
      %v515 = vpop.f32.mrb[0].mxu0
      %v516 = vpop.f32.mrb[0].mxu0
      %v517 = vadd.f32 %v216, %v516
      %v518 = vpop.f32.mrb[0].mxu0
      %519 = vdwg.mxu0
      %vm520 = vcmp.gt.f32.partialorder %v394, 0.0
      %vm521 = vcmp.gt.f32.partialorder %v397, 0.0
      %vm522 = vcmp.gt.f32.partialorder %v402, 0.0
      %vm523 = vcmp.gt.f32.partialorder %v405, 0.0
      %vm524 = vcmp.gt.f32.partialorder %v410, 0.0
      %vm525 = vcmp.gt.f32.partialorder %v413, 0.0
      %vm526 = vcmp.gt.f32.partialorder %v418, 0.0
      %vm527 = vcmp.gt.f32.partialorder %v421, 0.0
      %vm528 = vcmp.gt.f32.partialorder %v426, 0.0
      %vm529 = vcmp.gt.f32.partialorder %v429, 0.0
      %vm530 = vcmp.gt.f32.partialorder %v434, 0.0
      %vm531 = vcmp.gt.f32.partialorder %v437, 0.0
      %vm532 = vcmp.gt.f32.partialorder %v442, 0.0
      %vm533 = vcmp.gt.f32.partialorder %v445, 0.0
      %vm534 = vcmp.gt.f32.partialorder %v450, 0.0
      %vm535 = vcmp.gt.f32.partialorder %v453, 0.0
      %vm536 = vcmp.gt.f32.partialorder %v458, 0.0
      %vm537 = vcmp.gt.f32.partialorder %v461, 0.0
      %vm538 = vcmp.gt.f32.partialorder %v466, 0.0
      %vm539 = vcmp.gt.f32.partialorder %v469, 0.0
      %vm540 = vcmp.gt.f32.partialorder %v474, 0.0
      %vm541 = vcmp.gt.f32.partialorder %v477, 0.0
      %vm542 = vcmp.gt.f32.partialorder %v482, 0.0
      %vm543 = vcmp.gt.f32.partialorder %v485, 0.0
      %vm544 = vcmp.gt.f32.partialorder %v490, 0.0
      %vm545 = vcmp.gt.f32.partialorder %v493, 0.0
      %vm546 = vcmp.gt.f32.partialorder %v498, 0.0
      %vm547 = vcmp.gt.f32.partialorder %v501, 0.0
      %vm548 = vcmp.gt.f32.partialorder %v506, 0.0
      %vm549 = vcmp.gt.f32.partialorder %v509, 0.0
      %vm550 = vcmp.gt.f32.partialorder %v514, 0.0
      %vm551 = vcmp.gt.f32.partialorder %v517, 0.0
      %v552 = vmul.f32 %v394, 0.2
      %v553 = vmul.f32 %v397, 0.2
      %v554 = vmul.f32 %v402, 0.2
      %v555 = vmul.f32 %v405, 0.2
      %v556 = vmul.f32 %v410, 0.2
      %v557 = vmul.f32 %v413, 0.2
      %v558 = vmul.f32 %v418, 0.2
      %v559 = vmul.f32 %v421, 0.2
      %v560 = vmul.f32 %v426, 0.2
      %v561 = vmul.f32 %v429, 0.2
      %v562 = vmul.f32 %v434, 0.2
      %v563 = vmul.f32 %v437, 0.2
      %v564 = vmul.f32 %v442, 0.2
      %v565 = vmul.f32 %v445, 0.2
      %v566 = vmul.f32 %v450, 0.2
      %v567 = vmul.f32 %v453, 0.2
      %v568 = vmul.f32 %v458, 0.2
      %v569 = vmul.f32 %v461, 0.2
      %v570 = vmul.f32 %v466, 0.2
      %v571 = vmul.f32 %v469, 0.2
      %v572 = vmul.f32 %v474, 0.2
      %v573 = vmul.f32 %v477, 0.2
      %v574 = vmul.f32 %v482, 0.2
      %v575 = vmul.f32 %v485, 0.2
      %v576 = vmul.f32 %v490, 0.2
      %v577 = vmul.f32 %v493, 0.2
      %v578 = vmul.f32 %v498, 0.2
      %v579 = vmul.f32 %v501, 0.2
      %v580 = vmul.f32 %v506, 0.2
      %v581 = vmul.f32 %v509, 0.2
      %v582 = vmul.f32 %v514, 0.2
      %v583 = vmul.f32 %v517, 0.2
      %v584 = vsel %vm520, %v394, %v552
      %v585 = vsel %vm521, %v397, %v553
      %v586 = vsel %vm522, %v402, %v554
      %v587 = vsel %vm523, %v405, %v555
      %v588 = vsel %vm524, %v410, %v556
      %v589 = vsel %vm525, %v413, %v557
      %v590 = vsel %vm526, %v418, %v558
      %v591 = vsel %vm527, %v421, %v559
      %v592 = vsel %vm528, %v426, %v560
      %v593 = vsel %vm529, %v429, %v561
      %v594 = vsel %vm530, %v434, %v562
      %v595 = vsel %vm531, %v437, %v563
      %v596 = vsel %vm532, %v442, %v564
      %v597 = vsel %vm533, %v445, %v565
      %v598 = vsel %vm534, %v450, %v566
      %v599 = vsel %vm535, %v453, %v567
      %v600 = vsel %vm536, %v458, %v568
      %v601 = vsel %vm537, %v461, %v569
      %v602 = vsel %vm538, %v466, %v570
      %v603 = vsel %vm539, %v469, %v571
      %v604 = vsel %vm540, %v474, %v572
      %v605 = vsel %vm541, %v477, %v573
      %v606 = vsel %vm542, %v482, %v574
      %v607 = vsel %vm543, %v485, %v575
      %v608 = vsel %vm544, %v490, %v576
      %v609 = vsel %vm545, %v493, %v577
      %v610 = vsel %vm546, %v498, %v578
      %v611 = vsel %vm547, %v501, %v579
      %v612 = vsel %vm548, %v506, %v580
      %v613 = vsel %vm549, %v509, %v581
      %v614 = vsel %vm550, %v514, %v582
      %v615 = vsel %vm551, %v517, %v583
      %v616 = vpack.c.bf16 %v585, %v584
      %v617 = vpack.c.bf16 %v587, %v586
      %v618 = vpack.c.bf16 %v589, %v588
      %v619 = vpack.c.bf16 %v591, %v590
      %v620 = vpack.c.bf16 %v593, %v592
      %v621 = vpack.c.bf16 %v595, %v594
      %v622 = vpack.c.bf16 %v597, %v596
      %v623 = vpack.c.bf16 %v599, %v598
      %v624 = vpack.c.bf16 %v601, %v600
      %v625 = vpack.c.bf16 %v603, %v602
      %v626 = vpack.c.bf16 %v605, %v604
      %v627 = vpack.c.bf16 %v607, %v606
      %v628 = vpack.c.bf16 %v609, %v608
      %v629 = vpack.c.bf16 %v611, %v610
      %v630 = vpack.c.bf16 %v613, %v612
      %v631 = vpack.c.bf16 %v615, %v614
      %v648 = vunpack.c.l.b16 %v616
      %v649 = vunpack.c.h.b16 %v616
      %v650 = vunpack.c.l.b16 %v617
      %v651 = vunpack.c.h.b16 %v617
      %v652 = vunpack.c.l.b16 %v618
      %v653 = vunpack.c.h.b16 %v618
      %v654 = vunpack.c.l.b16 %v619
      %v655 = vunpack.c.h.b16 %v619
      %v656 = vunpack.c.l.b16 %v620
      %v657 = vunpack.c.h.b16 %v620
      %v658 = vunpack.c.l.b16 %v621
      %v659 = vunpack.c.h.b16 %v621
      %v660 = vunpack.c.l.b16 %v622
      %v661 = vunpack.c.h.b16 %v622
      %v662 = vunpack.c.l.b16 %v623
      %v663 = vunpack.c.h.b16 %v623
      %v664 = vunpack.c.l.b16 %v624
      %v665 = vunpack.c.h.b16 %v624
      %v666 = vunpack.c.l.b16 %v625
      %v667 = vunpack.c.h.b16 %v625
      %v668 = vunpack.c.l.b16 %v626
      %v669 = vunpack.c.h.b16 %v626
      %v670 = vunpack.c.l.b16 %v627
      %v671 = vunpack.c.h.b16 %v627
      %v672 = vunpack.c.l.b16 %v628
      %v673 = vunpack.c.h.b16 %v628
      %v674 = vunpack.c.l.b16 %v629
      %v675 = vunpack.c.h.b16 %v629
      %v676 = vunpack.c.l.b16 %v630
      %v677 = vunpack.c.h.b16 %v630
      %v678 = vunpack.c.l.b16 %v631
      %v679 = vunpack.c.h.b16 %v631
      %v680 = vpack.c.b16 %v648, %v648
      %v681 = vpack.c.b16 %v649, %v649
      %v682 = vpack.c.b16 %v650, %v650
      %v683 = vpack.c.b16 %v651, %v651
      %v684 = vpack.c.b16 %v652, %v652
      %v685 = vpack.c.b16 %v653, %v653
      %v686 = vpack.c.b16 %v654, %v654
      %v687 = vpack.c.b16 %v655, %v655
      %v688 = vpack.c.b16 %v656, %v656
      %v689 = vpack.c.b16 %v657, %v657
      %v690 = vpack.c.b16 %v658, %v658
      %v691 = vpack.c.b16 %v659, %v659
      %v692 = vpack.c.b16 %v660, %v660
      %v693 = vpack.c.b16 %v661, %v661
      %v694 = vpack.c.b16 %v662, %v662
      %v695 = vpack.c.b16 %v663, %v663
      %v696 = vpack.c.b16 %v664, %v664
      %v697 = vpack.c.b16 %v665, %v665
      %v698 = vpack.c.b16 %v666, %v666
      %v699 = vpack.c.b16 %v667, %v667
      %v700 = vpack.c.b16 %v668, %v668
      %v701 = vpack.c.b16 %v669, %v669
      %v702 = vpack.c.b16 %v670, %v670
      %v703 = vpack.c.b16 %v671, %v671
      %v704 = vpack.c.b16 %v672, %v672
      %v705 = vpack.c.b16 %v673, %v673
      %v706 = vpack.c.b16 %v674, %v674
      %v707 = vpack.c.b16 %v675, %v675
      %v708 = vpack.c.b16 %v676, %v676
      %v709 = vpack.c.b16 %v677, %v677
      %v710 = vpack.c.b16 %v678, %v678
      %v711 = vpack.c.b16 %v679, %v679
      %744 = vst [vmem:[%s172] sm:$0xf] %v680
      %745 = vst [vmem:[%s172 + $0x4] sm:$0xf] %v681
      %746 = vst [vmem:[%s172 + $0x8] sm:$0xf] %v682
      %747 = vst [vmem:[%s172 + $0xc] sm:$0xf] %v683
      %748 = vst [vmem:[%s172 + $0x10] sm:$0xf] %v684
      %749 = vst [vmem:[%s172 + $0x14] sm:$0xf] %v685
      %750 = vst [vmem:[%s172 + $0x18] sm:$0xf] %v686
      %751 = vst [vmem:[%s172 + $0x1c] sm:$0xf] %v687
      %752 = vst [vmem:[%s172 + $0x20] sm:$0xf] %v688
      %753 = vst [vmem:[%s172 + $0x24] sm:$0xf] %v689
      %754 = vst [vmem:[%s172 + $0x28] sm:$0xf] %v690
      %755 = vst [vmem:[%s172 + $0x2c] sm:$0xf] %v691
      %756 = vst [vmem:[%s172 + $0x30] sm:$0xf] %v692
      %757 = vst [vmem:[%s172 + $0x34] sm:$0xf] %v693
      %758 = vst [vmem:[%s172 + $0x38] sm:$0xf] %v694
      %759 = vst [vmem:[%s172 + $0x3c] sm:$0xf] %v695
      %760 = vst [vmem:[%s172 + $0x40] sm:$0xf] %v696
      %761 = vst [vmem:[%s172 + $0x44] sm:$0xf] %v697
      %762 = vst [vmem:[%s172 + $0x48] sm:$0xf] %v698
      %763 = vst [vmem:[%s172 + $0x4c] sm:$0xf] %v699
      %764 = vst [vmem:[%s172 + $0x50] sm:$0xf] %v700
      %765 = vst [vmem:[%s172 + $0x54] sm:$0xf] %v701
      %766 = vst [vmem:[%s172 + $0x58] sm:$0xf] %v702
      %767 = vst [vmem:[%s172 + $0x5c] sm:$0xf] %v703
      %768 = vst [vmem:[%s172 + $0x60] sm:$0xf] %v704
      %769 = vst [vmem:[%s172 + $0x64] sm:$0xf] %v705
      %770 = vst [vmem:[%s172 + $0x68] sm:$0xf] %v706
      %771 = vst [vmem:[%s172 + $0x6c] sm:$0xf] %v707
      %772 = vst [vmem:[%s172 + $0x70] sm:$0xf] %v708
      %773 = vst [vmem:[%s172 + $0x74] sm:$0xf] %v709
      %774 = vst [vmem:[%s172 + $0x78] sm:$0xf] %v710
      %775 = vst [vmem:[%s172 + $0x7c] sm:$0xf] %v711
      %s776 = smul.u32 32, %s14
      %p777 = scmp.lt.s32.totalorder %s776, 63
      %s778 = scalar_select %p777, %s776, 63
      %s779 = smul.addr %s778, 4
      %s780 = scalar_lea.vmem %s3, %s779
      // Predicated region
      $region33: #{vq_discriminator_forward.4} parent=31 // pred_check
        %p781 = pneg %p100
      $region34: #{vq_discriminator_forward.4} parent=31 // pred_check_branch
        %783 = sbr.rel (%p781) target = $region36
      $region35: #{vq_discriminator_forward.4} parent=31 // pred_region
        %s784 = smul.u32 32, %s14
      $region36: #{vq_discriminator_forward.4} parent=31 // pred_fallthru
        _
    $region32: #{vq_discriminator_forward.4} parent=5 // pred_fallthru
      _
    %p785 = scmp.le.s32.totalorder 2, %s9
    // Predicated region
    $region37: #{vq_discriminator_forward.4} parent=5 // pred_check
      %p786 = pneg %p785
    $region38: #{vq_discriminator_forward.4} parent=5 // pred_check_branch
      %788 = sbr.rel (%p786) target = $region40
    $region39: #{vq_discriminator_forward.4} parent=5 // pred_region
      %s789 = ssub.s32 %s9, 2
      // Predicated region
      $region41: #{vq_discriminator_forward.4} parent=39 // pred_check
        %p790 = pneg %p106
      $region42: #{vq_discriminator_forward.4} parent=39 // pred_check_branch
        %792 = sbr.rel (%p790) target = $region44
      $region43: #{vq_discriminator_forward.4} parent=39 // pred_region
        %s793 = smul.u32 32, %s15
        %p794 = scmp.lt.s32.totalorder %s793, 63
        %s795 = scalar_select %p794, %s793, 63
        %s796 = smul.addr %s795, 4
        %s797 = scalar_lea.vmem %s3, %s796
      $region44: #{vq_discriminator_forward.4} parent=39 // pred_fallthru
        _
    $region40: #{vq_discriminator_forward.4} parent=5 // pred_fallthru
      _
  $region6: #{vq_discriminator_forward.4} parent=0 // loop_footer
    %s13 = sadd.s32 1, %s9
  $region7: #{vq_discriminator_forward.4} parent=0 // loop_footer_branch
    %8 = sbr.rel target = $region3
  $region8: #{vq_discriminator_forward.4} parent=0 // loop_exit
    _

// kernel: vq_discriminator_forward.5
$region0: #{vq_discriminator_forward.5}
  #allocation0 [shape = 'u32[]', space=smem, size = 0x4, offset = 0x4, fixed_abs, tag = 'smem constant byte address 0x4 - core index']
  #allocation1 [shape = 'u32[144,128]{1,0:T(1,128)}', space=vmem, size = 0x12000, scoped, tag = 'internal scratch']
  %s0 = inlined_call_operand.vmem [shape: bf16[2,9,9,512], index: 0, kind: input, shape index: {}]
  %s1 = inlined_call_operand.vmem [shape: bf16[2,2,512,128], index: 1, kind: input, shape index: {}]
  %s2 = inlined_call_operand.vmem [shape: f32[1,128], index: 2, kind: input, shape index: {}]
  %s3 = inlined_call_operand.vmem [shape: f32[1,128], index: 3, kind: input, shape index: {}]
  %s4 = inlined_call_operand.vmem [shape: bf16[128,128], index: 4, kind: output, shape index: {}]
  %s5 = sld [smem:[#allocation0]]
  $region26: #{vq_discriminator_forward.5} parent=0
    _
  %s7 = ssub.s32 1, %s5
  %s8 = scalar_select 0, %s7, %s5
  // Predicated region
  $region2: #{vq_discriminator_forward.5} parent=0 // pred_check
    _
  $region3: #{vq_discriminator_forward.5} parent=0 // pred_check_branch
    %10 = sbr.rel (0) target = $region5
  $region4: #{vq_discriminator_forward.5} parent=0 // pred_region
    _
  $region5: #{vq_discriminator_forward.5} parent=0 // pred_fallthru
    _
  // Predicated region
  $region6: #{vq_discriminator_forward.5} parent=0 // pred_check
    _
  $region7: #{vq_discriminator_forward.5} parent=0 // pred_check_branch
    %12 = sbr.rel (0) target = $region9
  $region8: #{vq_discriminator_forward.5} parent=0 // pred_region
    _
  $region9: #{vq_discriminator_forward.5} parent=0 // pred_fallthru
    _
  // Predicated region
  $region10: #{vq_discriminator_forward.5} parent=0 // pred_check
    _
  $region11: #{vq_discriminator_forward.5} parent=0 // pred_check_branch
    %14 = sbr.rel (0) target = $region13
  $region12: #{vq_discriminator_forward.5} parent=0 // pred_region
    _
  $region13: #{vq_discriminator_forward.5} parent=0 // pred_fallthru
    _
  // Predicated region
  $region14: #{vq_discriminator_forward.5} parent=0 // pred_check
    _
  $region15: #{vq_discriminator_forward.5} parent=0 // pred_check_branch
    %16 = sbr.rel (0) target = $region17
  $region16: #{vq_discriminator_forward.5} parent=0 // pred_region
    _
  $region17: #{vq_discriminator_forward.5} parent=0 // pred_fallthru
    _
  %v18 = vld [vmem:[%s0] sm:$0xff]
  %v19 = vld [vmem:[%s0 + $0x8] sm:$0xff]
  %v20 = vld [vmem:[%s0 + $0x10] sm:$0x11]
  %v21 = vld [vmem:[%s0 + $0x18] sm:$0x11]
  %v22 = vld [vmem:[%s0 + $0x20] sm:$0xff]
  %v23 = vld [vmem:[%s0 + $0x28] sm:$0xff]
  %v24 = vld [vmem:[%s0 + $0x30] sm:$0x11]
  %v25 = vld [vmem:[%s0 + $0x38] sm:$0x11]
  %v26 = vld [vmem:[%s0 + $0x40] sm:$0xff]
  %v27 = vld [vmem:[%s0 + $0x48] sm:$0xff]
  %v28 = vld [vmem:[%s0 + $0x50] sm:$0x11]
  %v29 = vld [vmem:[%s0 + $0x58] sm:$0x11]
  %v30 = vld [vmem:[%s0 + $0x60] sm:$0xff]
  %v31 = vld [vmem:[%s0 + $0x68] sm:$0xff]
  %v32 = vld [vmem:[%s0 + $0x70] sm:$0x11]
  %v33 = vld [vmem:[%s0 + $0x78] sm:$0x11]
  %v34 = vld [vmem:[%s0 + $0x80] sm:$0xff]
  %v35 = vld [vmem:[%s0 + $0x88] sm:$0xff]
  %v36 = vld [vmem:[%s0 + $0x90] sm:$0x11]
  %v37 = vld [vmem:[%s0 + $0x98] sm:$0x11]
  %v38 = vld [vmem:[%s0 + $0xa0] sm:$0xff]
  %v39 = vld [vmem:[%s0 + $0xa8] sm:$0xff]
  %v40 = vld [vmem:[%s0 + $0xb0] sm:$0x11]
  %v41 = vld [vmem:[%s0 + $0xb8] sm:$0x11]
  %v42 = vld [vmem:[%s0 + $0xc0] sm:$0xff]
  %v43 = vld [vmem:[%s0 + $0xc8] sm:$0xff]
  %v44 = vld [vmem:[%s0 + $0xd0] sm:$0x11]
  %v45 = vld [vmem:[%s0 + $0xd8] sm:$0x11]
  %v46 = vld [vmem:[%s0 + $0xe0] sm:$0xff]
  %v47 = vld [vmem:[%s0 + $0xe8] sm:$0xff]
  %v48 = vld [vmem:[%s0 + $0xf0] sm:$0x11]
  %v49 = vld [vmem:[%s0 + $0xf8] sm:$0x11]
  %v50 = vld [vmem:[%s0 + $0x100] sm:$0xff]
  %v51 = vld [vmem:[%s0 + $0x108] sm:$0xff]
  %v52 = vld [vmem:[%s0 + $0x110] sm:$0x11]
  %v53 = vld [vmem:[%s0 + $0x118] sm:$0x11]
  %v54 = vld [vmem:[%s0 + $0x120] sm:$0xff]
  %v55 = vld [vmem:[%s0 + $0x128] sm:$0xff]
  %v56 = vld [vmem:[%s0 + $0x130] sm:$0x11]
  %v57 = vld [vmem:[%s0 + $0x138] sm:$0x11]
  %v58 = vld [vmem:[%s0 + $0x140] sm:$0xff]
  %v59 = vld [vmem:[%s0 + $0x148] sm:$0xff]
  %v60 = vld [vmem:[%s0 + $0x150] sm:$0x11]
  %v61 = vld [vmem:[%s0 + $0x158] sm:$0x11]
  %v62 = vld [vmem:[%s0 + $0x160] sm:$0xff]
  %v63 = vld [vmem:[%s0 + $0x168] sm:$0xff]
  %v64 = vld [vmem:[%s0 + $0x170] sm:$0x11]
  %v65 = vld [vmem:[%s0 + $0x178] sm:$0x11]
  %v66 = vld [vmem:[%s0 + $0x180] sm:$0xff]
  %v67 = vld [vmem:[%s0 + $0x188] sm:$0xff]
  %v68 = vld [vmem:[%s0 + $0x190] sm:$0x11]
  %v69 = vld [vmem:[%s0 + $0x198] sm:$0x11]
  %v70 = vld [vmem:[%s0 + $0x1a0] sm:$0xff]
  %v71 = vld [vmem:[%s0 + $0x1a8] sm:$0xff]
  %v72 = vld [vmem:[%s0 + $0x1b0] sm:$0x11]
  %v73 = vld [vmem:[%s0 + $0x1b8] sm:$0x11]
  %v74 = vld [vmem:[%s0 + $0x1c0] sm:$0xff]
  %v75 = vld [vmem:[%s0 + $0x1c8] sm:$0xff]
  %v76 = vld [vmem:[%s0 + $0x1d0] sm:$0x11]
  %v77 = vld [vmem:[%s0 + $0x1d8] sm:$0x11]
  %v78 = vld [vmem:[%s0 + $0x1e0] sm:$0xff]
  %v79 = vld [vmem:[%s0 + $0x1e8] sm:$0xff]
  %v80 = vld [vmem:[%s0 + $0x1f0] sm:$0x11]
  %v81 = vld [vmem:[%s0 + $0x1f8] sm:$0x11]
  %v82 = vld [vmem:[%s0 + $0x200] sm:$0xff]
  %v83 = vld [vmem:[%s0 + $0x208] sm:$0xff]
  %v84 = vld [vmem:[%s0 + $0x210] sm:$0x11]
  %v85 = vld [vmem:[%s0 + $0x218] sm:$0x11]
  %v86 = vld [vmem:[%s0 + $0x220] sm:$0xff]
  %v87 = vld [vmem:[%s0 + $0x228] sm:$0xff]
  %v88 = vld [vmem:[%s0 + $0x230] sm:$0x11]
  %v89 = vld [vmem:[%s0 + $0x238] sm:$0x11]
  %v90 = vunpack.c.l.bf16 %v18
  %v91 = vunpack.c.h.bf16 %v18
  %v92 = vunpack.c.l.bf16 %v19
  %v93 = vunpack.c.h.bf16 %v19
  %v94 = vunpack.c.l.bf16 %v20
  %v95 = vunpack.c.h.bf16 %v20
  %v96 = vunpack.c.l.bf16 %v21
  %v97 = vunpack.c.h.bf16 %v21
  %v98 = vunpack.c.l.bf16 %v22
  %v99 = vunpack.c.h.bf16 %v22
  %v100 = vunpack.c.l.bf16 %v23
  %v101 = vunpack.c.h.bf16 %v23
  %v102 = vunpack.c.l.bf16 %v24
  %v103 = vunpack.c.h.bf16 %v24
  %v104 = vunpack.c.l.bf16 %v25
  %v105 = vunpack.c.h.bf16 %v25
  %v106 = vunpack.c.l.bf16 %v26
  %v107 = vunpack.c.h.bf16 %v26
  %v108 = vunpack.c.l.bf16 %v27
  %v109 = vunpack.c.h.bf16 %v27
  %v110 = vunpack.c.l.bf16 %v28
  %v111 = vunpack.c.h.bf16 %v28
  %v112 = vunpack.c.l.bf16 %v29
  %v113 = vunpack.c.h.bf16 %v29
  %v114 = vunpack.c.l.bf16 %v30
  %v115 = vunpack.c.h.bf16 %v30
  %v116 = vunpack.c.l.bf16 %v31
  %v117 = vunpack.c.h.bf16 %v31
  %v118 = vunpack.c.l.bf16 %v32
  %v119 = vunpack.c.h.bf16 %v32
  %v120 = vunpack.c.l.bf16 %v33
  %v121 = vunpack.c.h.bf16 %v33
  %v122 = vunpack.c.l.bf16 %v34
  %v123 = vunpack.c.h.bf16 %v34
  %v124 = vunpack.c.l.bf16 %v35
  %v125 = vunpack.c.h.bf16 %v35
  %v126 = vunpack.c.l.bf16 %v36
  %v127 = vunpack.c.h.bf16 %v36
  %v128 = vunpack.c.l.bf16 %v37
  %v129 = vunpack.c.h.bf16 %v37
  %v130 = vunpack.c.l.bf16 %v38
  %v131 = vunpack.c.h.bf16 %v38
  %v132 = vunpack.c.l.bf16 %v39
  %v133 = vunpack.c.h.bf16 %v39
  %v134 = vunpack.c.l.bf16 %v40
  %v135 = vunpack.c.h.bf16 %v40
  %v136 = vunpack.c.l.bf16 %v41
  %v137 = vunpack.c.h.bf16 %v41
  %v138 = vunpack.c.l.bf16 %v42
  %v139 = vunpack.c.h.bf16 %v42
  %v140 = vunpack.c.l.bf16 %v43
  %v141 = vunpack.c.h.bf16 %v43
  %v142 = vunpack.c.l.bf16 %v44
  %v143 = vunpack.c.h.bf16 %v44
  %v144 = vunpack.c.l.bf16 %v45
  %v145 = vunpack.c.h.bf16 %v45
  %v146 = vunpack.c.l.bf16 %v46
  %v147 = vunpack.c.h.bf16 %v46
  %v148 = vunpack.c.l.bf16 %v47
  %v149 = vunpack.c.h.bf16 %v47
  %v150 = vunpack.c.l.bf16 %v48
  %v151 = vunpack.c.h.bf16 %v48
  %v152 = vunpack.c.l.bf16 %v49
  %v153 = vunpack.c.h.bf16 %v49
  %v154 = vunpack.c.l.bf16 %v50
  %v155 = vunpack.c.h.bf16 %v50
  %v156 = vunpack.c.l.bf16 %v51
  %v157 = vunpack.c.h.bf16 %v51
  %v158 = vunpack.c.l.bf16 %v52
  %v159 = vunpack.c.h.bf16 %v52
  %v160 = vunpack.c.l.bf16 %v53
  %v161 = vunpack.c.h.bf16 %v53
  %v162 = vunpack.c.l.bf16 %v54
  %v163 = vunpack.c.h.bf16 %v54
  %v164 = vunpack.c.l.bf16 %v55
  %v165 = vunpack.c.h.bf16 %v55
  %v166 = vunpack.c.l.bf16 %v56
  %v167 = vunpack.c.h.bf16 %v56
  %v168 = vunpack.c.l.bf16 %v57
  %v169 = vunpack.c.h.bf16 %v57
  %v170 = vunpack.c.l.bf16 %v58
  %v171 = vunpack.c.h.bf16 %v58
  %v172 = vunpack.c.l.bf16 %v59
  %v173 = vunpack.c.h.bf16 %v59
  %v174 = vunpack.c.l.bf16 %v60
  %v175 = vunpack.c.h.bf16 %v60
  %v176 = vunpack.c.l.bf16 %v61
  %v177 = vunpack.c.h.bf16 %v61
  %v178 = vunpack.c.l.bf16 %v62
  %v179 = vunpack.c.h.bf16 %v62
  %v180 = vunpack.c.l.bf16 %v63
  %v181 = vunpack.c.h.bf16 %v63
  %v182 = vunpack.c.l.bf16 %v64
  %v183 = vunpack.c.h.bf16 %v64
  %v184 = vunpack.c.l.bf16 %v65
  %v185 = vunpack.c.h.bf16 %v65
  %v186 = vunpack.c.l.bf16 %v66
  %v187 = vunpack.c.h.bf16 %v66
  %v188 = vunpack.c.l.bf16 %v67
  %v189 = vunpack.c.h.bf16 %v67
  %v190 = vunpack.c.l.bf16 %v68
  %v191 = vunpack.c.h.bf16 %v68
  %v192 = vunpack.c.l.bf16 %v69
  %v193 = vunpack.c.h.bf16 %v69
  %v194 = vunpack.c.l.bf16 %v70
  %v195 = vunpack.c.h.bf16 %v70
  %v196 = vunpack.c.l.bf16 %v71
  %v197 = vunpack.c.h.bf16 %v71
  %v198 = vunpack.c.l.bf16 %v72
  %v199 = vunpack.c.h.bf16 %v72
  %v200 = vunpack.c.l.bf16 %v73
  %v201 = vunpack.c.h.bf16 %v73
  %v202 = vunpack.c.l.bf16 %v74
  %v203 = vunpack.c.h.bf16 %v74
  %v204 = vunpack.c.l.bf16 %v75
  %v205 = vunpack.c.h.bf16 %v75
  %v206 = vunpack.c.l.bf16 %v76
  %v207 = vunpack.c.h.bf16 %v76
  %v208 = vunpack.c.l.bf16 %v77
  %v209 = vunpack.c.h.bf16 %v77
  %v210 = vunpack.c.l.bf16 %v78
  %v211 = vunpack.c.h.bf16 %v78
  %v212 = vunpack.c.l.bf16 %v79
  %v213 = vunpack.c.h.bf16 %v79
  %v214 = vunpack.c.l.bf16 %v80
  %v215 = vunpack.c.h.bf16 %v80
  %v216 = vunpack.c.l.bf16 %v81
  %v217 = vunpack.c.h.bf16 %v81
  %v218 = vunpack.c.l.bf16 %v82
  %v219 = vunpack.c.h.bf16 %v82
  %v220 = vunpack.c.l.bf16 %v83
  %v221 = vunpack.c.h.bf16 %v83
  %v222 = vunpack.c.l.bf16 %v84
  %v223 = vunpack.c.h.bf16 %v84
  %v224 = vunpack.c.l.bf16 %v85
  %v225 = vunpack.c.h.bf16 %v85
  %v226 = vunpack.c.l.bf16 %v86
  %v227 = vunpack.c.h.bf16 %v86
  %v228 = vunpack.c.l.bf16 %v87
  %v229 = vunpack.c.h.bf16 %v87
  %v230 = vunpack.c.l.bf16 %v88
  %v231 = vunpack.c.h.bf16 %v88
  %v232 = vunpack.c.l.bf16 %v89
  %v233 = vunpack.c.h.bf16 %v89
  %v234 = vpack.c.bf16 %v98, %v90
  %v235 = vpack.c.bf16 %v99, %v91
  %v236 = vpack.c.bf16 %v100, %v92
  %v237 = vpack.c.bf16 %v101, %v93
  %v238 = vpack.c.bf16 %v114, %v106
  %v239 = vpack.c.bf16 %v115, %v107
  %v240 = vpack.c.bf16 %v116, %v108
  %v241 = vpack.c.bf16 %v117, %v109
  %v242 = vpack.c.bf16 %v130, %v122
  %v243 = vpack.c.bf16 %v131, %v123
  %v244 = vpack.c.bf16 %v132, %v124
  %v245 = vpack.c.bf16 %v133, %v125
  %v246 = vpack.c.bf16 %v146, %v138
  %v247 = vpack.c.bf16 %v147, %v139
  %v248 = vpack.c.bf16 %v148, %v140
  %v249 = vpack.c.bf16 %v149, %v141
  %v250 = vpack.c.bf16 %v170, %v162
  %v251 = vpack.c.bf16 %v171, %v163
  %v252 = vpack.c.bf16 %v172, %v164
  %v253 = vpack.c.bf16 %v173, %v165
  %v254 = vpack.c.bf16 %v186, %v178
  %v255 = vpack.c.bf16 %v187, %v179
  %v256 = vpack.c.bf16 %v188, %v180
  %v257 = vpack.c.bf16 %v189, %v181
  %v258 = vpack.c.bf16 %v202, %v194
  %v259 = vpack.c.bf16 %v203, %v195
  %v260 = vpack.c.bf16 %v204, %v196
  %v261 = vpack.c.bf16 %v205, %v197
  %v262 = vpack.c.bf16 %v218, %v210
  %v263 = vpack.c.bf16 %v219, %v211
  %v264 = vpack.c.bf16 %v220, %v212
  %v265 = vpack.c.bf16 %v221, %v213
  %v266 = vld [vmem:[%s1] sm:$0xf]
  %v267 = vld [vmem:[%s1 + $0x4] sm:$0xf]
  %v268 = vld [vmem:[%s1 + $0x8] sm:$0xf]
  %v269 = vld [vmem:[%s1 + $0xc] sm:$0xf]
  %v270 = vld [vmem:[%s1 + $0x10] sm:$0xf]
  %v271 = vld [vmem:[%s1 + $0x14] sm:$0xf]
  %v272 = vld [vmem:[%s1 + $0x18] sm:$0xf]
  %v273 = vld [vmem:[%s1 + $0x1c] sm:$0xf]
  %v274 = vld [vmem:[%s1 + $0x20] sm:$0xf]
  %v275 = vld [vmem:[%s1 + $0x24] sm:$0xf]
  %v276 = vld [vmem:[%s1 + $0x28] sm:$0xf]
  %v277 = vld [vmem:[%s1 + $0x2c] sm:$0xf]
  %v278 = vld [vmem:[%s1 + $0x30] sm:$0xf]
  %v279 = vld [vmem:[%s1 + $0x34] sm:$0xf]
  %v280 = vld [vmem:[%s1 + $0x38] sm:$0xf]
  %v281 = vld [vmem:[%s1 + $0x3c] sm:$0xf]
  %v282 = vld [vmem:[%s1 + $0x40] sm:$0xf]
  %v283 = vld [vmem:[%s1 + $0x44] sm:$0xf]
  %v284 = vld [vmem:[%s1 + $0x48] sm:$0xf]
  %v285 = vld [vmem:[%s1 + $0x4c] sm:$0xf]
  %v286 = vld [vmem:[%s1 + $0x50] sm:$0xf]
  %v287 = vld [vmem:[%s1 + $0x54] sm:$0xf]
  %v288 = vld [vmem:[%s1 + $0x58] sm:$0xf]
  %v289 = vld [vmem:[%s1 + $0x5c] sm:$0xf]
  %v290 = vld [vmem:[%s1 + $0x60] sm:$0xf]
  %v291 = vld [vmem:[%s1 + $0x64] sm:$0xf]
  %v292 = vld [vmem:[%s1 + $0x68] sm:$0xf]
  %v293 = vld [vmem:[%s1 + $0x6c] sm:$0xf]
  %v294 = vld [vmem:[%s1 + $0x70] sm:$0xf]
  %v295 = vld [vmem:[%s1 + $0x74] sm:$0xf]
  %v296 = vld [vmem:[%s1 + $0x78] sm:$0xf]
  %v297 = vld [vmem:[%s1 + $0x7c] sm:$0xf]
  %v298 = vld [vmem:[%s1 + $0x80] sm:$0xf]
  %v299 = vld [vmem:[%s1 + $0x84] sm:$0xf]
  %v300 = vld [vmem:[%s1 + $0x88] sm:$0xf]
  %v301 = vld [vmem:[%s1 + $0x8c] sm:$0xf]
  %v302 = vld [vmem:[%s1 + $0x90] sm:$0xf]
  %v303 = vld [vmem:[%s1 + $0x94] sm:$0xf]
  %v304 = vld [vmem:[%s1 + $0x98] sm:$0xf]
  %v305 = vld [vmem:[%s1 + $0x9c] sm:$0xf]
  %v306 = vld [vmem:[%s1 + $0xa0] sm:$0xf]
  %v307 = vld [vmem:[%s1 + $0xa4] sm:$0xf]
  %v308 = vld [vmem:[%s1 + $0xa8] sm:$0xf]
  %v309 = vld [vmem:[%s1 + $0xac] sm:$0xf]
  %v310 = vld [vmem:[%s1 + $0xb0] sm:$0xf]
  %v311 = vld [vmem:[%s1 + $0xb4] sm:$0xf]
  %v312 = vld [vmem:[%s1 + $0xb8] sm:$0xf]
  %v313 = vld [vmem:[%s1 + $0xbc] sm:$0xf]
  %v314 = vld [vmem:[%s1 + $0xc0] sm:$0xf]
  %v315 = vld [vmem:[%s1 + $0xc4] sm:$0xf]
  %v316 = vld [vmem:[%s1 + $0xc8] sm:$0xf]
  %v317 = vld [vmem:[%s1 + $0xcc] sm:$0xf]
  %v318 = vld [vmem:[%s1 + $0xd0] sm:$0xf]
  %v319 = vld [vmem:[%s1 + $0xd4] sm:$0xf]
  %v320 = vld [vmem:[%s1 + $0xd8] sm:$0xf]
  %v321 = vld [vmem:[%s1 + $0xdc] sm:$0xf]
  %v322 = vld [vmem:[%s1 + $0xe0] sm:$0xf]
  %v323 = vld [vmem:[%s1 + $0xe4] sm:$0xf]
  %v324 = vld [vmem:[%s1 + $0xe8] sm:$0xf]
  %v325 = vld [vmem:[%s1 + $0xec] sm:$0xf]
  %v326 = vld [vmem:[%s1 + $0xf0] sm:$0xf]
  %v327 = vld [vmem:[%s1 + $0xf4] sm:$0xf]
  %v328 = vld [vmem:[%s1 + $0xf8] sm:$0xf]
  %v329 = vld [vmem:[%s1 + $0xfc] sm:$0xf]
  %vm458 = vcmask 1046528
  %v459 = vrot.slane %v90, 1
  %v460 = vrot.slane %v94, 1
  %v461 = vsel %vm458, %v459, %v460
  %v462 = vrot.slane %v91, 1
  %v463 = vrot.slane %v95, 1
  %v464 = vsel %vm458, %v462, %v463
  %v465 = vrot.slane %v92, 1
  %v466 = vrot.slane %v96, 1
  %v467 = vsel %vm458, %v465, %v466
  %v468 = vrot.slane %v93, 1
  %v469 = vrot.slane %v97, 1
  %v470 = vsel %vm458, %v468, %v469
  %v471 = vrot.slane %v98, 1
  %v472 = vrot.slane %v102, 1
  %v473 = vsel %vm458, %v471, %v472
  %v474 = vrot.slane %v99, 1
  %v475 = vrot.slane %v103, 1
  %v476 = vsel %vm458, %v474, %v475
  %v477 = vrot.slane %v100, 1
  %v478 = vrot.slane %v104, 1
  %v479 = vsel %vm458, %v477, %v478
  %v480 = vrot.slane %v101, 1
  %v481 = vrot.slane %v105, 1
  %v482 = vsel %vm458, %v480, %v481
  %v483 = vrot.slane %v106, 1
  %v484 = vrot.slane %v110, 1
  %v485 = vsel %vm458, %v483, %v484
  %v486 = vrot.slane %v107, 1
  %v487 = vrot.slane %v111, 1
  %v488 = vsel %vm458, %v486, %v487
  %v489 = vrot.slane %v108, 1
  %v490 = vrot.slane %v112, 1
  %v491 = vsel %vm458, %v489, %v490
  %v492 = vrot.slane %v109, 1
  %v493 = vrot.slane %v113, 1
  %v494 = vsel %vm458, %v492, %v493
  %v495 = vrot.slane %v114, 1
  %v496 = vrot.slane %v118, 1
  %v497 = vsel %vm458, %v495, %v496
  %v498 = vrot.slane %v115, 1
  %v499 = vrot.slane %v119, 1
  %v500 = vsel %vm458, %v498, %v499
  %v501 = vrot.slane %v116, 1
  %v502 = vrot.slane %v120, 1
  %v503 = vsel %vm458, %v501, %v502
  %v504 = vrot.slane %v117, 1
  %v505 = vrot.slane %v121, 1
  %v506 = vsel %vm458, %v504, %v505
  %v507 = vrot.slane %v122, 1
  %v508 = vrot.slane %v126, 1
  %v509 = vsel %vm458, %v507, %v508
  %v510 = vrot.slane %v123, 1
  %v511 = vrot.slane %v127, 1
  %v512 = vsel %vm458, %v510, %v511
  %v513 = vrot.slane %v124, 1
  %v514 = vrot.slane %v128, 1
  %v515 = vsel %vm458, %v513, %v514
  %v516 = vrot.slane %v125, 1
  %v517 = vrot.slane %v129, 1
  %v518 = vsel %vm458, %v516, %v517
  %v519 = vrot.slane %v130, 1
  %v520 = vrot.slane %v134, 1
  %v521 = vsel %vm458, %v519, %v520
  %v522 = vrot.slane %v131, 1
  %v523 = vrot.slane %v135, 1
  %v524 = vsel %vm458, %v522, %v523
  %v525 = vrot.slane %v132, 1
  %v526 = vrot.slane %v136, 1
  %v527 = vsel %vm458, %v525, %v526
  %v528 = vrot.slane %v133, 1
  %v529 = vrot.slane %v137, 1
  %v530 = vsel %vm458, %v528, %v529
  %v531 = vrot.slane %v138, 1
  %v532 = vrot.slane %v142, 1
  %v533 = vsel %vm458, %v531, %v532
  %v534 = vrot.slane %v139, 1
  %v535 = vrot.slane %v143, 1
  %v536 = vsel %vm458, %v534, %v535
  %v537 = vrot.slane %v140, 1
  %v538 = vrot.slane %v144, 1
  %v539 = vsel %vm458, %v537, %v538
  %v540 = vrot.slane %v141, 1
  %v541 = vrot.slane %v145, 1
  %v542 = vsel %vm458, %v540, %v541
  %v543 = vrot.slane %v146, 1
  %v544 = vrot.slane %v150, 1
  %v545 = vsel %vm458, %v543, %v544
  %v546 = vrot.slane %v147, 1
  %v547 = vrot.slane %v151, 1
  %v548 = vsel %vm458, %v546, %v547
  %v549 = vrot.slane %v148, 1
  %v550 = vrot.slane %v152, 1
  %v551 = vsel %vm458, %v549, %v550
  %v552 = vrot.slane %v149, 1
  %v553 = vrot.slane %v153, 1
  %v554 = vsel %vm458, %v552, %v553
  %v555 = vrot.slane %v162, 1
  %v556 = vrot.slane %v166, 1
  %v557 = vsel %vm458, %v555, %v556
  %v558 = vrot.slane %v163, 1
  %v559 = vrot.slane %v167, 1
  %v560 = vsel %vm458, %v558, %v559
  %v561 = vrot.slane %v164, 1
  %v562 = vrot.slane %v168, 1
  %v563 = vsel %vm458, %v561, %v562
  %v564 = vrot.slane %v165, 1
  %v565 = vrot.slane %v169, 1
  %v566 = vsel %vm458, %v564, %v565
  %v567 = vrot.slane %v170, 1
  %v568 = vrot.slane %v174, 1
  %v569 = vsel %vm458, %v567, %v568
  %v570 = vrot.slane %v171, 1
  %v571 = vrot.slane %v175, 1
  %v572 = vsel %vm458, %v570, %v571
  %v573 = vrot.slane %v172, 1
  %v574 = vrot.slane %v176, 1
  %v575 = vsel %vm458, %v573, %v574
  %v576 = vrot.slane %v173, 1
  %v577 = vrot.slane %v177, 1
  %v578 = vsel %vm458, %v576, %v577
  %v579 = vrot.slane %v178, 1
  %v580 = vrot.slane %v182, 1
  %v581 = vsel %vm458, %v579, %v580
  %v582 = vrot.slane %v179, 1
  %v583 = vrot.slane %v183, 1
  %v584 = vsel %vm458, %v582, %v583
  %v585 = vrot.slane %v180, 1
  %v586 = vrot.slane %v184, 1
  %v587 = vsel %vm458, %v585, %v586
  %v588 = vrot.slane %v181, 1
  %v589 = vrot.slane %v185, 1
  %v590 = vsel %vm458, %v588, %v589
  %v591 = vrot.slane %v186, 1
  %v592 = vrot.slane %v190, 1
  %v593 = vsel %vm458, %v591, %v592
  %v594 = vrot.slane %v187, 1
  %v595 = vrot.slane %v191, 1
  %v596 = vsel %vm458, %v594, %v595
  %v597 = vrot.slane %v188, 1
  %v598 = vrot.slane %v192, 1
  %v599 = vsel %vm458, %v597, %v598
  %v600 = vrot.slane %v189, 1
  %v601 = vrot.slane %v193, 1
  %v602 = vsel %vm458, %v600, %v601
  %v603 = vrot.slane %v194, 1
  %v604 = vrot.slane %v198, 1
  %v605 = vsel %vm458, %v603, %v604
  %v606 = vrot.slane %v195, 1
  %v607 = vrot.slane %v199, 1
  %v608 = vsel %vm458, %v606, %v607
  %v609 = vrot.slane %v196, 1
  %v610 = vrot.slane %v200, 1
  %v611 = vsel %vm458, %v609, %v610
  %v612 = vrot.slane %v197, 1
  %v613 = vrot.slane %v201, 1
  %v614 = vsel %vm458, %v612, %v613
  %v615 = vrot.slane %v202, 1
  %v616 = vrot.slane %v206, 1
  %v617 = vsel %vm458, %v615, %v616
  %v618 = vrot.slane %v203, 1
  %v619 = vrot.slane %v207, 1
  %v620 = vsel %vm458, %v618, %v619
  %v621 = vrot.slane %v204, 1
  %v622 = vrot.slane %v208, 1
  %v623 = vsel %vm458, %v621, %v622
  %v624 = vrot.slane %v205, 1
  %v625 = vrot.slane %v209, 1
  %v626 = vsel %vm458, %v624, %v625
  %v627 = vrot.slane %v210, 1
  %v628 = vrot.slane %v214, 1
  %v629 = vsel %vm458, %v627, %v628
  %v630 = vrot.slane %v211, 1
  %v631 = vrot.slane %v215, 1
  %v632 = vsel %vm458, %v630, %v631
  %v633 = vrot.slane %v212, 1
  %v634 = vrot.slane %v216, 1
  %v635 = vsel %vm458, %v633, %v634
  %v636 = vrot.slane %v213, 1
  %v637 = vrot.slane %v217, 1
  %v638 = vsel %vm458, %v636, %v637
  %v639 = vrot.slane %v218, 1
  %v640 = vrot.slane %v222, 1
  %v641 = vsel %vm458, %v639, %v640
  %v642 = vrot.slane %v219, 1
  %v643 = vrot.slane %v223, 1
  %v644 = vsel %vm458, %v642, %v643
  %v645 = vrot.slane %v220, 1
  %v646 = vrot.slane %v224, 1
  %v647 = vsel %vm458, %v645, %v646
  %v648 = vrot.slane %v221, 1
  %v649 = vrot.slane %v225, 1
  %v650 = vsel %vm458, %v648, %v649
  %v715 = vpack.c.bf16 %v473, %v461
  %v716 = vpack.c.bf16 %v476, %v464
  %v717 = vpack.c.bf16 %v479, %v467
  %v718 = vpack.c.bf16 %v482, %v470
  %v719 = vpack.c.bf16 %v497, %v485
  %v720 = vpack.c.bf16 %v500, %v488
  %v721 = vpack.c.bf16 %v503, %v491
  %v722 = vpack.c.bf16 %v506, %v494
  %v723 = vpack.c.bf16 %v521, %v509
  %v724 = vpack.c.bf16 %v524, %v512
  %v725 = vpack.c.bf16 %v527, %v515
  %v726 = vpack.c.bf16 %v530, %v518
  %v727 = vpack.c.bf16 %v545, %v533
  %v728 = vpack.c.bf16 %v548, %v536
  %v729 = vpack.c.bf16 %v551, %v539
  %v730 = vpack.c.bf16 %v554, %v542
  %v731 = vpack.c.bf16 %v569, %v557
  %v732 = vpack.c.bf16 %v572, %v560
  %v733 = vpack.c.bf16 %v575, %v563
  %v734 = vpack.c.bf16 %v578, %v566
  %v735 = vpack.c.bf16 %v593, %v581
  %v736 = vpack.c.bf16 %v596, %v584
  %v737 = vpack.c.bf16 %v599, %v587
  %v738 = vpack.c.bf16 %v602, %v590
  %v739 = vpack.c.bf16 %v617, %v605
  %v740 = vpack.c.bf16 %v620, %v608
  %v741 = vpack.c.bf16 %v623, %v611
  %v742 = vpack.c.bf16 %v626, %v614
  %v743 = vpack.c.bf16 %v641, %v629
  %v744 = vpack.c.bf16 %v644, %v632
  %v745 = vpack.c.bf16 %v647, %v635
  %v746 = vpack.c.bf16 %v650, %v638
  %s747 = scalar_lea.vmem %s1, 256
  %v748 = vld [vmem:[%s747] sm:$0xf]
  %v749 = vld [vmem:[%s747 + $0x4] sm:$0xf]
  %v750 = vld [vmem:[%s747 + $0x8] sm:$0xf]
  %v751 = vld [vmem:[%s747 + $0xc] sm:$0xf]
  %v752 = vld [vmem:[%s747 + $0x10] sm:$0xf]
  %v753 = vld [vmem:[%s747 + $0x14] sm:$0xf]
  %v754 = vld [vmem:[%s747 + $0x18] sm:$0xf]
  %v755 = vld [vmem:[%s747 + $0x1c] sm:$0xf]
  %v756 = vld [vmem:[%s747 + $0x20] sm:$0xf]
  %v757 = vld [vmem:[%s747 + $0x24] sm:$0xf]
  %v758 = vld [vmem:[%s747 + $0x28] sm:$0xf]
  %v759 = vld [vmem:[%s747 + $0x2c] sm:$0xf]
  %v760 = vld [vmem:[%s747 + $0x30] sm:$0xf]
  %v761 = vld [vmem:[%s747 + $0x34] sm:$0xf]
  %v762 = vld [vmem:[%s747 + $0x38] sm:$0xf]
  %v763 = vld [vmem:[%s747 + $0x3c] sm:$0xf]
  %v764 = vld [vmem:[%s747 + $0x40] sm:$0xf]
  %v765 = vld [vmem:[%s747 + $0x44] sm:$0xf]
  %v766 = vld [vmem:[%s747 + $0x48] sm:$0xf]
  %v767 = vld [vmem:[%s747 + $0x4c] sm:$0xf]
  %v768 = vld [vmem:[%s747 + $0x50] sm:$0xf]
  %v769 = vld [vmem:[%s747 + $0x54] sm:$0xf]
  %v770 = vld [vmem:[%s747 + $0x58] sm:$0xf]
  %v771 = vld [vmem:[%s747 + $0x5c] sm:$0xf]
  %v772 = vld [vmem:[%s747 + $0x60] sm:$0xf]
  %v773 = vld [vmem:[%s747 + $0x64] sm:$0xf]
  %v774 = vld [vmem:[%s747 + $0x68] sm:$0xf]
  %v775 = vld [vmem:[%s747 + $0x6c] sm:$0xf]
  %v776 = vld [vmem:[%s747 + $0x70] sm:$0xf]
  %v777 = vld [vmem:[%s747 + $0x74] sm:$0xf]
  %v778 = vld [vmem:[%s747 + $0x78] sm:$0xf]
  %v779 = vld [vmem:[%s747 + $0x7c] sm:$0xf]
  %v780 = vld [vmem:[%s747 + $0x80] sm:$0xf]
  %v781 = vld [vmem:[%s747 + $0x84] sm:$0xf]
  %v782 = vld [vmem:[%s747 + $0x88] sm:$0xf]
  %v783 = vld [vmem:[%s747 + $0x8c] sm:$0xf]
  %v784 = vld [vmem:[%s747 + $0x90] sm:$0xf]
  %v785 = vld [vmem:[%s747 + $0x94] sm:$0xf]
  %v786 = vld [vmem:[%s747 + $0x98] sm:$0xf]
  %v787 = vld [vmem:[%s747 + $0x9c] sm:$0xf]
  %v788 = vld [vmem:[%s747 + $0xa0] sm:$0xf]
  %v789 = vld [vmem:[%s747 + $0xa4] sm:$0xf]
  %v790 = vld [vmem:[%s747 + $0xa8] sm:$0xf]
  %v791 = vld [vmem:[%s747 + $0xac] sm:$0xf]
  %v792 = vld [vmem:[%s747 + $0xb0] sm:$0xf]
  %v793 = vld [vmem:[%s747 + $0xb4] sm:$0xf]
  %v794 = vld [vmem:[%s747 + $0xb8] sm:$0xf]
  %v795 = vld [vmem:[%s747 + $0xbc] sm:$0xf]
  %v796 = vld [vmem:[%s747 + $0xc0] sm:$0xf]
  %v797 = vld [vmem:[%s747 + $0xc4] sm:$0xf]
  %v798 = vld [vmem:[%s747 + $0xc8] sm:$0xf]
  %v799 = vld [vmem:[%s747 + $0xcc] sm:$0xf]
  %v800 = vld [vmem:[%s747 + $0xd0] sm:$0xf]
  %v801 = vld [vmem:[%s747 + $0xd4] sm:$0xf]
  %v802 = vld [vmem:[%s747 + $0xd8] sm:$0xf]
  %v803 = vld [vmem:[%s747 + $0xdc] sm:$0xf]
  %v804 = vld [vmem:[%s747 + $0xe0] sm:$0xf]
  %v805 = vld [vmem:[%s747 + $0xe4] sm:$0xf]
  %v806 = vld [vmem:[%s747 + $0xe8] sm:$0xf]
  %v807 = vld [vmem:[%s747 + $0xec] sm:$0xf]
  %v808 = vld [vmem:[%s747 + $0xf0] sm:$0xf]
  %v809 = vld [vmem:[%s747 + $0xf4] sm:$0xf]
  %v810 = vld [vmem:[%s747 + $0xf8] sm:$0xf]
  %v811 = vld [vmem:[%s747 + $0xfc] sm:$0xf]
  %v876 = vunpack.c.l.b16 %v748
  %v877 = vunpack.c.l.b16 %v749
  %v878 = vunpack.c.l.b16 %v750
  %v879 = vunpack.c.l.b16 %v751
  %v880 = vunpack.c.l.b16 %v752
  %v881 = vunpack.c.l.b16 %v753
  %v882 = vunpack.c.l.b16 %v754
  %v883 = vunpack.c.l.b16 %v755
  %v884 = vunpack.c.l.b16 %v756
  %v885 = vunpack.c.l.b16 %v757
  %v886 = vunpack.c.l.b16 %v758
  %v887 = vunpack.c.l.b16 %v759
  %v888 = vunpack.c.l.b16 %v760
  %v889 = vunpack.c.l.b16 %v761
  %v890 = vunpack.c.l.b16 %v762
  %v891 = vunpack.c.l.b16 %v763
  %v892 = vunpack.c.l.b16 %v764
  %v893 = vunpack.c.l.b16 %v765
  %v894 = vunpack.c.l.b16 %v766
  %v895 = vunpack.c.l.b16 %v767
  %v896 = vunpack.c.l.b16 %v768
  %v897 = vunpack.c.l.b16 %v769
  %v898 = vunpack.c.l.b16 %v770
  %v899 = vunpack.c.l.b16 %v771
  %v900 = vunpack.c.l.b16 %v772
  %v901 = vunpack.c.l.b16 %v773
  %v902 = vunpack.c.l.b16 %v774
  %v903 = vunpack.c.l.b16 %v775
  %v904 = vunpack.c.l.b16 %v776
  %v905 = vunpack.c.l.b16 %v777
  %v906 = vunpack.c.l.b16 %v778
  %v907 = vunpack.c.l.b16 %v779
  %v908 = vunpack.c.l.b16 %v780
  %v909 = vunpack.c.l.b16 %v781
  %v910 = vunpack.c.l.b16 %v782
  %v911 = vunpack.c.l.b16 %v783
  %v912 = vunpack.c.l.b16 %v784
  %v913 = vunpack.c.l.b16 %v785
  %v914 = vunpack.c.l.b16 %v786
  %v915 = vunpack.c.l.b16 %v787
  %v916 = vunpack.c.l.b16 %v788
  %v917 = vunpack.c.l.b16 %v789
  %v918 = vunpack.c.l.b16 %v790
  %v919 = vunpack.c.l.b16 %v791
  %v920 = vunpack.c.l.b16 %v792
  %v921 = vunpack.c.l.b16 %v793
  %v922 = vunpack.c.l.b16 %v794
  %v923 = vunpack.c.l.b16 %v795
  %v924 = vunpack.c.l.b16 %v796
  %v925 = vunpack.c.l.b16 %v797
  %v926 = vunpack.c.l.b16 %v798
  %v927 = vunpack.c.l.b16 %v799
  %v928 = vunpack.c.l.b16 %v800
  %v929 = vunpack.c.l.b16 %v801
  %v930 = vunpack.c.l.b16 %v802
  %v931 = vunpack.c.l.b16 %v803
  %v932 = vunpack.c.l.b16 %v804
  %v933 = vunpack.c.l.b16 %v805
  %v934 = vunpack.c.l.b16 %v806
  %v935 = vunpack.c.l.b16 %v807
  %v936 = vunpack.c.l.b16 %v808
  %v937 = vunpack.c.l.b16 %v809
  %v938 = vunpack.c.l.b16 %v810
  %v939 = vunpack.c.l.b16 %v811
  %v940 = vpack.c.b16 %v877, %v876
  %v941 = vpack.c.b16 %v879, %v878
  %v942 = vpack.c.b16 %v881, %v880
  %v943 = vpack.c.b16 %v883, %v882
  %v944 = vpack.c.b16 %v885, %v884
  %v945 = vpack.c.b16 %v887, %v886
  %v946 = vpack.c.b16 %v889, %v888
  %v947 = vpack.c.b16 %v891, %v890
  %v948 = vpack.c.b16 %v893, %v892
  %v949 = vpack.c.b16 %v895, %v894
  %v950 = vpack.c.b16 %v897, %v896
  %v951 = vpack.c.b16 %v899, %v898
  %v952 = vpack.c.b16 %v901, %v900
  %v953 = vpack.c.b16 %v903, %v902
  %v954 = vpack.c.b16 %v905, %v904
  %v955 = vpack.c.b16 %v907, %v906
  %v956 = vpack.c.b16 %v909, %v908
  %v957 = vpack.c.b16 %v911, %v910
  %v958 = vpack.c.b16 %v913, %v912
  %v959 = vpack.c.b16 %v915, %v914
  %v960 = vpack.c.b16 %v917, %v916
  %v961 = vpack.c.b16 %v919, %v918
  %v962 = vpack.c.b16 %v921, %v920
  %v963 = vpack.c.b16 %v923, %v922
  %v964 = vpack.c.b16 %v925, %v924
  %v965 = vpack.c.b16 %v927, %v926
  %v966 = vpack.c.b16 %v929, %v928
  %v967 = vpack.c.b16 %v931, %v930
  %v968 = vpack.c.b16 %v933, %v932
  %v969 = vpack.c.b16 %v935, %v934
  %v970 = vpack.c.b16 %v937, %v936
  %v971 = vpack.c.b16 %v939, %v938
  %1004 = vmatprep.subr.bf16.mxu0 0
  %1005 = vmatpush1.bf16.msra.mxu0 %v940
  %1006 = vmatprep.subr.bf16.mxu0 0
  %1007 = vmatpush1.bf16.msra.mxu0 %v941
  %1008 = vmatprep.subr.bf16.mxu0 0
  %1009 = vmatpush1.bf16.msra.mxu0 %v942
  %1010 = vmatprep.subr.bf16.mxu0 0
  %1011 = vmatpush1.bf16.msra.mxu0 %v943
  %1012 = vmatprep.subr.bf16.mxu0 0
  %1013 = vmatpush1.bf16.msra.mxu0 %v944
  %1014 = vmatprep.subr.bf16.mxu0 0
  %1015 = vmatpush1.bf16.msra.mxu0 %v945
  %1016 = vmatprep.subr.bf16.mxu0 0
  %1017 = vmatpush1.bf16.msra.mxu0 %v946
  %1018 = vmatprep.subr.bf16.mxu0 0
  %1019 = vmatpush1.bf16.msra.mxu0 %v947
  %1020 = vmatprep.subr.bf16.mxu0 0
  %1021 = vmatpush1.bf16.msra.mxu0 %v948
  %1022 = vmatprep.subr.bf16.mxu0 0
  %1023 = vmatpush1.bf16.msra.mxu0 %v949
  %1024 = vmatprep.subr.bf16.mxu0 0
  %1025 = vmatpush1.bf16.msra.mxu0 %v950
  %1026 = vmatprep.subr.bf16.mxu0 0
  %1027 = vmatpush1.bf16.msra.mxu0 %v951
  %1028 = vmatprep.subr.bf16.mxu0 0
  %1029 = vmatpush1.bf16.msra.mxu0 %v952
  %1030 = vmatprep.subr.bf16.mxu0 0
  %1031 = vmatpush1.bf16.msra.mxu0 %v953
  %1032 = vmatprep.subr.bf16.mxu0 0
  %1033 = vmatpush1.bf16.msra.mxu0 %v954
  %1034 = vmatprep.subr.bf16.mxu0 0
  %1035 = vmatpush1.bf16.msra.mxu0 %v955
  %1036 = vmatprep.mubr.bf16.mxu0 %v716
  %1037 = vmatmul.mubr.bf16.gmra.mrb[0].mxu0 %v715
  %v1038 = vpop.f32.mrb[0].mxu0
  %v1039 = vadd.f32 0.0, %v1038
  %v1040 = vpop.f32.mrb[0].mxu0
  %v1041 = vpop.f32.mrb[0].mxu0
  %v1042 = vadd.f32 0.0, %v1041
  %v1043 = vpop.f32.mrb[0].mxu0
  %1044 = vmatprep.mubr.bf16.mxu0 %v720
  %1045 = vmatmul.mubr.bf16.gmra.mrb[0].mxu0 %v719
  %v1046 = vpop.f32.mrb[0].mxu0
  %v1047 = vadd.f32 0.0, %v1046
  %v1048 = vpop.f32.mrb[0].mxu0
  %v1049 = vpop.f32.mrb[0].mxu0
  %v1050 = vadd.f32 0.0, %v1049
  %v1051 = vpop.f32.mrb[0].mxu0
  %1052 = vmatprep.mubr.bf16.mxu0 %v724
  %1053 = vmatmul.mubr.bf16.gmra.mrb[0].mxu0 %v723
  %v1054 = vpop.f32.mrb[0].mxu0
  %v1055 = vadd.f32 0.0, %v1054
  %v1056 = vpop.f32.mrb[0].mxu0
  %v1057 = vpop.f32.mrb[0].mxu0
  %v1058 = vadd.f32 0.0, %v1057
  %v1059 = vpop.f32.mrb[0].mxu0
  %1060 = vmatprep.mubr.bf16.mxu0 %v728
  %1061 = vmatmul.mubr.bf16.gmra.mrb[0].mxu0 %v727
  %v1062 = vpop.f32.mrb[0].mxu0
  %v1063 = vadd.f32 0.0, %v1062
  %v1064 = vpop.f32.mrb[0].mxu0
  %v1065 = vpop.f32.mrb[0].mxu0
  %v1066 = vadd.f32 0.0, %v1065
  %v1067 = vpop.f32.mrb[0].mxu0
  %1068 = vmatprep.mubr.bf16.mxu0 %v732
  %1069 = vmatmul.mubr.bf16.gmra.mrb[0].mxu0 %v731
  %v1070 = vpop.f32.mrb[0].mxu0
  %v1071 = vadd.f32 0.0, %v1070
  %v1072 = vpop.f32.mrb[0].mxu0
  %v1073 = vpop.f32.mrb[0].mxu0
  %v1074 = vadd.f32 0.0, %v1073
  %v1075 = vpop.f32.mrb[0].mxu0
  %1076 = vmatprep.mubr.bf16.mxu0 %v736
  %1077 = vmatmul.mubr.bf16.gmra.mrb[0].mxu0 %v735
  %v1078 = vpop.f32.mrb[0].mxu0
  %v1079 = vadd.f32 0.0, %v1078
  %v1080 = vpop.f32.mrb[0].mxu0
  %v1081 = vpop.f32.mrb[0].mxu0
  %v1082 = vadd.f32 0.0, %v1081
  %v1083 = vpop.f32.mrb[0].mxu0
  %1084 = vmatprep.mubr.bf16.mxu0 %v740
  %1085 = vmatmul.mubr.bf16.gmra.mrb[0].mxu0 %v739
  %v1086 = vpop.f32.mrb[0].mxu0
  %v1087 = vadd.f32 0.0, %v1086
  %v1088 = vpop.f32.mrb[0].mxu0
  %v1089 = vpop.f32.mrb[0].mxu0
  %v1090 = vadd.f32 0.0, %v1089
  %v1091 = vpop.f32.mrb[0].mxu0
  %1092 = vmatprep.mubr.bf16.mxu0 %v744
  %1093 = vmatmul.mubr.bf16.gmra.mrb[0].mxu0 %v743
  %v1094 = vpop.f32.mrb[0].mxu0
  %v1095 = vadd.f32 0.0, %v1094
  %v1096 = vpop.f32.mrb[0].mxu0
  %v1097 = vpop.f32.mrb[0].mxu0
  %v1098 = vadd.f32 0.0, %v1097
  %v1099 = vpop.f32.mrb[0].mxu0
  %1100 = vdwg.mxu0
  %1101 = vmatprep.subr.bf16.mxu0 0
  %1102 = vmatpush1.bf16.msra.mxu0 %v956
  %1103 = vmatprep.subr.bf16.mxu0 0
  %1104 = vmatpush1.bf16.msra.mxu0 %v957
  %1105 = vmatprep.subr.bf16.mxu0 0
  %1106 = vmatpush1.bf16.msra.mxu0 %v958
  %1107 = vmatprep.subr.bf16.mxu0 0
  %1108 = vmatpush1.bf16.msra.mxu0 %v959
  %1109 = vmatprep.subr.bf16.mxu0 0
  %1110 = vmatpush1.bf16.msra.mxu0 %v960
  %1111 = vmatprep.subr.bf16.mxu0 0
  %1112 = vmatpush1.bf16.msra.mxu0 %v961
  %1113 = vmatprep.subr.bf16.mxu0 0
  %1114 = vmatpush1.bf16.msra.mxu0 %v962
  %1115 = vmatprep.subr.bf16.mxu0 0
  %1116 = vmatpush1.bf16.msra.mxu0 %v963
  %1117 = vmatprep.subr.bf16.mxu0 0
  %1118 = vmatpush1.bf16.msra.mxu0 %v964
  %1119 = vmatprep.subr.bf16.mxu0 0
  %1120 = vmatpush1.bf16.msra.mxu0 %v965
  %1121 = vmatprep.subr.bf16.mxu0 0
  %1122 = vmatpush1.bf16.msra.mxu0 %v966
  %1123 = vmatprep.subr.bf16.mxu0 0
  %1124 = vmatpush1.bf16.msra.mxu0 %v967
  %1125 = vmatprep.subr.bf16.mxu0 0
  %1126 = vmatpush1.bf16.msra.mxu0 %v968
  %1127 = vmatprep.subr.bf16.mxu0 0
  %1128 = vmatpush1.bf16.msra.mxu0 %v969
  %1129 = vmatprep.subr.bf16.mxu0 0
  %1130 = vmatpush1.bf16.msra.mxu0 %v970
  %1131 = vmatprep.subr.bf16.mxu0 0
  %1132 = vmatpush1.bf16.msra.mxu0 %v971
  %1133 = vmatprep.mubr.bf16.mxu0 %v718
  %1134 = vmatmul.mubr.bf16.gmra.mrb[0].mxu0 %v717
  %v1135 = vpop.f32.mrb[0].mxu0
  %v1136 = vadd.f32 %v1039, %v1135
  %v1137 = vpop.f32.mrb[0].mxu0
  %v1138 = vpop.f32.mrb[0].mxu0
  %v1139 = vadd.f32 %v1042, %v1138
  %v1140 = vpop.f32.mrb[0].mxu0
  %1141 = vmatprep.mubr.bf16.mxu0 %v722
  %1142 = vmatmul.mubr.bf16.gmra.mrb[0].mxu0 %v721
  %v1143 = vpop.f32.mrb[0].mxu0
  %v1144 = vadd.f32 %v1047, %v1143
  %v1145 = vpop.f32.mrb[0].mxu0
  %v1146 = vpop.f32.mrb[0].mxu0
  %v1147 = vadd.f32 %v1050, %v1146
  %v1148 = vpop.f32.mrb[0].mxu0
  %1149 = vmatprep.mubr.bf16.mxu0 %v726
  %1150 = vmatmul.mubr.bf16.gmra.mrb[0].mxu0 %v725
  %v1151 = vpop.f32.mrb[0].mxu0
  %v1152 = vadd.f32 %v1055, %v1151
  %v1153 = vpop.f32.mrb[0].mxu0
  %v1154 = vpop.f32.mrb[0].mxu0
  %v1155 = vadd.f32 %v1058, %v1154
  %v1156 = vpop.f32.mrb[0].mxu0
  %1157 = vmatprep.mubr.bf16.mxu0 %v730
  %1158 = vmatmul.mubr.bf16.gmra.mrb[0].mxu0 %v729
  %v1159 = vpop.f32.mrb[0].mxu0
  %v1160 = vadd.f32 %v1063, %v1159
  %v1161 = vpop.f32.mrb[0].mxu0
  %v1162 = vpop.f32.mrb[0].mxu0
  %v1163 = vadd.f32 %v1066, %v1162
  %v1164 = vpop.f32.mrb[0].mxu0
  %1165 = vmatprep.mubr.bf16.mxu0 %v734
  %1166 = vmatmul.mubr.bf16.gmra.mrb[0].mxu0 %v733
  %v1167 = vpop.f32.mrb[0].mxu0
  %v1168 = vadd.f32 %v1071, %v1167
  %v1169 = vpop.f32.mrb[0].mxu0
  %v1170 = vpop.f32.mrb[0].mxu0
  %v1171 = vadd.f32 %v1074, %v1170
  %v1172 = vpop.f32.mrb[0].mxu0
  %1173 = vmatprep.mubr.bf16.mxu0 %v738
  %1174 = vmatmul.mubr.bf16.gmra.mrb[0].mxu0 %v737
  %v1175 = vpop.f32.mrb[0].mxu0
  %v1176 = vadd.f32 %v1079, %v1175
  %v1177 = vpop.f32.mrb[0].mxu0
  %v1178 = vpop.f32.mrb[0].mxu0
  %v1179 = vadd.f32 %v1082, %v1178
  %v1180 = vpop.f32.mrb[0].mxu0
  %1181 = vmatprep.mubr.bf16.mxu0 %v742
  %1182 = vmatmul.mubr.bf16.gmra.mrb[0].mxu0 %v741
  %v1183 = vpop.f32.mrb[0].mxu0
  %v1184 = vadd.f32 %v1087, %v1183
  %v1185 = vpop.f32.mrb[0].mxu0
  %v1186 = vpop.f32.mrb[0].mxu0
  %v1187 = vadd.f32 %v1090, %v1186
  %v1188 = vpop.f32.mrb[0].mxu0
  %1189 = vmatprep.mubr.bf16.mxu0 %v746
  %1190 = vmatmul.mubr.bf16.gmra.mrb[0].mxu0 %v745
  %v1191 = vpop.f32.mrb[0].mxu0
  %v1192 = vadd.f32 %v1095, %v1191
  %v1193 = vpop.f32.mrb[0].mxu0
  %v1194 = vpop.f32.mrb[0].mxu0
  %v1195 = vadd.f32 %v1098, %v1194
  %v1196 = vpop.f32.mrb[0].mxu0
  %1197 = vdwg.mxu0
  %v1262 = vunpack.c.l.b16 %v266
  %v1263 = vunpack.c.l.b16 %v267
  %v1264 = vunpack.c.l.b16 %v268
  %v1265 = vunpack.c.l.b16 %v269
  %v1266 = vunpack.c.l.b16 %v270
  %v1267 = vunpack.c.l.b16 %v271
  %v1268 = vunpack.c.l.b16 %v272
  %v1269 = vunpack.c.l.b16 %v273
  %v1270 = vunpack.c.l.b16 %v274
  %v1271 = vunpack.c.l.b16 %v275
  %v1272 = vunpack.c.l.b16 %v276
  %v1273 = vunpack.c.l.b16 %v277
  %v1274 = vunpack.c.l.b16 %v278
  %v1275 = vunpack.c.l.b16 %v279
  %v1276 = vunpack.c.l.b16 %v280
  %v1277 = vunpack.c.l.b16 %v281
  %v1278 = vunpack.c.l.b16 %v282
  %v1279 = vunpack.c.l.b16 %v283
  %v1280 = vunpack.c.l.b16 %v284
  %v1281 = vunpack.c.l.b16 %v285
  %v1282 = vunpack.c.l.b16 %v286
  %v1283 = vunpack.c.l.b16 %v287
  %v1284 = vunpack.c.l.b16 %v288
  %v1285 = vunpack.c.l.b16 %v289
  %v1286 = vunpack.c.l.b16 %v290
  %v1287 = vunpack.c.l.b16 %v291
  %v1288 = vunpack.c.l.b16 %v292
  %v1289 = vunpack.c.l.b16 %v293
  %v1290 = vunpack.c.l.b16 %v294
  %v1291 = vunpack.c.l.b16 %v295
  %v1292 = vunpack.c.l.b16 %v296
  %v1293 = vunpack.c.l.b16 %v297
  %v1294 = vunpack.c.l.b16 %v298
  %v1295 = vunpack.c.l.b16 %v299
  %v1296 = vunpack.c.l.b16 %v300
  %v1297 = vunpack.c.l.b16 %v301
  %v1298 = vunpack.c.l.b16 %v302
  %v1299 = vunpack.c.l.b16 %v303
  %v1300 = vunpack.c.l.b16 %v304
  %v1301 = vunpack.c.l.b16 %v305
  %v1302 = vunpack.c.l.b16 %v306
  %v1303 = vunpack.c.l.b16 %v307
  %v1304 = vunpack.c.l.b16 %v308
  %v1305 = vunpack.c.l.b16 %v309
  %v1306 = vunpack.c.l.b16 %v310
  %v1307 = vunpack.c.l.b16 %v311
  %v1308 = vunpack.c.l.b16 %v312
  %v1309 = vunpack.c.l.b16 %v313
  %v1310 = vunpack.c.l.b16 %v314
  %v1311 = vunpack.c.l.b16 %v315
  %v1312 = vunpack.c.l.b16 %v316
  %v1313 = vunpack.c.l.b16 %v317
  %v1314 = vunpack.c.l.b16 %v318
  %v1315 = vunpack.c.l.b16 %v319
  %v1316 = vunpack.c.l.b16 %v320
  %v1317 = vunpack.c.l.b16 %v321
  %v1318 = vunpack.c.l.b16 %v322
  %v1319 = vunpack.c.l.b16 %v323
  %v1320 = vunpack.c.l.b16 %v324
  %v1321 = vunpack.c.l.b16 %v325
  %v1322 = vunpack.c.l.b16 %v326
  %v1323 = vunpack.c.l.b16 %v327
  %v1324 = vunpack.c.l.b16 %v328
  %v1325 = vunpack.c.l.b16 %v329
  %v1326 = vpack.c.b16 %v1263, %v1262
  %v1327 = vpack.c.b16 %v1265, %v1264
  %v1328 = vpack.c.b16 %v1267, %v1266
  %v1329 = vpack.c.b16 %v1269, %v1268
  %v1330 = vpack.c.b16 %v1271, %v1270
  %v1331 = vpack.c.b16 %v1273, %v1272
  %v1332 = vpack.c.b16 %v1275, %v1274
  %v1333 = vpack.c.b16 %v1277, %v1276
  %v1334 = vpack.c.b16 %v1279, %v1278
  %v1335 = vpack.c.b16 %v1281, %v1280
  %v1336 = vpack.c.b16 %v1283, %v1282
  %v1337 = vpack.c.b16 %v1285, %v1284
  %v1338 = vpack.c.b16 %v1287, %v1286
  %v1339 = vpack.c.b16 %v1289, %v1288
  %v1340 = vpack.c.b16 %v1291, %v1290
  %v1341 = vpack.c.b16 %v1293, %v1292
  %v1342 = vpack.c.b16 %v1295, %v1294
  %v1343 = vpack.c.b16 %v1297, %v1296
  %v1344 = vpack.c.b16 %v1299, %v1298
  %v1345 = vpack.c.b16 %v1301, %v1300
  %v1346 = vpack.c.b16 %v1303, %v1302
  %v1347 = vpack.c.b16 %v1305, %v1304
  %v1348 = vpack.c.b16 %v1307, %v1306
  %v1349 = vpack.c.b16 %v1309, %v1308
  %v1350 = vpack.c.b16 %v1311, %v1310
  %v1351 = vpack.c.b16 %v1313, %v1312
  %v1352 = vpack.c.b16 %v1315, %v1314
  %v1353 = vpack.c.b16 %v1317, %v1316
  %v1354 = vpack.c.b16 %v1319, %v1318
  %v1355 = vpack.c.b16 %v1321, %v1320
  %v1356 = vpack.c.b16 %v1323, %v1322
  %v1357 = vpack.c.b16 %v1325, %v1324
  %1390 = vmatprep.subr.bf16.mxu0 0
  %1391 = vmatpush1.bf16.msra.mxu0 %v1326
  %1392 = vmatprep.subr.bf16.mxu0 0
  %1393 = vmatpush1.bf16.msra.mxu0 %v1327
  %1394 = vmatprep.subr.bf16.mxu0 0
  %1395 = vmatpush1.bf16.msra.mxu0 %v1328
  %1396 = vmatprep.subr.bf16.mxu0 0
  %1397 = vmatpush1.bf16.msra.mxu0 %v1329
  %1398 = vmatprep.subr.bf16.mxu0 0
  %1399 = vmatpush1.bf16.msra.mxu0 %v1330
  %1400 = vmatprep.subr.bf16.mxu0 0
  %1401 = vmatpush1.bf16.msra.mxu0 %v1331
  %1402 = vmatprep.subr.bf16.mxu0 0
  %1403 = vmatpush1.bf16.msra.mxu0 %v1332
  %1404 = vmatprep.subr.bf16.mxu0 0
  %1405 = vmatpush1.bf16.msra.mxu0 %v1333
  %1406 = vmatprep.subr.bf16.mxu0 0
  %1407 = vmatpush1.bf16.msra.mxu0 %v1334
  %1408 = vmatprep.subr.bf16.mxu0 0
  %1409 = vmatpush1.bf16.msra.mxu0 %v1335
  %1410 = vmatprep.subr.bf16.mxu0 0
  %1411 = vmatpush1.bf16.msra.mxu0 %v1336
  %1412 = vmatprep.subr.bf16.mxu0 0
  %1413 = vmatpush1.bf16.msra.mxu0 %v1337
  %1414 = vmatprep.subr.bf16.mxu0 0
  %1415 = vmatpush1.bf16.msra.mxu0 %v1338
  %1416 = vmatprep.subr.bf16.mxu0 0
  %1417 = vmatpush1.bf16.msra.mxu0 %v1339
  %1418 = vmatprep.subr.bf16.mxu0 0
  %1419 = vmatpush1.bf16.msra.mxu0 %v1340
  %1420 = vmatprep.subr.bf16.mxu0 0
  %1421 = vmatpush1.bf16.msra.mxu0 %v1341
  %1422 = vmatprep.mubr.bf16.mxu0 %v235
  %1423 = vmatmul.mubr.bf16.gmra.mrb[0].mxu0 %v234
  %v1424 = vpop.f32.mrb[0].mxu0
  %v1425 = vadd.f32 %v1136, %v1424
  %v1426 = vpop.f32.mrb[0].mxu0
  %v1427 = vpop.f32.mrb[0].mxu0
  %v1428 = vadd.f32 %v1139, %v1427
  %v1429 = vpop.f32.mrb[0].mxu0
  %1430 = vmatprep.mubr.bf16.mxu0 %v239
  %1431 = vmatmul.mubr.bf16.gmra.mrb[0].mxu0 %v238
  %v1432 = vpop.f32.mrb[0].mxu0
  %v1433 = vadd.f32 %v1144, %v1432
  %v1434 = vpop.f32.mrb[0].mxu0
  %v1435 = vpop.f32.mrb[0].mxu0
  %v1436 = vadd.f32 %v1147, %v1435
  %v1437 = vpop.f32.mrb[0].mxu0
  %1438 = vmatprep.mubr.bf16.mxu0 %v243
  %1439 = vmatmul.mubr.bf16.gmra.mrb[0].mxu0 %v242
  %v1440 = vpop.f32.mrb[0].mxu0
  %v1441 = vadd.f32 %v1152, %v1440
  %v1442 = vpop.f32.mrb[0].mxu0
  %v1443 = vpop.f32.mrb[0].mxu0
  %v1444 = vadd.f32 %v1155, %v1443
  %v1445 = vpop.f32.mrb[0].mxu0
  %1446 = vmatprep.mubr.bf16.mxu0 %v247
  %1447 = vmatmul.mubr.bf16.gmra.mrb[0].mxu0 %v246
  %v1448 = vpop.f32.mrb[0].mxu0
  %v1449 = vadd.f32 %v1160, %v1448
  %v1450 = vpop.f32.mrb[0].mxu0
  %v1451 = vpop.f32.mrb[0].mxu0
  %v1452 = vadd.f32 %v1163, %v1451
  %v1453 = vpop.f32.mrb[0].mxu0
  %1454 = vmatprep.mubr.bf16.mxu0 %v251
  %1455 = vmatmul.mubr.bf16.gmra.mrb[0].mxu0 %v250
  %v1456 = vpop.f32.mrb[0].mxu0
  %v1457 = vadd.f32 %v1168, %v1456
  %v1458 = vpop.f32.mrb[0].mxu0
  %v1459 = vpop.f32.mrb[0].mxu0
  %v1460 = vadd.f32 %v1171, %v1459
  %v1461 = vpop.f32.mrb[0].mxu0
  %1462 = vmatprep.mubr.bf16.mxu0 %v255
  %1463 = vmatmul.mubr.bf16.gmra.mrb[0].mxu0 %v254
  %v1464 = vpop.f32.mrb[0].mxu0
  %v1465 = vadd.f32 %v1176, %v1464
  %v1466 = vpop.f32.mrb[0].mxu0
  %v1467 = vpop.f32.mrb[0].mxu0
  %v1468 = vadd.f32 %v1179, %v1467
  %v1469 = vpop.f32.mrb[0].mxu0
  %1470 = vmatprep.mubr.bf16.mxu0 %v259
  %1471 = vmatmul.mubr.bf16.gmra.mrb[0].mxu0 %v258
  %v1472 = vpop.f32.mrb[0].mxu0
  %v1473 = vadd.f32 %v1184, %v1472
  %v1474 = vpop.f32.mrb[0].mxu0
  %v1475 = vpop.f32.mrb[0].mxu0
  %v1476 = vadd.f32 %v1187, %v1475
  %v1477 = vpop.f32.mrb[0].mxu0
  %1478 = vmatprep.mubr.bf16.mxu0 %v263
  %1479 = vmatmul.mubr.bf16.gmra.mrb[0].mxu0 %v262
  %v1480 = vpop.f32.mrb[0].mxu0
  %v1481 = vadd.f32 %v1192, %v1480
  %v1482 = vpop.f32.mrb[0].mxu0
  %v1483 = vpop.f32.mrb[0].mxu0
  %v1484 = vadd.f32 %v1195, %v1483
  %v1485 = vpop.f32.mrb[0].mxu0
  %1486 = vdwg.mxu0
  %1487 = vmatprep.subr.bf16.mxu0 0
  %1488 = vmatpush1.bf16.msra.mxu0 %v1342
  %1489 = vmatprep.subr.bf16.mxu0 0
  %1490 = vmatpush1.bf16.msra.mxu0 %v1343
  %1491 = vmatprep.subr.bf16.mxu0 0
  %1492 = vmatpush1.bf16.msra.mxu0 %v1344
  %1493 = vmatprep.subr.bf16.mxu0 0
  %1494 = vmatpush1.bf16.msra.mxu0 %v1345
  %1495 = vmatprep.subr.bf16.mxu0 0
  %1496 = vmatpush1.bf16.msra.mxu0 %v1346
  %1497 = vmatprep.subr.bf16.mxu0 0
  %1498 = vmatpush1.bf16.msra.mxu0 %v1347
  %1499 = vmatprep.subr.bf16.mxu0 0
  %1500 = vmatpush1.bf16.msra.mxu0 %v1348
  %1501 = vmatprep.subr.bf16.mxu0 0
  %1502 = vmatpush1.bf16.msra.mxu0 %v1349
  %1503 = vmatprep.subr.bf16.mxu0 0
  %1504 = vmatpush1.bf16.msra.mxu0 %v1350
  %1505 = vmatprep.subr.bf16.mxu0 0
  %1506 = vmatpush1.bf16.msra.mxu0 %v1351
  %1507 = vmatprep.subr.bf16.mxu0 0
  %1508 = vmatpush1.bf16.msra.mxu0 %v1352
  %1509 = vmatprep.subr.bf16.mxu0 0
  %1510 = vmatpush1.bf16.msra.mxu0 %v1353
  %1511 = vmatprep.subr.bf16.mxu0 0
  %1512 = vmatpush1.bf16.msra.mxu0 %v1354
  %1513 = vmatprep.subr.bf16.mxu0 0
  %1514 = vmatpush1.bf16.msra.mxu0 %v1355
  %1515 = vmatprep.subr.bf16.mxu0 0
  %1516 = vmatpush1.bf16.msra.mxu0 %v1356
  %1517 = vmatprep.subr.bf16.mxu0 0
  %1518 = vmatpush1.bf16.msra.mxu0 %v1357
  %1519 = vmatprep.mubr.bf16.mxu0 %v237
  %1520 = vmatmul.mubr.bf16.gmra.mrb[0].mxu0 %v236
  %v1521 = vpop.f32.mrb[0].mxu0
  %v1522 = vadd.f32 %v1425, %v1521
  %v1523 = vpop.f32.mrb[0].mxu0
  %v1524 = vpop.f32.mrb[0].mxu0
  %v1525 = vadd.f32 %v1428, %v1524
  %v1526 = vpop.f32.mrb[0].mxu0
  %1527 = vmatprep.mubr.bf16.mxu0 %v241
  %1528 = vmatmul.mubr.bf16.gmra.mrb[0].mxu0 %v240
  %v1529 = vpop.f32.mrb[0].mxu0
  %v1530 = vadd.f32 %v1433, %v1529
  %v1531 = vpop.f32.mrb[0].mxu0
  %v1532 = vpop.f32.mrb[0].mxu0
  %v1533 = vadd.f32 %v1436, %v1532
  %v1534 = vpop.f32.mrb[0].mxu0
  %1535 = vmatprep.mubr.bf16.mxu0 %v245
  %1536 = vmatmul.mubr.bf16.gmra.mrb[0].mxu0 %v244
  %v1537 = vpop.f32.mrb[0].mxu0
  %v1538 = vadd.f32 %v1441, %v1537
  %v1539 = vpop.f32.mrb[0].mxu0
  %v1540 = vpop.f32.mrb[0].mxu0
  %v1541 = vadd.f32 %v1444, %v1540
  %v1542 = vpop.f32.mrb[0].mxu0
  %1543 = vmatprep.mubr.bf16.mxu0 %v249
  %1544 = vmatmul.mubr.bf16.gmra.mrb[0].mxu0 %v248
  %v1545 = vpop.f32.mrb[0].mxu0
  %v1546 = vadd.f32 %v1449, %v1545
  %v1547 = vpop.f32.mrb[0].mxu0
  %v1548 = vpop.f32.mrb[0].mxu0
  %v1549 = vadd.f32 %v1452, %v1548
  %v1550 = vpop.f32.mrb[0].mxu0
  %1551 = vmatprep.mubr.bf16.mxu0 %v253
  %1552 = vmatmul.mubr.bf16.gmra.mrb[0].mxu0 %v252
  %v1553 = vpop.f32.mrb[0].mxu0
  %v1554 = vadd.f32 %v1457, %v1553
  %v1555 = vpop.f32.mrb[0].mxu0
  %v1556 = vpop.f32.mrb[0].mxu0
  %v1557 = vadd.f32 %v1460, %v1556
  %v1558 = vpop.f32.mrb[0].mxu0
  %1559 = vmatprep.mubr.bf16.mxu0 %v257
  %1560 = vmatmul.mubr.bf16.gmra.mrb[0].mxu0 %v256
  %v1561 = vpop.f32.mrb[0].mxu0
  %v1562 = vadd.f32 %v1465, %v1561
  %v1563 = vpop.f32.mrb[0].mxu0
  %v1564 = vpop.f32.mrb[0].mxu0
  %v1565 = vadd.f32 %v1468, %v1564
  %v1566 = vpop.f32.mrb[0].mxu0
  %1567 = vmatprep.mubr.bf16.mxu0 %v261
  %1568 = vmatmul.mubr.bf16.gmra.mrb[0].mxu0 %v260
  %v1569 = vpop.f32.mrb[0].mxu0
  %v1570 = vadd.f32 %v1473, %v1569
  %v1571 = vpop.f32.mrb[0].mxu0
  %v1572 = vpop.f32.mrb[0].mxu0
  %v1573 = vadd.f32 %v1476, %v1572
  %v1574 = vpop.f32.mrb[0].mxu0
  %1575 = vmatprep.mubr.bf16.mxu0 %v265
  %1576 = vmatmul.mubr.bf16.gmra.mrb[0].mxu0 %v264
  %v1577 = vpop.f32.mrb[0].mxu0
  %v1578 = vadd.f32 %v1481, %v1577
  %v1579 = vpop.f32.mrb[0].mxu0
  %v1580 = vpop.f32.mrb[0].mxu0
  %v1581 = vadd.f32 %v1484, %v1580
  %v1582 = vpop.f32.mrb[0].mxu0
  %1583 = vdwg.mxu0
  %v1584 = vpack.c.bf16 %v106, %v98
  %v1585 = vpack.c.bf16 %v107, %v99
  %v1586 = vpack.c.bf16 %v108, %v100
  %v1587 = vpack.c.bf16 %v109, %v101
  %v1588 = vpack.c.bf16 %v122, %v114
  %v1589 = vpack.c.bf16 %v123, %v115
  %v1590 = vpack.c.bf16 %v124, %v116
  %v1591 = vpack.c.bf16 %v125, %v117
  %v1592 = vpack.c.bf16 %v138, %v130
  %v1593 = vpack.c.bf16 %v139, %v131
  %v1594 = vpack.c.bf16 %v140, %v132
  %v1595 = vpack.c.bf16 %v141, %v133
  %v1596 = vpack.c.bf16 %v154, %v146
  %v1597 = vpack.c.bf16 %v155, %v147
  %v1598 = vpack.c.bf16 %v156, %v148
  %v1599 = vpack.c.bf16 %v157, %v149
  %v1600 = vpack.c.bf16 %v178, %v170
  %v1601 = vpack.c.bf16 %v179, %v171
  %v1602 = vpack.c.bf16 %v180, %v172
  %v1603 = vpack.c.bf16 %v181, %v173
  %v1604 = vpack.c.bf16 %v194, %v186
  %v1605 = vpack.c.bf16 %v195, %v187
  %v1606 = vpack.c.bf16 %v196, %v188
  %v1607 = vpack.c.bf16 %v197, %v189
  %v1608 = vpack.c.bf16 %v210, %v202
  %v1609 = vpack.c.bf16 %v211, %v203
  %v1610 = vpack.c.bf16 %v212, %v204
  %v1611 = vpack.c.bf16 %v213, %v205
  %v1612 = vpack.c.bf16 %v226, %v218
  %v1613 = vpack.c.bf16 %v227, %v219
  %v1614 = vpack.c.bf16 %v228, %v220
  %v1615 = vpack.c.bf16 %v229, %v221
  %s1616 = scalar_lea.vmem %s1, 512
  %v1617 = vld [vmem:[%s1616] sm:$0xf]
  %v1618 = vld [vmem:[%s1616 + $0x4] sm:$0xf]
  %v1619 = vld [vmem:[%s1616 + $0x8] sm:$0xf]
  %v1620 = vld [vmem:[%s1616 + $0xc] sm:$0xf]
  %v1621 = vld [vmem:[%s1616 + $0x10] sm:$0xf]
  %v1622 = vld [vmem:[%s1616 + $0x14] sm:$0xf]
  %v1623 = vld [vmem:[%s1616 + $0x18] sm:$0xf]
  %v1624 = vld [vmem:[%s1616 + $0x1c] sm:$0xf]
  %v1625 = vld [vmem:[%s1616 + $0x20] sm:$0xf]
  %v1626 = vld [vmem:[%s1616 + $0x24] sm:$0xf]
  %v1627 = vld [vmem:[%s1616 + $0x28] sm:$0xf]
  %v1628 = vld [vmem:[%s1616 + $0x2c] sm:$0xf]
  %v1629 = vld [vmem:[%s1616 + $0x30] sm:$0xf]
  %v1630 = vld [vmem:[%s1616 + $0x34] sm:$0xf]
  %v1631 = vld [vmem:[%s1616 + $0x38] sm:$0xf]
  %v1632 = vld [vmem:[%s1616 + $0x3c] sm:$0xf]
  %v1633 = vld [vmem:[%s1616 + $0x40] sm:$0xf]
  %v1634 = vld [vmem:[%s1616 + $0x44] sm:$0xf]
  %v1635 = vld [vmem:[%s1616 + $0x48] sm:$0xf]
  %v1636 = vld [vmem:[%s1616 + $0x4c] sm:$0xf]
  %v1637 = vld [vmem:[%s1616 + $0x50] sm:$0xf]
  %v1638 = vld [vmem:[%s1616 + $0x54] sm:$0xf]
  %v1639 = vld [vmem:[%s1616 + $0x58] sm:$0xf]
  %v1640 = vld [vmem:[%s1616 + $0x5c] sm:$0xf]
  %v1641 = vld [vmem:[%s1616 + $0x60] sm:$0xf]
  %v1642 = vld [vmem:[%s1616 + $0x64] sm:$0xf]
  %v1643 = vld [vmem:[%s1616 + $0x68] sm:$0xf]
  %v1644 = vld [vmem:[%s1616 + $0x6c] sm:$0xf]
  %v1645 = vld [vmem:[%s1616 + $0x70] sm:$0xf]
  %v1646 = vld [vmem:[%s1616 + $0x74] sm:$0xf]
  %v1647 = vld [vmem:[%s1616 + $0x78] sm:$0xf]
  %v1648 = vld [vmem:[%s1616 + $0x7c] sm:$0xf]
  %v1649 = vld [vmem:[%s1616 + $0x80] sm:$0xf]
  %v1650 = vld [vmem:[%s1616 + $0x84] sm:$0xf]
  %v1651 = vld [vmem:[%s1616 + $0x88] sm:$0xf]
  %v1652 = vld [vmem:[%s1616 + $0x8c] sm:$0xf]
  %v1653 = vld [vmem:[%s1616 + $0x90] sm:$0xf]
  %v1654 = vld [vmem:[%s1616 + $0x94] sm:$0xf]
  %v1655 = vld [vmem:[%s1616 + $0x98] sm:$0xf]
  %v1656 = vld [vmem:[%s1616 + $0x9c] sm:$0xf]
  %v1657 = vld [vmem:[%s1616 + $0xa0] sm:$0xf]
  %v1658 = vld [vmem:[%s1616 + $0xa4] sm:$0xf]
  %v1659 = vld [vmem:[%s1616 + $0xa8] sm:$0xf]
  %v1660 = vld [vmem:[%s1616 + $0xac] sm:$0xf]
  %v1661 = vld [vmem:[%s1616 + $0xb0] sm:$0xf]
  %v1662 = vld [vmem:[%s1616 + $0xb4] sm:$0xf]
  %v1663 = vld [vmem:[%s1616 + $0xb8] sm:$0xf]
  %v1664 = vld [vmem:[%s1616 + $0xbc] sm:$0xf]
  %v1665 = vld [vmem:[%s1616 + $0xc0] sm:$0xf]
  %v1666 = vld [vmem:[%s1616 + $0xc4] sm:$0xf]
  %v1667 = vld [vmem:[%s1616 + $0xc8] sm:$0xf]
  %v1668 = vld [vmem:[%s1616 + $0xcc] sm:$0xf]
  %v1669 = vld [vmem:[%s1616 + $0xd0] sm:$0xf]
  %v1670 = vld [vmem:[%s1616 + $0xd4] sm:$0xf]
  %v1671 = vld [vmem:[%s1616 + $0xd8] sm:$0xf]
  %v1672 = vld [vmem:[%s1616 + $0xdc] sm:$0xf]
  %v1673 = vld [vmem:[%s1616 + $0xe0] sm:$0xf]
  %v1674 = vld [vmem:[%s1616 + $0xe4] sm:$0xf]
  %v1675 = vld [vmem:[%s1616 + $0xe8] sm:$0xf]
  %v1676 = vld [vmem:[%s1616 + $0xec] sm:$0xf]
  %v1677 = vld [vmem:[%s1616 + $0xf0] sm:$0xf]
  %v1678 = vld [vmem:[%s1616 + $0xf4] sm:$0xf]
  %v1679 = vld [vmem:[%s1616 + $0xf8] sm:$0xf]
  %v1680 = vld [vmem:[%s1616 + $0xfc] sm:$0xf]
  %v1745 = vunpack.c.l.b16 %v1617
  %v1746 = vunpack.c.l.b16 %v1618
  %v1747 = vunpack.c.l.b16 %v1619
  %v1748 = vunpack.c.l.b16 %v1620
  %v1749 = vunpack.c.l.b16 %v1621
  %v1750 = vunpack.c.l.b16 %v1622
  %v1751 = vunpack.c.l.b16 %v1623
  %v1752 = vunpack.c.l.b16 %v1624
  %v1753 = vunpack.c.l.b16 %v1625
  %v1754 = vunpack.c.l.b16 %v1626
  %v1755 = vunpack.c.l.b16 %v1627
  %v1756 = vunpack.c.l.b16 %v1628
  %v1757 = vunpack.c.l.b16 %v1629
  %v1758 = vunpack.c.l.b16 %v1630
  %v1759 = vunpack.c.l.b16 %v1631
  %v1760 = vunpack.c.l.b16 %v1632
  %v1761 = vunpack.c.l.b16 %v1633
  %v1762 = vunpack.c.l.b16 %v1634
  %v1763 = vunpack.c.l.b16 %v1635
  %v1764 = vunpack.c.l.b16 %v1636
  %v1765 = vunpack.c.l.b16 %v1637
  %v1766 = vunpack.c.l.b16 %v1638
  %v1767 = vunpack.c.l.b16 %v1639
  %v1768 = vunpack.c.l.b16 %v1640
  %v1769 = vunpack.c.l.b16 %v1641
  %v1770 = vunpack.c.l.b16 %v1642
  %v1771 = vunpack.c.l.b16 %v1643
  %v1772 = vunpack.c.l.b16 %v1644
  %v1773 = vunpack.c.l.b16 %v1645
  %v1774 = vunpack.c.l.b16 %v1646
  %v1775 = vunpack.c.l.b16 %v1647
  %v1776 = vunpack.c.l.b16 %v1648
  %v1777 = vunpack.c.l.b16 %v1649
  %v1778 = vunpack.c.l.b16 %v1650
  %v1779 = vunpack.c.l.b16 %v1651
  %v1780 = vunpack.c.l.b16 %v1652
  %v1781 = vunpack.c.l.b16 %v1653
  %v1782 = vunpack.c.l.b16 %v1654
  %v1783 = vunpack.c.l.b16 %v1655
  %v1784 = vunpack.c.l.b16 %v1656
  %v1785 = vunpack.c.l.b16 %v1657
  %v1786 = vunpack.c.l.b16 %v1658
  %v1787 = vunpack.c.l.b16 %v1659
  %v1788 = vunpack.c.l.b16 %v1660
  %v1789 = vunpack.c.l.b16 %v1661
  %v1790 = vunpack.c.l.b16 %v1662
  %v1791 = vunpack.c.l.b16 %v1663
  %v1792 = vunpack.c.l.b16 %v1664
  %v1793 = vunpack.c.l.b16 %v1665
  %v1794 = vunpack.c.l.b16 %v1666
  %v1795 = vunpack.c.l.b16 %v1667
  %v1796 = vunpack.c.l.b16 %v1668
  %v1797 = vunpack.c.l.b16 %v1669
  %v1798 = vunpack.c.l.b16 %v1670
  %v1799 = vunpack.c.l.b16 %v1671
  %v1800 = vunpack.c.l.b16 %v1672
  %v1801 = vunpack.c.l.b16 %v1673
  %v1802 = vunpack.c.l.b16 %v1674
  %v1803 = vunpack.c.l.b16 %v1675
  %v1804 = vunpack.c.l.b16 %v1676
  %v1805 = vunpack.c.l.b16 %v1677
  %v1806 = vunpack.c.l.b16 %v1678
  %v1807 = vunpack.c.l.b16 %v1679
  %v1808 = vunpack.c.l.b16 %v1680
  %v1809 = vpack.c.b16 %v1746, %v1745
  %v1810 = vpack.c.b16 %v1748, %v1747
  %v1811 = vpack.c.b16 %v1750, %v1749
  %v1812 = vpack.c.b16 %v1752, %v1751
  %v1813 = vpack.c.b16 %v1754, %v1753
  %v1814 = vpack.c.b16 %v1756, %v1755
  %v1815 = vpack.c.b16 %v1758, %v1757
  %v1816 = vpack.c.b16 %v1760, %v1759
  %v1817 = vpack.c.b16 %v1762, %v1761
  %v1818 = vpack.c.b16 %v1764, %v1763
  %v1819 = vpack.c.b16 %v1766, %v1765
  %v1820 = vpack.c.b16 %v1768, %v1767
  %v1821 = vpack.c.b16 %v1770, %v1769
  %v1822 = vpack.c.b16 %v1772, %v1771
  %v1823 = vpack.c.b16 %v1774, %v1773
  %v1824 = vpack.c.b16 %v1776, %v1775
  %v1825 = vpack.c.b16 %v1778, %v1777
  %v1826 = vpack.c.b16 %v1780, %v1779
  %v1827 = vpack.c.b16 %v1782, %v1781
  %v1828 = vpack.c.b16 %v1784, %v1783
  %v1829 = vpack.c.b16 %v1786, %v1785
  %v1830 = vpack.c.b16 %v1788, %v1787
  %v1831 = vpack.c.b16 %v1790, %v1789
  %v1832 = vpack.c.b16 %v1792, %v1791
  %v1833 = vpack.c.b16 %v1794, %v1793
  %v1834 = vpack.c.b16 %v1796, %v1795
  %v1835 = vpack.c.b16 %v1798, %v1797
  %v1836 = vpack.c.b16 %v1800, %v1799
  %v1837 = vpack.c.b16 %v1802, %v1801
  %v1838 = vpack.c.b16 %v1804, %v1803
  %v1839 = vpack.c.b16 %v1806, %v1805
  %v1840 = vpack.c.b16 %v1808, %v1807
  %1873 = vmatprep.subr.bf16.mxu0 0
  %1874 = vmatpush1.bf16.msra.mxu0 %v1809
  %1875 = vmatprep.subr.bf16.mxu0 0
  %1876 = vmatpush1.bf16.msra.mxu0 %v1810
  %1877 = vmatprep.subr.bf16.mxu0 0
  %1878 = vmatpush1.bf16.msra.mxu0 %v1811
  %1879 = vmatprep.subr.bf16.mxu0 0
  %1880 = vmatpush1.bf16.msra.mxu0 %v1812
  %1881 = vmatprep.subr.bf16.mxu0 0
  %1882 = vmatpush1.bf16.msra.mxu0 %v1813
  %1883 = vmatprep.subr.bf16.mxu0 0
  %1884 = vmatpush1.bf16.msra.mxu0 %v1814
  %1885 = vmatprep.subr.bf16.mxu0 0
  %1886 = vmatpush1.bf16.msra.mxu0 %v1815
  %1887 = vmatprep.subr.bf16.mxu0 0
  %1888 = vmatpush1.bf16.msra.mxu0 %v1816
  %1889 = vmatprep.subr.bf16.mxu0 0
  %1890 = vmatpush1.bf16.msra.mxu0 %v1817
  %1891 = vmatprep.subr.bf16.mxu0 0
  %1892 = vmatpush1.bf16.msra.mxu0 %v1818
  %1893 = vmatprep.subr.bf16.mxu0 0
  %1894 = vmatpush1.bf16.msra.mxu0 %v1819
  %1895 = vmatprep.subr.bf16.mxu0 0
  %1896 = vmatpush1.bf16.msra.mxu0 %v1820
  %1897 = vmatprep.subr.bf16.mxu0 0
  %1898 = vmatpush1.bf16.msra.mxu0 %v1821
  %1899 = vmatprep.subr.bf16.mxu0 0
  %1900 = vmatpush1.bf16.msra.mxu0 %v1822
  %1901 = vmatprep.subr.bf16.mxu0 0
  %1902 = vmatpush1.bf16.msra.mxu0 %v1823
  %1903 = vmatprep.subr.bf16.mxu0 0
  %1904 = vmatpush1.bf16.msra.mxu0 %v1824
  %1905 = vmatprep.mubr.bf16.mxu0 %v1585
  %1906 = vmatmul.mubr.bf16.gmra.mrb[0].mxu0 %v1584
  %v1907 = vpop.f32.mrb[0].mxu0
  %v1908 = vadd.f32 0.0, %v1907
  %v1909 = vpop.f32.mrb[0].mxu0
  %v1910 = vpop.f32.mrb[0].mxu0
  %v1911 = vadd.f32 0.0, %v1910
  %v1912 = vpop.f32.mrb[0].mxu0
  %1913 = vmatprep.mubr.bf16.mxu0 %v1589
  %1914 = vmatmul.mubr.bf16.gmra.mrb[0].mxu0 %v1588
  %v1915 = vpop.f32.mrb[0].mxu0
  %v1916 = vadd.f32 0.0, %v1915
  %v1917 = vpop.f32.mrb[0].mxu0
  %v1918 = vpop.f32.mrb[0].mxu0
  %v1919 = vadd.f32 0.0, %v1918
  %v1920 = vpop.f32.mrb[0].mxu0
  %1921 = vmatprep.mubr.bf16.mxu0 %v1593
  %1922 = vmatmul.mubr.bf16.gmra.mrb[0].mxu0 %v1592
  %v1923 = vpop.f32.mrb[0].mxu0
  %v1924 = vadd.f32 0.0, %v1923
  %v1925 = vpop.f32.mrb[0].mxu0
  %v1926 = vpop.f32.mrb[0].mxu0
  %v1927 = vadd.f32 0.0, %v1926
  %v1928 = vpop.f32.mrb[0].mxu0
  %1929 = vmatprep.mubr.bf16.mxu0 %v1597
  %1930 = vmatmul.mubr.bf16.gmra.mrb[0].mxu0 %v1596
  %v1931 = vpop.f32.mrb[0].mxu0
  %v1932 = vadd.f32 0.0, %v1931
  %v1933 = vpop.f32.mrb[0].mxu0
  %v1934 = vpop.f32.mrb[0].mxu0
  %v1935 = vadd.f32 0.0, %v1934
  %v1936 = vpop.f32.mrb[0].mxu0
  %1937 = vmatprep.mubr.bf16.mxu0 %v1601
  %1938 = vmatmul.mubr.bf16.gmra.mrb[0].mxu0 %v1600
  %v1939 = vpop.f32.mrb[0].mxu0
  %v1940 = vadd.f32 0.0, %v1939
  %v1941 = vpop.f32.mrb[0].mxu0
  %v1942 = vpop.f32.mrb[0].mxu0
  %v1943 = vadd.f32 0.0, %v1942
  %v1944 = vpop.f32.mrb[0].mxu0
  %1945 = vmatprep.mubr.bf16.mxu0 %v1605
  %1946 = vmatmul.mubr.bf16.gmra.mrb[0].mxu0 %v1604
  %v1947 = vpop.f32.mrb[0].mxu0
  %v1948 = vadd.f32 0.0, %v1947
  %v1949 = vpop.f32.mrb[0].mxu0
  %v1950 = vpop.f32.mrb[0].mxu0
  %v1951 = vadd.f32 0.0, %v1950
  %v1952 = vpop.f32.mrb[0].mxu0
  %1953 = vmatprep.mubr.bf16.mxu0 %v1609
  %1954 = vmatmul.mubr.bf16.gmra.mrb[0].mxu0 %v1608
  %v1955 = vpop.f32.mrb[0].mxu0
  %v1956 = vadd.f32 0.0, %v1955
  %v1957 = vpop.f32.mrb[0].mxu0
  %v1958 = vpop.f32.mrb[0].mxu0
  %v1959 = vadd.f32 0.0, %v1958
  %v1960 = vpop.f32.mrb[0].mxu0
  %1961 = vmatprep.mubr.bf16.mxu0 %v1613
  %1962 = vmatmul.mubr.bf16.gmra.mrb[0].mxu0 %v1612
  %v1963 = vpop.f32.mrb[0].mxu0
  %v1964 = vadd.f32 0.0, %v1963
  %v1965 = vpop.f32.mrb[0].mxu0
  %v1966 = vpop.f32.mrb[0].mxu0
  %v1967 = vadd.f32 0.0, %v1966
  %v1968 = vpop.f32.mrb[0].mxu0
  %1969 = vdwg.mxu0
  %1970 = vmatprep.subr.bf16.mxu0 0
  %1971 = vmatpush1.bf16.msra.mxu0 %v1825
  %1972 = vmatprep.subr.bf16.mxu0 0
  %1973 = vmatpush1.bf16.msra.mxu0 %v1826
  %1974 = vmatprep.subr.bf16.mxu0 0
  %1975 = vmatpush1.bf16.msra.mxu0 %v1827
  %1976 = vmatprep.subr.bf16.mxu0 0
  %1977 = vmatpush1.bf16.msra.mxu0 %v1828
  %1978 = vmatprep.subr.bf16.mxu0 0
  %1979 = vmatpush1.bf16.msra.mxu0 %v1829
  %1980 = vmatprep.subr.bf16.mxu0 0
  %1981 = vmatpush1.bf16.msra.mxu0 %v1830
  %1982 = vmatprep.subr.bf16.mxu0 0
  %1983 = vmatpush1.bf16.msra.mxu0 %v1831
  %1984 = vmatprep.subr.bf16.mxu0 0
  %1985 = vmatpush1.bf16.msra.mxu0 %v1832
  %1986 = vmatprep.subr.bf16.mxu0 0
  %1987 = vmatpush1.bf16.msra.mxu0 %v1833
  %1988 = vmatprep.subr.bf16.mxu0 0
  %1989 = vmatpush1.bf16.msra.mxu0 %v1834
  %1990 = vmatprep.subr.bf16.mxu0 0
  %1991 = vmatpush1.bf16.msra.mxu0 %v1835
  %1992 = vmatprep.subr.bf16.mxu0 0
  %1993 = vmatpush1.bf16.msra.mxu0 %v1836
  %1994 = vmatprep.subr.bf16.mxu0 0
  %1995 = vmatpush1.bf16.msra.mxu0 %v1837
  %1996 = vmatprep.subr.bf16.mxu0 0
  %1997 = vmatpush1.bf16.msra.mxu0 %v1838
  %1998 = vmatprep.subr.bf16.mxu0 0
  %1999 = vmatpush1.bf16.msra.mxu0 %v1839
  %2000 = vmatprep.subr.bf16.mxu0 0
  %2001 = vmatpush1.bf16.msra.mxu0 %v1840
  %2002 = vmatprep.mubr.bf16.mxu0 %v1587
  %2003 = vmatmul.mubr.bf16.gmra.mrb[0].mxu0 %v1586
  %v2004 = vpop.f32.mrb[0].mxu0
  %v2005 = vadd.f32 %v1908, %v2004
  %v2006 = vpop.f32.mrb[0].mxu0
  %v2007 = vpop.f32.mrb[0].mxu0
  %v2008 = vadd.f32 %v1911, %v2007
  %v2009 = vpop.f32.mrb[0].mxu0
  %2010 = vmatprep.mubr.bf16.mxu0 %v1591
  %2011 = vmatmul.mubr.bf16.gmra.mrb[0].mxu0 %v1590
  %v2012 = vpop.f32.mrb[0].mxu0
  %v2013 = vadd.f32 %v1916, %v2012
  %v2014 = vpop.f32.mrb[0].mxu0
  %v2015 = vpop.f32.mrb[0].mxu0
  %v2016 = vadd.f32 %v1919, %v2015
  %v2017 = vpop.f32.mrb[0].mxu0
  %2018 = vmatprep.mubr.bf16.mxu0 %v1595
  %2019 = vmatmul.mubr.bf16.gmra.mrb[0].mxu0 %v1594
  %v2020 = vpop.f32.mrb[0].mxu0
  %v2021 = vadd.f32 %v1924, %v2020
  %v2022 = vpop.f32.mrb[0].mxu0
  %v2023 = vpop.f32.mrb[0].mxu0
  %v2024 = vadd.f32 %v1927, %v2023
  %v2025 = vpop.f32.mrb[0].mxu0
  %2026 = vmatprep.mubr.bf16.mxu0 %v1599
  %2027 = vmatmul.mubr.bf16.gmra.mrb[0].mxu0 %v1598
  %v2028 = vpop.f32.mrb[0].mxu0
  %v2029 = vadd.f32 %v1932, %v2028
  %v2030 = vpop.f32.mrb[0].mxu0
  %v2031 = vpop.f32.mrb[0].mxu0
  %v2032 = vadd.f32 %v1935, %v2031
  %v2033 = vpop.f32.mrb[0].mxu0
  %2034 = vmatprep.mubr.bf16.mxu0 %v1603
  %2035 = vmatmul.mubr.bf16.gmra.mrb[0].mxu0 %v1602
  %v2036 = vpop.f32.mrb[0].mxu0
  %v2037 = vadd.f32 %v1940, %v2036
  %v2038 = vpop.f32.mrb[0].mxu0
  %v2039 = vpop.f32.mrb[0].mxu0
  %v2040 = vadd.f32 %v1943, %v2039
  %v2041 = vpop.f32.mrb[0].mxu0
  %2042 = vmatprep.mubr.bf16.mxu0 %v1607
  %2043 = vmatmul.mubr.bf16.gmra.mrb[0].mxu0 %v1606
  %v2044 = vpop.f32.mrb[0].mxu0
  %v2045 = vadd.f32 %v1948, %v2044
  %v2046 = vpop.f32.mrb[0].mxu0
  %v2047 = vpop.f32.mrb[0].mxu0
  %v2048 = vadd.f32 %v1951, %v2047
  %v2049 = vpop.f32.mrb[0].mxu0
  %2050 = vmatprep.mubr.bf16.mxu0 %v1611
  %2051 = vmatmul.mubr.bf16.gmra.mrb[0].mxu0 %v1610
  %v2052 = vpop.f32.mrb[0].mxu0
  %v2053 = vadd.f32 %v1956, %v2052
  %v2054 = vpop.f32.mrb[0].mxu0
  %v2055 = vpop.f32.mrb[0].mxu0
  %v2056 = vadd.f32 %v1959, %v2055
  %v2057 = vpop.f32.mrb[0].mxu0
  %2058 = vmatprep.mubr.bf16.mxu0 %v1615
  %2059 = vmatmul.mubr.bf16.gmra.mrb[0].mxu0 %v1614
  %v2060 = vpop.f32.mrb[0].mxu0
  %v2061 = vadd.f32 %v1964, %v2060
  %v2062 = vpop.f32.mrb[0].mxu0
  %v2063 = vpop.f32.mrb[0].mxu0
  %v2064 = vadd.f32 %v1967, %v2063
  %v2065 = vpop.f32.mrb[0].mxu0
  %2066 = vdwg.mxu0
  %v2067 = vadd.f32 %v1522, %v2005
  %v2068 = vadd.f32 %v1525, %v2008
  %v2069 = vadd.f32 %v1530, %v2013
  %v2070 = vadd.f32 %v1533, %v2016
  %v2071 = vadd.f32 %v1538, %v2021
  %v2072 = vadd.f32 %v1541, %v2024
  %v2073 = vadd.f32 %v1546, %v2029
  %v2074 = vadd.f32 %v1549, %v2032
  %v2075 = vadd.f32 %v1554, %v2037
  %v2076 = vadd.f32 %v1557, %v2040
  %v2077 = vadd.f32 %v1562, %v2045
  %v2078 = vadd.f32 %v1565, %v2048
  %v2079 = vadd.f32 %v1570, %v2053
  %v2080 = vadd.f32 %v1573, %v2056
  %v2081 = vadd.f32 %v1578, %v2061
  %v2082 = vadd.f32 %v1581, %v2064
  %v2099 = vrot.slane %v154, 1
  %v2100 = vrot.slane %v158, 1
  %v2101 = vsel %vm458, %v2099, %v2100
  %v2102 = vrot.slane %v155, 1
  %v2103 = vrot.slane %v159, 1
  %v2104 = vsel %vm458, %v2102, %v2103
  %v2105 = vrot.slane %v156, 1
  %v2106 = vrot.slane %v160, 1
  %v2107 = vsel %vm458, %v2105, %v2106
  %v2108 = vrot.slane %v157, 1
  %v2109 = vrot.slane %v161, 1
  %v2110 = vsel %vm458, %v2108, %v2109
  %v2111 = vrot.slane %v226, 1
  %v2112 = vrot.slane %v230, 1
  %v2113 = vsel %vm458, %v2111, %v2112
  %v2114 = vrot.slane %v227, 1
  %v2115 = vrot.slane %v231, 1
  %v2116 = vsel %vm458, %v2114, %v2115
  %v2117 = vrot.slane %v228, 1
  %v2118 = vrot.slane %v232, 1
  %v2119 = vsel %vm458, %v2117, %v2118
  %v2120 = vrot.slane %v229, 1
  %v2121 = vrot.slane %v233, 1
  %v2122 = vsel %vm458, %v2120, %v2121
  %v2131 = vpack.c.bf16 %v485, %v473
  %v2132 = vpack.c.bf16 %v488, %v476
  %v2133 = vpack.c.bf16 %v491, %v479
  %v2134 = vpack.c.bf16 %v494, %v482
  %v2135 = vpack.c.bf16 %v509, %v497
  %v2136 = vpack.c.bf16 %v512, %v500
  %v2137 = vpack.c.bf16 %v515, %v503
  %v2138 = vpack.c.bf16 %v518, %v506
  %v2139 = vpack.c.bf16 %v533, %v521
  %v2140 = vpack.c.bf16 %v536, %v524
  %v2141 = vpack.c.bf16 %v539, %v527
  %v2142 = vpack.c.bf16 %v542, %v530
  %v2143 = vpack.c.bf16 %v2101, %v545
  %v2144 = vpack.c.bf16 %v2104, %v548
  %v2145 = vpack.c.bf16 %v2107, %v551
  %v2146 = vpack.c.bf16 %v2110, %v554
  %v2147 = vpack.c.bf16 %v581, %v569
  %v2148 = vpack.c.bf16 %v584, %v572
  %v2149 = vpack.c.bf16 %v587, %v575
  %v2150 = vpack.c.bf16 %v590, %v578
  %v2151 = vpack.c.bf16 %v605, %v593
  %v2152 = vpack.c.bf16 %v608, %v596
  %v2153 = vpack.c.bf16 %v611, %v599
  %v2154 = vpack.c.bf16 %v614, %v602
  %v2155 = vpack.c.bf16 %v629, %v617
  %v2156 = vpack.c.bf16 %v632, %v620
  %v2157 = vpack.c.bf16 %v635, %v623
  %v2158 = vpack.c.bf16 %v638, %v626
  %v2159 = vpack.c.bf16 %v2113, %v641
  %v2160 = vpack.c.bf16 %v2116, %v644
  %v2161 = vpack.c.bf16 %v2119, %v647
  %v2162 = vpack.c.bf16 %v2122, %v650
  %s2163 = scalar_lea.vmem %s1, 768
  %v2164 = vld [vmem:[%s2163] sm:$0xf]
  %v2165 = vld [vmem:[%s2163 + $0x4] sm:$0xf]
  %v2166 = vld [vmem:[%s2163 + $0x8] sm:$0xf]
  %v2167 = vld [vmem:[%s2163 + $0xc] sm:$0xf]
  %v2168 = vld [vmem:[%s2163 + $0x10] sm:$0xf]
  %v2169 = vld [vmem:[%s2163 + $0x14] sm:$0xf]
  %v2170 = vld [vmem:[%s2163 + $0x18] sm:$0xf]
  %v2171 = vld [vmem:[%s2163 + $0x1c] sm:$0xf]
  %v2172 = vld [vmem:[%s2163 + $0x20] sm:$0xf]
  %v2173 = vld [vmem:[%s2163 + $0x24] sm:$0xf]
  %v2174 = vld [vmem:[%s2163 + $0x28] sm:$0xf]
  %v2175 = vld [vmem:[%s2163 + $0x2c] sm:$0xf]
  %v2176 = vld [vmem:[%s2163 + $0x30] sm:$0xf]
  %v2177 = vld [vmem:[%s2163 + $0x34] sm:$0xf]
  %v2178 = vld [vmem:[%s2163 + $0x38] sm:$0xf]
  %v2179 = vld [vmem:[%s2163 + $0x3c] sm:$0xf]
  %v2180 = vld [vmem:[%s2163 + $0x40] sm:$0xf]
  %v2181 = vld [vmem:[%s2163 + $0x44] sm:$0xf]
  %v2182 = vld [vmem:[%s2163 + $0x48] sm:$0xf]
  %v2183 = vld [vmem:[%s2163 + $0x4c] sm:$0xf]
  %v2184 = vld [vmem:[%s2163 + $0x50] sm:$0xf]
  %v2185 = vld [vmem:[%s2163 + $0x54] sm:$0xf]
  %v2186 = vld [vmem:[%s2163 + $0x58] sm:$0xf]
  %v2187 = vld [vmem:[%s2163 + $0x5c] sm:$0xf]
  %v2188 = vld [vmem:[%s2163 + $0x60] sm:$0xf]
  %v2189 = vld [vmem:[%s2163 + $0x64] sm:$0xf]
  %v2190 = vld [vmem:[%s2163 + $0x68] sm:$0xf]
  %v2191 = vld [vmem:[%s2163 + $0x6c] sm:$0xf]
  %v2192 = vld [vmem:[%s2163 + $0x70] sm:$0xf]
  %v2193 = vld [vmem:[%s2163 + $0x74] sm:$0xf]
  %v2194 = vld [vmem:[%s2163 + $0x78] sm:$0xf]
  %v2195 = vld [vmem:[%s2163 + $0x7c] sm:$0xf]
  %v2196 = vld [vmem:[%s2163 + $0x80] sm:$0xf]
  %v2197 = vld [vmem:[%s2163 + $0x84] sm:$0xf]
  %v2198 = vld [vmem:[%s2163 + $0x88] sm:$0xf]
  %v2199 = vld [vmem:[%s2163 + $0x8c] sm:$0xf]
  %v2200 = vld [vmem:[%s2163 + $0x90] sm:$0xf]
  %v2201 = vld [vmem:[%s2163 + $0x94] sm:$0xf]
  %v2202 = vld [vmem:[%s2163 + $0x98] sm:$0xf]
  %v2203 = vld [vmem:[%s2163 + $0x9c] sm:$0xf]
  %v2204 = vld [vmem:[%s2163 + $0xa0] sm:$0xf]
  %v2205 = vld [vmem:[%s2163 + $0xa4] sm:$0xf]
  %v2206 = vld [vmem:[%s2163 + $0xa8] sm:$0xf]
  %v2207 = vld [vmem:[%s2163 + $0xac] sm:$0xf]
  %v2208 = vld [vmem:[%s2163 + $0xb0] sm:$0xf]
  %v2209 = vld [vmem:[%s2163 + $0xb4] sm:$0xf]
  %v2210 = vld [vmem:[%s2163 + $0xb8] sm:$0xf]
  %v2211 = vld [vmem:[%s2163 + $0xbc] sm:$0xf]
  %v2212 = vld [vmem:[%s2163 + $0xc0] sm:$0xf]
  %v2213 = vld [vmem:[%s2163 + $0xc4] sm:$0xf]
  %v2214 = vld [vmem:[%s2163 + $0xc8] sm:$0xf]
  %v2215 = vld [vmem:[%s2163 + $0xcc] sm:$0xf]
  %v2216 = vld [vmem:[%s2163 + $0xd0] sm:$0xf]
  %v2217 = vld [vmem:[%s2163 + $0xd4] sm:$0xf]
  %v2218 = vld [vmem:[%s2163 + $0xd8] sm:$0xf]
  %v2219 = vld [vmem:[%s2163 + $0xdc] sm:$0xf]
  %v2220 = vld [vmem:[%s2163 + $0xe0] sm:$0xf]
  %v2221 = vld [vmem:[%s2163 + $0xe4] sm:$0xf]
  %v2222 = vld [vmem:[%s2163 + $0xe8] sm:$0xf]
  %v2223 = vld [vmem:[%s2163 + $0xec] sm:$0xf]
  %v2224 = vld [vmem:[%s2163 + $0xf0] sm:$0xf]
  %v2225 = vld [vmem:[%s2163 + $0xf4] sm:$0xf]
  %v2226 = vld [vmem:[%s2163 + $0xf8] sm:$0xf]
  %v2227 = vld [vmem:[%s2163 + $0xfc] sm:$0xf]
  %v2292 = vunpack.c.l.b16 %v2164
  %v2293 = vunpack.c.l.b16 %v2165
  %v2294 = vunpack.c.l.b16 %v2166
  %v2295 = vunpack.c.l.b16 %v2167
  %v2296 = vunpack.c.l.b16 %v2168
  %v2297 = vunpack.c.l.b16 %v2169
  %v2298 = vunpack.c.l.b16 %v2170
  %v2299 = vunpack.c.l.b16 %v2171
  %v2300 = vunpack.c.l.b16 %v2172
  %v2301 = vunpack.c.l.b16 %v2173
  %v2302 = vunpack.c.l.b16 %v2174
  %v2303 = vunpack.c.l.b16 %v2175
  %v2304 = vunpack.c.l.b16 %v2176
  %v2305 = vunpack.c.l.b16 %v2177
  %v2306 = vunpack.c.l.b16 %v2178
  %v2307 = vunpack.c.l.b16 %v2179
  %v2308 = vunpack.c.l.b16 %v2180
  %v2309 = vunpack.c.l.b16 %v2181
  %v2310 = vunpack.c.l.b16 %v2182
  %v2311 = vunpack.c.l.b16 %v2183
  %v2312 = vunpack.c.l.b16 %v2184
  %v2313 = vunpack.c.l.b16 %v2185
  %v2314 = vunpack.c.l.b16 %v2186
  %v2315 = vunpack.c.l.b16 %v2187
  %v2316 = vunpack.c.l.b16 %v2188
  %v2317 = vunpack.c.l.b16 %v2189
  %v2318 = vunpack.c.l.b16 %v2190
  %v2319 = vunpack.c.l.b16 %v2191
  %v2320 = vunpack.c.l.b16 %v2192
  %v2321 = vunpack.c.l.b16 %v2193
  %v2322 = vunpack.c.l.b16 %v2194
  %v2323 = vunpack.c.l.b16 %v2195
  %v2324 = vunpack.c.l.b16 %v2196
  %v2325 = vunpack.c.l.b16 %v2197
  %v2326 = vunpack.c.l.b16 %v2198
  %v2327 = vunpack.c.l.b16 %v2199
  %v2328 = vunpack.c.l.b16 %v2200
  %v2329 = vunpack.c.l.b16 %v2201
  %v2330 = vunpack.c.l.b16 %v2202
  %v2331 = vunpack.c.l.b16 %v2203
  %v2332 = vunpack.c.l.b16 %v2204
  %v2333 = vunpack.c.l.b16 %v2205
  %v2334 = vunpack.c.l.b16 %v2206
  %v2335 = vunpack.c.l.b16 %v2207
  %v2336 = vunpack.c.l.b16 %v2208
  %v2337 = vunpack.c.l.b16 %v2209
  %v2338 = vunpack.c.l.b16 %v2210
  %v2339 = vunpack.c.l.b16 %v2211
  %v2340 = vunpack.c.l.b16 %v2212
  %v2341 = vunpack.c.l.b16 %v2213
  %v2342 = vunpack.c.l.b16 %v2214
  %v2343 = vunpack.c.l.b16 %v2215
  %v2344 = vunpack.c.l.b16 %v2216
  %v2345 = vunpack.c.l.b16 %v2217
  %v2346 = vunpack.c.l.b16 %v2218
  %v2347 = vunpack.c.l.b16 %v2219
  %v2348 = vunpack.c.l.b16 %v2220
  %v2349 = vunpack.c.l.b16 %v2221
  %v2350 = vunpack.c.l.b16 %v2222
  %v2351 = vunpack.c.l.b16 %v2223
  %v2352 = vunpack.c.l.b16 %v2224
  %v2353 = vunpack.c.l.b16 %v2225
  %v2354 = vunpack.c.l.b16 %v2226
  %v2355 = vunpack.c.l.b16 %v2227
  %v2356 = vpack.c.b16 %v2293, %v2292
  %v2357 = vpack.c.b16 %v2295, %v2294
  %v2358 = vpack.c.b16 %v2297, %v2296
  %v2359 = vpack.c.b16 %v2299, %v2298
  %v2360 = vpack.c.b16 %v2301, %v2300
  %v2361 = vpack.c.b16 %v2303, %v2302
  %v2362 = vpack.c.b16 %v2305, %v2304
  %v2363 = vpack.c.b16 %v2307, %v2306
  %v2364 = vpack.c.b16 %v2309, %v2308
  %v2365 = vpack.c.b16 %v2311, %v2310
  %v2366 = vpack.c.b16 %v2313, %v2312
  %v2367 = vpack.c.b16 %v2315, %v2314
  %v2368 = vpack.c.b16 %v2317, %v2316
  %v2369 = vpack.c.b16 %v2319, %v2318
  %v2370 = vpack.c.b16 %v2321, %v2320
  %v2371 = vpack.c.b16 %v2323, %v2322
  %v2372 = vpack.c.b16 %v2325, %v2324
  %v2373 = vpack.c.b16 %v2327, %v2326
  %v2374 = vpack.c.b16 %v2329, %v2328
  %v2375 = vpack.c.b16 %v2331, %v2330
  %v2376 = vpack.c.b16 %v2333, %v2332
  %v2377 = vpack.c.b16 %v2335, %v2334
  %v2378 = vpack.c.b16 %v2337, %v2336
  %v2379 = vpack.c.b16 %v2339, %v2338
  %v2380 = vpack.c.b16 %v2341, %v2340
  %v2381 = vpack.c.b16 %v2343, %v2342
  %v2382 = vpack.c.b16 %v2345, %v2344
  %v2383 = vpack.c.b16 %v2347, %v2346
  %v2384 = vpack.c.b16 %v2349, %v2348
  %v2385 = vpack.c.b16 %v2351, %v2350
  %v2386 = vpack.c.b16 %v2353, %v2352
  %v2387 = vpack.c.b16 %v2355, %v2354
  %2420 = vmatprep.subr.bf16.mxu0 0
  %2421 = vmatpush1.bf16.msra.mxu0 %v2356
  %2422 = vmatprep.subr.bf16.mxu0 0
  %2423 = vmatpush1.bf16.msra.mxu0 %v2357
  %2424 = vmatprep.subr.bf16.mxu0 0
  %2425 = vmatpush1.bf16.msra.mxu0 %v2358
  %2426 = vmatprep.subr.bf16.mxu0 0
  %2427 = vmatpush1.bf16.msra.mxu0 %v2359
  %2428 = vmatprep.subr.bf16.mxu0 0
  %2429 = vmatpush1.bf16.msra.mxu0 %v2360
  %2430 = vmatprep.subr.bf16.mxu0 0
  %2431 = vmatpush1.bf16.msra.mxu0 %v2361
  %2432 = vmatprep.subr.bf16.mxu0 0
  %2433 = vmatpush1.bf16.msra.mxu0 %v2362
  %2434 = vmatprep.subr.bf16.mxu0 0
  %2435 = vmatpush1.bf16.msra.mxu0 %v2363
  %2436 = vmatprep.subr.bf16.mxu0 0
  %2437 = vmatpush1.bf16.msra.mxu0 %v2364
  %2438 = vmatprep.subr.bf16.mxu0 0
  %2439 = vmatpush1.bf16.msra.mxu0 %v2365
  %2440 = vmatprep.subr.bf16.mxu0 0
  %2441 = vmatpush1.bf16.msra.mxu0 %v2366
  %2442 = vmatprep.subr.bf16.mxu0 0
  %2443 = vmatpush1.bf16.msra.mxu0 %v2367
  %2444 = vmatprep.subr.bf16.mxu0 0
  %2445 = vmatpush1.bf16.msra.mxu0 %v2368
  %2446 = vmatprep.subr.bf16.mxu0 0
  %2447 = vmatpush1.bf16.msra.mxu0 %v2369
  %2448 = vmatprep.subr.bf16.mxu0 0
  %2449 = vmatpush1.bf16.msra.mxu0 %v2370
  %2450 = vmatprep.subr.bf16.mxu0 0
  %2451 = vmatpush1.bf16.msra.mxu0 %v2371
  %2452 = vmatprep.mubr.bf16.mxu0 %v2132
  %2453 = vmatmul.mubr.bf16.gmra.mrb[0].mxu0 %v2131
  %v2454 = vpop.f32.mrb[0].mxu0
  %v2455 = vadd.f32 0.0, %v2454
  %v2456 = vpop.f32.mrb[0].mxu0
  %v2457 = vpop.f32.mrb[0].mxu0
  %v2458 = vadd.f32 0.0, %v2457
  %v2459 = vpop.f32.mrb[0].mxu0
  %2460 = vmatprep.mubr.bf16.mxu0 %v2136
  %2461 = vmatmul.mubr.bf16.gmra.mrb[0].mxu0 %v2135
  %v2462 = vpop.f32.mrb[0].mxu0
  %v2463 = vadd.f32 0.0, %v2462
  %v2464 = vpop.f32.mrb[0].mxu0
  %v2465 = vpop.f32.mrb[0].mxu0
  %v2466 = vadd.f32 0.0, %v2465
  %v2467 = vpop.f32.mrb[0].mxu0
  %2468 = vmatprep.mubr.bf16.mxu0 %v2140
  %2469 = vmatmul.mubr.bf16.gmra.mrb[0].mxu0 %v2139
  %v2470 = vpop.f32.mrb[0].mxu0
  %v2471 = vadd.f32 0.0, %v2470
  %v2472 = vpop.f32.mrb[0].mxu0
  %v2473 = vpop.f32.mrb[0].mxu0
  %v2474 = vadd.f32 0.0, %v2473
  %v2475 = vpop.f32.mrb[0].mxu0
  %2476 = vmatprep.mubr.bf16.mxu0 %v2144
  %2477 = vmatmul.mubr.bf16.gmra.mrb[0].mxu0 %v2143
  %v2478 = vpop.f32.mrb[0].mxu0
  %v2479 = vadd.f32 0.0, %v2478
  %v2480 = vpop.f32.mrb[0].mxu0
  %v2481 = vpop.f32.mrb[0].mxu0
  %v2482 = vadd.f32 0.0, %v2481
  %v2483 = vpop.f32.mrb[0].mxu0
  %2484 = vmatprep.mubr.bf16.mxu0 %v2148
  %2485 = vmatmul.mubr.bf16.gmra.mrb[0].mxu0 %v2147
  %v2486 = vpop.f32.mrb[0].mxu0
  %v2487 = vadd.f32 0.0, %v2486
  %v2488 = vpop.f32.mrb[0].mxu0
  %v2489 = vpop.f32.mrb[0].mxu0
  %v2490 = vadd.f32 0.0, %v2489
  %v2491 = vpop.f32.mrb[0].mxu0
  %2492 = vmatprep.mubr.bf16.mxu0 %v2152
  %2493 = vmatmul.mubr.bf16.gmra.mrb[0].mxu0 %v2151
  %v2494 = vpop.f32.mrb[0].mxu0
  %v2495 = vadd.f32 0.0, %v2494
  %v2496 = vpop.f32.mrb[0].mxu0
  %v2497 = vpop.f32.mrb[0].mxu0
  %v2498 = vadd.f32 0.0, %v2497
  %v2499 = vpop.f32.mrb[0].mxu0
  %2500 = vmatprep.mubr.bf16.mxu0 %v2156
  %2501 = vmatmul.mubr.bf16.gmra.mrb[0].mxu0 %v2155
  %v2502 = vpop.f32.mrb[0].mxu0
  %v2503 = vadd.f32 0.0, %v2502
  %v2504 = vpop.f32.mrb[0].mxu0
  %v2505 = vpop.f32.mrb[0].mxu0
  %v2506 = vadd.f32 0.0, %v2505
  %v2507 = vpop.f32.mrb[0].mxu0
  %2508 = vmatprep.mubr.bf16.mxu0 %v2160
  %2509 = vmatmul.mubr.bf16.gmra.mrb[0].mxu0 %v2159
  %v2510 = vpop.f32.mrb[0].mxu0
  %v2511 = vadd.f32 0.0, %v2510
  %v2512 = vpop.f32.mrb[0].mxu0
  %v2513 = vpop.f32.mrb[0].mxu0
  %v2514 = vadd.f32 0.0, %v2513
  %v2515 = vpop.f32.mrb[0].mxu0
  %2516 = vdwg.mxu0
  %2517 = vmatprep.subr.bf16.mxu0 0
  %2518 = vmatpush1.bf16.msra.mxu0 %v2372
  %2519 = vmatprep.subr.bf16.mxu0 0
  %2520 = vmatpush1.bf16.msra.mxu0 %v2373
  %2521 = vmatprep.subr.bf16.mxu0 0
  %2522 = vmatpush1.bf16.msra.mxu0 %v2374
  %2523 = vmatprep.subr.bf16.mxu0 0
  %2524 = vmatpush1.bf16.msra.mxu0 %v2375
  %2525 = vmatprep.subr.bf16.mxu0 0
  %2526 = vmatpush1.bf16.msra.mxu0 %v2376
  %2527 = vmatprep.subr.bf16.mxu0 0
  %2528 = vmatpush1.bf16.msra.mxu0 %v2377
  %2529 = vmatprep.subr.bf16.mxu0 0
  %2530 = vmatpush1.bf16.msra.mxu0 %v2378
  %2531 = vmatprep.subr.bf16.mxu0 0
  %2532 = vmatpush1.bf16.msra.mxu0 %v2379
  %2533 = vmatprep.subr.bf16.mxu0 0
  %2534 = vmatpush1.bf16.msra.mxu0 %v2380
  %2535 = vmatprep.subr.bf16.mxu0 0
  %2536 = vmatpush1.bf16.msra.mxu0 %v2381
  %2537 = vmatprep.subr.bf16.mxu0 0
  %2538 = vmatpush1.bf16.msra.mxu0 %v2382
  %2539 = vmatprep.subr.bf16.mxu0 0
  %2540 = vmatpush1.bf16.msra.mxu0 %v2383
  %2541 = vmatprep.subr.bf16.mxu0 0
  %2542 = vmatpush1.bf16.msra.mxu0 %v2384
  %2543 = vmatprep.subr.bf16.mxu0 0
  %2544 = vmatpush1.bf16.msra.mxu0 %v2385
  %2545 = vmatprep.subr.bf16.mxu0 0
  %2546 = vmatpush1.bf16.msra.mxu0 %v2386
  %2547 = vmatprep.subr.bf16.mxu0 0
  %2548 = vmatpush1.bf16.msra.mxu0 %v2387
  %2549 = vmatprep.mubr.bf16.mxu0 %v2134
  %2550 = vmatmul.mubr.bf16.gmra.mrb[0].mxu0 %v2133
  %v2551 = vpop.f32.mrb[0].mxu0
  %v2552 = vadd.f32 %v2455, %v2551
  %v2553 = vpop.f32.mrb[0].mxu0
  %v2554 = vpop.f32.mrb[0].mxu0
  %v2555 = vadd.f32 %v2458, %v2554
  %v2556 = vpop.f32.mrb[0].mxu0
  %2557 = vmatprep.mubr.bf16.mxu0 %v2138
  %2558 = vmatmul.mubr.bf16.gmra.mrb[0].mxu0 %v2137
  %v2559 = vpop.f32.mrb[0].mxu0
  %v2560 = vadd.f32 %v2463, %v2559
  %v2561 = vpop.f32.mrb[0].mxu0
  %v2562 = vpop.f32.mrb[0].mxu0
  %v2563 = vadd.f32 %v2466, %v2562
  %v2564 = vpop.f32.mrb[0].mxu0
  %2565 = vmatprep.mubr.bf16.mxu0 %v2142
  %2566 = vmatmul.mubr.bf16.gmra.mrb[0].mxu0 %v2141
  %v2567 = vpop.f32.mrb[0].mxu0
  %v2568 = vadd.f32 %v2471, %v2567
  %v2569 = vpop.f32.mrb[0].mxu0
  %v2570 = vpop.f32.mrb[0].mxu0
  %v2571 = vadd.f32 %v2474, %v2570
  %v2572 = vpop.f32.mrb[0].mxu0
  %2573 = vmatprep.mubr.bf16.mxu0 %v2146
  %2574 = vmatmul.mubr.bf16.gmra.mrb[0].mxu0 %v2145
  %v2575 = vpop.f32.mrb[0].mxu0
  %v2576 = vadd.f32 %v2479, %v2575
  %v2577 = vpop.f32.mrb[0].mxu0
  %v2578 = vpop.f32.mrb[0].mxu0
  %v2579 = vadd.f32 %v2482, %v2578
  %v2580 = vpop.f32.mrb[0].mxu0
  %2581 = vmatprep.mubr.bf16.mxu0 %v2150
  %2582 = vmatmul.mubr.bf16.gmra.mrb[0].mxu0 %v2149
  %v2583 = vpop.f32.mrb[0].mxu0
  %v2584 = vadd.f32 %v2487, %v2583
  %v2585 = vpop.f32.mrb[0].mxu0
  %v2586 = vpop.f32.mrb[0].mxu0
  %v2587 = vadd.f32 %v2490, %v2586
  %v2588 = vpop.f32.mrb[0].mxu0
  %2589 = vmatprep.mubr.bf16.mxu0 %v2154
  %2590 = vmatmul.mubr.bf16.gmra.mrb[0].mxu0 %v2153
  %v2591 = vpop.f32.mrb[0].mxu0
  %v2592 = vadd.f32 %v2495, %v2591
  %v2593 = vpop.f32.mrb[0].mxu0
  %v2594 = vpop.f32.mrb[0].mxu0
  %v2595 = vadd.f32 %v2498, %v2594
  %v2596 = vpop.f32.mrb[0].mxu0
  %2597 = vmatprep.mubr.bf16.mxu0 %v2158
  %2598 = vmatmul.mubr.bf16.gmra.mrb[0].mxu0 %v2157
  %v2599 = vpop.f32.mrb[0].mxu0
  %v2600 = vadd.f32 %v2503, %v2599
  %v2601 = vpop.f32.mrb[0].mxu0
  %v2602 = vpop.f32.mrb[0].mxu0
  %v2603 = vadd.f32 %v2506, %v2602
  %v2604 = vpop.f32.mrb[0].mxu0
  %2605 = vmatprep.mubr.bf16.mxu0 %v2162
  %2606 = vmatmul.mubr.bf16.gmra.mrb[0].mxu0 %v2161
  %v2607 = vpop.f32.mrb[0].mxu0
  %v2608 = vadd.f32 %v2511, %v2607
  %v2609 = vpop.f32.mrb[0].mxu0
  %v2610 = vpop.f32.mrb[0].mxu0
  %v2611 = vadd.f32 %v2514, %v2610
  %v2612 = vpop.f32.mrb[0].mxu0
  %2613 = vdwg.mxu0
  %v2614 = vadd.f32 %v2067, %v2552
  %v2615 = vadd.f32 %v2068, %v2555
  %v2616 = vadd.f32 %v2069, %v2560
  %v2617 = vadd.f32 %v2070, %v2563
  %v2618 = vadd.f32 %v2071, %v2568
  %v2619 = vadd.f32 %v2072, %v2571
  %v2620 = vadd.f32 %v2073, %v2576
  %v2621 = vadd.f32 %v2074, %v2579
  %v2622 = vadd.f32 %v2075, %v2584
  %v2623 = vadd.f32 %v2076, %v2587
  %v2624 = vadd.f32 %v2077, %v2592
  %v2625 = vadd.f32 %v2078, %v2595
  %v2626 = vadd.f32 %v2079, %v2600
  %v2627 = vadd.f32 %v2080, %v2603
  %v2628 = vadd.f32 %v2081, %v2608
  %v2629 = vadd.f32 %v2082, %v2611
  %v2630 = vadd.f32 %v2614, %v2615
  %v2631 = vadd.f32 %v2630, %v2616
  %v2632 = vadd.f32 %v2631, %v2617
  %v2633 = vadd.f32 %v2632, %v2618
  %v2634 = vadd.f32 %v2633, %v2619
  %v2635 = vadd.f32 %v2634, %v2620
  %v2636 = vadd.f32 %v2635, %v2621
  %v2637 = vadd.f32 %v2636, %v2622
  %v2638 = vadd.f32 %v2637, %v2623
  %v2639 = vadd.f32 %v2638, %v2624
  %v2640 = vadd.f32 %v2639, %v2625
  %v2641 = vadd.f32 %v2640, %v2626
  %v2642 = vadd.f32 %v2641, %v2627
  %v2643 = vadd.f32 %v2642, %v2628
  %v2644 = vadd.f32 %v2643, %v2629
  %v2645 = vrot.slane %v2644, 4
  %v2646 = vadd.f32 %v2644, %v2645
  %v2647 = vrot.slane %v2646, 2
  %v2648 = vadd.f32 %v2646, %v2647
  %v2649 = vrot.slane %v2648, 1
  %v2650 = vadd.f32 %v2648, %v2649
  %v2651 = vmul.f32 %v2650, 0.0078125
  %v2652 = vsub.f32 %v2614, %v2651
  %v2653 = vsub.f32 %v2615, %v2651
  %v2654 = vsub.f32 %v2616, %v2651
  %v2655 = vsub.f32 %v2617, %v2651
  %v2656 = vsub.f32 %v2618, %v2651
  %v2657 = vsub.f32 %v2619, %v2651
  %v2658 = vsub.f32 %v2620, %v2651
  %v2659 = vsub.f32 %v2621, %v2651
  %v2660 = vsub.f32 %v2622, %v2651
  %v2661 = vsub.f32 %v2623, %v2651
  %v2662 = vsub.f32 %v2624, %v2651
  %v2663 = vsub.f32 %v2625, %v2651
  %v2664 = vsub.f32 %v2626, %v2651
  %v2665 = vsub.f32 %v2627, %v2651
  %v2666 = vsub.f32 %v2628, %v2651
  %v2667 = vsub.f32 %v2629, %v2651
  %v2668 = vmul.f32 %v2652, %v2652
  %v2669 = vmul.f32 %v2653, %v2653
  %v2670 = vmul.f32 %v2654, %v2654
  %v2671 = vmul.f32 %v2655, %v2655
  %v2672 = vmul.f32 %v2656, %v2656
  %v2673 = vmul.f32 %v2657, %v2657
  %v2674 = vmul.f32 %v2658, %v2658
  %v2675 = vmul.f32 %v2659, %v2659
  %v2676 = vmul.f32 %v2660, %v2660
  %v2677 = vmul.f32 %v2661, %v2661
  %v2678 = vmul.f32 %v2662, %v2662
  %v2679 = vmul.f32 %v2663, %v2663
  %v2680 = vmul.f32 %v2664, %v2664
  %v2681 = vmul.f32 %v2665, %v2665
  %v2682 = vmul.f32 %v2666, %v2666
  %v2683 = vmul.f32 %v2667, %v2667
  %v2684 = vadd.f32 %v2668, %v2669
  %v2685 = vadd.f32 %v2684, %v2670
  %v2686 = vadd.f32 %v2685, %v2671
  %v2687 = vadd.f32 %v2686, %v2672
  %v2688 = vadd.f32 %v2687, %v2673
  %v2689 = vadd.f32 %v2688, %v2674
  %v2690 = vadd.f32 %v2689, %v2675
  %v2691 = vadd.f32 %v2690, %v2676
  %v2692 = vadd.f32 %v2691, %v2677
  %v2693 = vadd.f32 %v2692, %v2678
  %v2694 = vadd.f32 %v2693, %v2679
  %v2695 = vadd.f32 %v2694, %v2680
  %v2696 = vadd.f32 %v2695, %v2681
  %v2697 = vadd.f32 %v2696, %v2682
  %v2698 = vadd.f32 %v2697, %v2683
  %v2699 = vrot.slane %v2698, 4
  %v2700 = vadd.f32 %v2698, %v2699
  %v2701 = vrot.slane %v2700, 2
  %v2702 = vadd.f32 %v2700, %v2701
  %v2703 = vrot.slane %v2702, 1
  %v2704 = vadd.f32 %v2702, %v2703
  %v2705 = vmul.f32 %v2704, 0.0078125
  %v2706 = vadd.f32 %v2705, 1e-05
  %v2707 = vrsqrt.pop %v2706
  %v2708 = vmul.f32 %v2652, %v2707
  %v2709 = vmul.f32 %v2653, %v2707
  %v2710 = vmul.f32 %v2654, %v2707
  %v2711 = vmul.f32 %v2655, %v2707
  %v2712 = vmul.f32 %v2656, %v2707
  %v2713 = vmul.f32 %v2657, %v2707
  %v2714 = vmul.f32 %v2658, %v2707
  %v2715 = vmul.f32 %v2659, %v2707
  %v2716 = vmul.f32 %v2660, %v2707
  %v2717 = vmul.f32 %v2661, %v2707
  %v2718 = vmul.f32 %v2662, %v2707
  %v2719 = vmul.f32 %v2663, %v2707
  %v2720 = vmul.f32 %v2664, %v2707
  %v2721 = vmul.f32 %v2665, %v2707
  %v2722 = vmul.f32 %v2666, %v2707
  %v2723 = vmul.f32 %v2667, %v2707
  %v2724 = vld [vmem:[%s2] sm:$0x1]
  %v2726 = vlaneseq
  %v2727 = vshrl.u32 %v2726, 7
  %v2728 = vsub.s32 0, %v2727
  %v2729 = vrot.slane %v2724, %v2728
  %v2731 = vmul.f32 %v2708, %v2729
  %v2732 = vmul.f32 %v2709, %v2729
  %v2733 = vmul.f32 %v2710, %v2729
  %v2734 = vmul.f32 %v2711, %v2729
  %v2735 = vmul.f32 %v2712, %v2729
  %v2736 = vmul.f32 %v2713, %v2729
  %v2737 = vmul.f32 %v2714, %v2729
  %v2738 = vmul.f32 %v2715, %v2729
  %v2739 = vmul.f32 %v2716, %v2729
  %v2740 = vmul.f32 %v2717, %v2729
  %v2741 = vmul.f32 %v2718, %v2729
  %v2742 = vmul.f32 %v2719, %v2729
  %v2743 = vmul.f32 %v2720, %v2729
  %v2744 = vmul.f32 %v2721, %v2729
  %v2745 = vmul.f32 %v2722, %v2729
  %v2746 = vmul.f32 %v2723, %v2729
  %v2747 = vld [vmem:[%s3] sm:$0x1]
  %v2749 = vlaneseq
  %v2750 = vshrl.u32 %v2749, 7
  %v2751 = vsub.s32 0, %v2750
  %v2752 = vrot.slane %v2747, %v2751
  %v2754 = vadd.f32 %v2731, %v2752
  %v2755 = vadd.f32 %v2732, %v2752
  %v2756 = vadd.f32 %v2733, %v2752
  %v2757 = vadd.f32 %v2734, %v2752
  %v2758 = vadd.f32 %v2735, %v2752
  %v2759 = vadd.f32 %v2736, %v2752
  %v2760 = vadd.f32 %v2737, %v2752
  %v2761 = vadd.f32 %v2738, %v2752
  %v2762 = vadd.f32 %v2739, %v2752
  %v2763 = vadd.f32 %v2740, %v2752
  %v2764 = vadd.f32 %v2741, %v2752
  %v2765 = vadd.f32 %v2742, %v2752
  %v2766 = vadd.f32 %v2743, %v2752
  %v2767 = vadd.f32 %v2744, %v2752
  %v2768 = vadd.f32 %v2745, %v2752
  %v2769 = vadd.f32 %v2746, %v2752
  %vm2770 = vcmp.gt.f32.partialorder %v2754, 0.0
  %vm2771 = vcmp.gt.f32.partialorder %v2755, 0.0
  %vm2772 = vcmp.gt.f32.partialorder %v2756, 0.0
  %vm2773 = vcmp.gt.f32.partialorder %v2757, 0.0
  %vm2774 = vcmp.gt.f32.partialorder %v2758, 0.0
  %vm2775 = vcmp.gt.f32.partialorder %v2759, 0.0
  %vm2776 = vcmp.gt.f32.partialorder %v2760, 0.0
  %vm2777 = vcmp.gt.f32.partialorder %v2761, 0.0
  %vm2778 = vcmp.gt.f32.partialorder %v2762, 0.0
  %vm2779 = vcmp.gt.f32.partialorder %v2763, 0.0
  %vm2780 = vcmp.gt.f32.partialorder %v2764, 0.0
  %vm2781 = vcmp.gt.f32.partialorder %v2765, 0.0
  %vm2782 = vcmp.gt.f32.partialorder %v2766, 0.0
  %vm2783 = vcmp.gt.f32.partialorder %v2767, 0.0
  %vm2784 = vcmp.gt.f32.partialorder %v2768, 0.0
  %vm2785 = vcmp.gt.f32.partialorder %v2769, 0.0
  %v2786 = vmul.f32 %v2754, 0.2
  %v2787 = vmul.f32 %v2755, 0.2
  %v2788 = vmul.f32 %v2756, 0.2
  %v2789 = vmul.f32 %v2757, 0.2
  %v2790 = vmul.f32 %v2758, 0.2
  %v2791 = vmul.f32 %v2759, 0.2
  %v2792 = vmul.f32 %v2760, 0.2
  %v2793 = vmul.f32 %v2761, 0.2
  %v2794 = vmul.f32 %v2762, 0.2
  %v2795 = vmul.f32 %v2763, 0.2
  %v2796 = vmul.f32 %v2764, 0.2
  %v2797 = vmul.f32 %v2765, 0.2
  %v2798 = vmul.f32 %v2766, 0.2
  %v2799 = vmul.f32 %v2767, 0.2
  %v2800 = vmul.f32 %v2768, 0.2
  %v2801 = vmul.f32 %v2769, 0.2
  %v2802 = vsel %vm2770, %v2754, %v2786
  %v2803 = vsel %vm2771, %v2755, %v2787
  %v2804 = vsel %vm2772, %v2756, %v2788
  %v2805 = vsel %vm2773, %v2757, %v2789
  %v2806 = vsel %vm2774, %v2758, %v2790
  %v2807 = vsel %vm2775, %v2759, %v2791
  %v2808 = vsel %vm2776, %v2760, %v2792
  %v2809 = vsel %vm2777, %v2761, %v2793
  %v2810 = vsel %vm2778, %v2762, %v2794
  %v2811 = vsel %vm2779, %v2763, %v2795
  %v2812 = vsel %vm2780, %v2764, %v2796
  %v2813 = vsel %vm2781, %v2765, %v2797
  %v2814 = vsel %vm2782, %v2766, %v2798
  %v2815 = vsel %vm2783, %v2767, %v2799
  %v2816 = vsel %vm2784, %v2768, %v2800
  %v2817 = vsel %vm2785, %v2769, %v2801
  %v2818 = vpack.c.bf16 %v2803, %v2802
  %v2819 = vpack.c.bf16 %v2805, %v2804
  %v2820 = vpack.c.bf16 %v2807, %v2806
  %v2821 = vpack.c.bf16 %v2809, %v2808
  %v2822 = vpack.c.bf16 %v2811, %v2810
  %v2823 = vpack.c.bf16 %v2813, %v2812
  %v2824 = vpack.c.bf16 %v2815, %v2814
  %v2825 = vpack.c.bf16 %v2817, %v2816
  %v2834 = vunpack.c.l.b16 %v2818
  %v2835 = vunpack.c.h.b16 %v2818
  %v2836 = vunpack.c.l.b16 %v2819
  %v2837 = vunpack.c.h.b16 %v2819
  %v2838 = vunpack.c.l.b16 %v2820
  %v2839 = vunpack.c.h.b16 %v2820
  %v2840 = vunpack.c.l.b16 %v2821
  %v2841 = vunpack.c.h.b16 %v2821
  %v2842 = vunpack.c.l.b16 %v2822
  %v2843 = vunpack.c.h.b16 %v2822
  %v2844 = vunpack.c.l.b16 %v2823
  %v2845 = vunpack.c.h.b16 %v2823
  %v2846 = vunpack.c.l.b16 %v2824
  %v2847 = vunpack.c.h.b16 %v2824
  %v2848 = vunpack.c.l.b16 %v2825
  %v2849 = vunpack.c.h.b16 %v2825
  %v2850 = vpack.c.b16 %v2834, %v2834
  %v2851 = vpack.c.b16 %v2835, %v2835
  %v2852 = vpack.c.b16 %v2836, %v2836
  %v2853 = vpack.c.b16 %v2837, %v2837
  %v2854 = vpack.c.b16 %v2838, %v2838
  %v2855 = vpack.c.b16 %v2839, %v2839
  %v2856 = vpack.c.b16 %v2840, %v2840
  %v2857 = vpack.c.b16 %v2841, %v2841
  %v2858 = vpack.c.b16 %v2842, %v2842
  %v2859 = vpack.c.b16 %v2843, %v2843
  %v2860 = vpack.c.b16 %v2844, %v2844
  %v2861 = vpack.c.b16 %v2845, %v2845
  %v2862 = vpack.c.b16 %v2846, %v2846
  %v2863 = vpack.c.b16 %v2847, %v2847
  %v2864 = vpack.c.b16 %v2848, %v2848
  %v2865 = vpack.c.b16 %v2849, %v2849
  %2882 = vst [vmem:[%s4] sm:$0xf] %v2850
  %2883 = vst [vmem:[%s4 + $0x4] sm:$0xf] %v2851
  %2884 = vst [vmem:[%s4 + $0x8] sm:$0xf] %v2852
  %2885 = vst [vmem:[%s4 + $0xc] sm:$0xf] %v2853
  %2886 = vst [vmem:[%s4 + $0x10] sm:$0xf] %v2854
  %2887 = vst [vmem:[%s4 + $0x14] sm:$0xf] %v2855
  %2888 = vst [vmem:[%s4 + $0x18] sm:$0xf] %v2856
  %2889 = vst [vmem:[%s4 + $0x1c] sm:$0xf] %v2857
  %2890 = vst [vmem:[%s4 + $0x20] sm:$0xf] %v2858
  %2891 = vst [vmem:[%s4 + $0x24] sm:$0xf] %v2859
  %2892 = vst [vmem:[%s4 + $0x28] sm:$0xf] %v2860
  %2893 = vst [vmem:[%s4 + $0x2c] sm:$0xf] %v2861
  %2894 = vst [vmem:[%s4 + $0x30] sm:$0xf] %v2862
  %2895 = vst [vmem:[%s4 + $0x34] sm:$0xf] %v2863
  %2896 = vst [vmem:[%s4 + $0x38] sm:$0xf] %v2864
  %2897 = vst [vmem:[%s4 + $0x3c] sm:$0xf] %v2865
  // Predicated region
  $region18: #{vq_discriminator_forward.5} parent=0 // pred_check
    _
  $region19: #{vq_discriminator_forward.5} parent=0 // pred_check_branch
    %2899 = sbr.rel (0) target = $region21
  $region20: #{vq_discriminator_forward.5} parent=0 // pred_region
    _
  $region21: #{vq_discriminator_forward.5} parent=0 // pred_fallthru
    _
  // Predicated region
  $region22: #{vq_discriminator_forward.5} parent=0 // pred_check
    _
  $region23: #{vq_discriminator_forward.5} parent=0 // pred_check_branch
    %2901 = sbr.rel (0) target = $region25
  $region24: #{vq_discriminator_forward.5} parent=0 // pred_region
    _
  $region25: #{vq_discriminator_forward.5} parent=0 // pred_fallthru
    _

// kernel: vq_discriminator_forward.7
$region0: #{vq_discriminator_forward.7}
  #allocation0 [shape = 'u32[]', space=smem, size = 0x4, offset = 0x4, fixed_abs, tag = 'smem constant byte address 0x4 - core index']
  #allocation1 [shape = 'u32[144,128]{1,0:T(1,128)}', space=vmem, size = 0x12000, scoped, tag = 'internal scratch']
  #allocation2 [shape = 'f32[1,1]{1,0:T(1,128)S(1)}', space=vmem, size = 0x200, scoped, tag = 'scoped memory for vq_discriminator_forward.7']
  %s0 = inlined_call_operand.vmem [shape: bf16[32,1152], index: 0, kind: input, shape index: {}]
  %s1 = inlined_call_operand.vmem [shape: f32[1,1152], index: 1, kind: input, shape index: {}]
  %s2 = inlined_call_operand.<no memory space> [shape: f32[1,1], index: 2, kind: input, shape index: {}]
  %s3 = inlined_call_operand.vmem [shape: f32[32,1], index: 3, kind: output, shape index: {}]
  %s4 = sld [smem:[#allocation0]]
  $region22: #{vq_discriminator_forward.7} parent=0
    _
  %s6 = ssub.s32 1, %s4
  %s7 = scalar_select 0, %s6, %s4
  %v8 = vstv %s2
  %9 = vst [vmem:[#allocation2] sm:$0x1] %v8
  // Predicated region
  $region2: #{vq_discriminator_forward.7} parent=0 // pred_check
    _
  $region3: #{vq_discriminator_forward.7} parent=0 // pred_check_branch
    %11 = sbr.rel (0) target = $region5
  $region4: #{vq_discriminator_forward.7} parent=0 // pred_region
    _
  $region5: #{vq_discriminator_forward.7} parent=0 // pred_fallthru
    _
  // Predicated region
  $region6: #{vq_discriminator_forward.7} parent=0 // pred_check
    _
  $region7: #{vq_discriminator_forward.7} parent=0 // pred_check_branch
    %13 = sbr.rel (0) target = $region9
  $region8: #{vq_discriminator_forward.7} parent=0 // pred_region
    _
  $region9: #{vq_discriminator_forward.7} parent=0 // pred_fallthru
    _
  // Predicated region
  $region10: #{vq_discriminator_forward.7} parent=0 // pred_check
    _
  $region11: #{vq_discriminator_forward.7} parent=0 // pred_check_branch
    %15 = sbr.rel (0) target = $region13
  $region12: #{vq_discriminator_forward.7} parent=0 // pred_region
    _
  $region13: #{vq_discriminator_forward.7} parent=0 // pred_fallthru
    _
  %v16 = vld [vmem:[%s0] sm:$0xff]
  %v17 = vld [vmem:[%s0 + $0x8] sm:$0xff]
  %v18 = vld [vmem:[%s0 + $0x10] sm:$0xff]
  %v19 = vld [vmem:[%s0 + $0x18] sm:$0xff]
  %v20 = vld [vmem:[%s0 + $0x20] sm:$0xf]
  %v21 = vld [vmem:[%s0 + $0x24] sm:$0xff]
  %v22 = vld [vmem:[%s0 + $0x2c] sm:$0xff]
  %v23 = vld [vmem:[%s0 + $0x34] sm:$0xff]
  %v24 = vld [vmem:[%s0 + $0x3c] sm:$0xff]
  %v25 = vld [vmem:[%s0 + $0x44] sm:$0xf]
  %v26 = vld [vmem:[%s0 + $0x48] sm:$0xff]
  %v27 = vld [vmem:[%s0 + $0x50] sm:$0xff]
  %v28 = vld [vmem:[%s0 + $0x58] sm:$0xff]
  %v29 = vld [vmem:[%s0 + $0x60] sm:$0xff]
  %v30 = vld [vmem:[%s0 + $0x68] sm:$0xf]
  %v31 = vld [vmem:[%s0 + $0x6c] sm:$0xff]
  %v32 = vld [vmem:[%s0 + $0x74] sm:$0xff]
  %v33 = vld [vmem:[%s0 + $0x7c] sm:$0xff]
  %v34 = vld [vmem:[%s0 + $0x84] sm:$0xff]
  %v35 = vld [vmem:[%s0 + $0x8c] sm:$0xf]
  %v36 = vunpack.c.l.bf16 %v16
  %v37 = vunpack.c.h.bf16 %v16
  %v38 = vunpack.c.l.bf16 %v17
  %v39 = vunpack.c.h.bf16 %v17
  %v40 = vunpack.c.l.bf16 %v18
  %v41 = vunpack.c.h.bf16 %v18
  %v42 = vunpack.c.l.bf16 %v19
  %v43 = vunpack.c.h.bf16 %v19
  %v44 = vunpack.c.l.bf16 %v20
  %v45 = vunpack.c.l.bf16 %v21
  %v46 = vunpack.c.h.bf16 %v21
  %v47 = vunpack.c.l.bf16 %v22
  %v48 = vunpack.c.h.bf16 %v22
  %v49 = vunpack.c.l.bf16 %v23
  %v50 = vunpack.c.h.bf16 %v23
  %v51 = vunpack.c.l.bf16 %v24
  %v52 = vunpack.c.h.bf16 %v24
  %v53 = vunpack.c.l.bf16 %v25
  %v54 = vunpack.c.l.bf16 %v26
  %v55 = vunpack.c.h.bf16 %v26
  %v56 = vunpack.c.l.bf16 %v27
  %v57 = vunpack.c.h.bf16 %v27
  %v58 = vunpack.c.l.bf16 %v28
  %v59 = vunpack.c.h.bf16 %v28
  %v60 = vunpack.c.l.bf16 %v29
  %v61 = vunpack.c.h.bf16 %v29
  %v62 = vunpack.c.l.bf16 %v30
  %v63 = vunpack.c.l.bf16 %v31
  %v64 = vunpack.c.h.bf16 %v31
  %v65 = vunpack.c.l.bf16 %v32
  %v66 = vunpack.c.h.bf16 %v32
  %v67 = vunpack.c.l.bf16 %v33
  %v68 = vunpack.c.h.bf16 %v33
  %v69 = vunpack.c.l.bf16 %v34
  %v70 = vunpack.c.h.bf16 %v34
  %v71 = vunpack.c.l.bf16 %v35
  %v72 = vld [vmem:[%s1] sm:$0xff]
  %v73 = vld [vmem:[%s1 + $0x8] sm:$0x1]
  %v76 = vlaneseq
  %v77 = vshrl.u32 %v76, 7
  %v78 = vsub.s32 0, %v77
  %v79 = vrot.slane %v72, %v78
  %v80 = vlaneseq
  %v81 = vshrl.u32 %v80, 7
  %v82 = vsub.s32 1, %v81
  %v83 = vrot.slane %v72, %v82
  %v84 = vlaneseq
  %v85 = vshrl.u32 %v84, 7
  %v86 = vsub.s32 2, %v85
  %v87 = vrot.slane %v72, %v86
  %v88 = vlaneseq
  %v89 = vshrl.u32 %v88, 7
  %v90 = vsub.s32 3, %v89
  %v91 = vrot.slane %v72, %v90
  %v92 = vlaneseq
  %v93 = vshrl.u32 %v92, 7
  %v94 = vsub.s32 4, %v93
  %v95 = vrot.slane %v72, %v94
  %v96 = vlaneseq
  %v97 = vshrl.u32 %v96, 7
  %v98 = vsub.s32 5, %v97
  %v99 = vrot.slane %v72, %v98
  %v100 = vlaneseq
  %v101 = vshrl.u32 %v100, 7
  %v102 = vsub.s32 6, %v101
  %v103 = vrot.slane %v72, %v102
  %v104 = vlaneseq
  %v105 = vshrl.u32 %v104, 7
  %v106 = vsub.s32 7, %v105
  %v107 = vrot.slane %v72, %v106
  %v108 = vlaneseq
  %v109 = vshrl.u32 %v108, 7
  %v110 = vsub.s32 0, %v109
  %v111 = vrot.slane %v73, %v110
  %v121 = vmul.f32 %v36, %v79
  %v122 = vmul.f32 %v37, %v83
  %v123 = vmul.f32 %v38, %v87
  %v124 = vmul.f32 %v39, %v91
  %v125 = vmul.f32 %v40, %v95
  %v126 = vmul.f32 %v41, %v99
  %v127 = vmul.f32 %v42, %v103
  %v128 = vmul.f32 %v43, %v107
  %v129 = vmul.f32 %v44, %v111
  %v130 = vmul.f32 %v45, %v79
  %v131 = vmul.f32 %v46, %v83
  %v132 = vmul.f32 %v47, %v87
  %v133 = vmul.f32 %v48, %v91
  %v134 = vmul.f32 %v49, %v95
  %v135 = vmul.f32 %v50, %v99
  %v136 = vmul.f32 %v51, %v103
  %v137 = vmul.f32 %v52, %v107
  %v138 = vmul.f32 %v53, %v111
  %v139 = vmul.f32 %v54, %v79
  %v140 = vmul.f32 %v55, %v83
  %v141 = vmul.f32 %v56, %v87
  %v142 = vmul.f32 %v57, %v91
  %v143 = vmul.f32 %v58, %v95
  %v144 = vmul.f32 %v59, %v99
  %v145 = vmul.f32 %v60, %v103
  %v146 = vmul.f32 %v61, %v107
  %v147 = vmul.f32 %v62, %v111
  %v148 = vmul.f32 %v63, %v79
  %v149 = vmul.f32 %v64, %v83
  %v150 = vmul.f32 %v65, %v87
  %v151 = vmul.f32 %v66, %v91
  %v152 = vmul.f32 %v67, %v95
  %v153 = vmul.f32 %v68, %v99
  %v154 = vmul.f32 %v69, %v103
  %v155 = vmul.f32 %v70, %v107
  %v156 = vmul.f32 %v71, %v111
  %v157 = vadd.f32 %v121, %v122
  %v158 = vadd.f32 %v157, %v123
  %v159 = vadd.f32 %v158, %v124
  %v160 = vadd.f32 %v159, %v125
  %v161 = vadd.f32 %v160, %v126
  %v162 = vadd.f32 %v161, %v127
  %v163 = vadd.f32 %v162, %v128
  %v164 = vadd.f32 %v163, %v129
  %165 = vadd.xlane.f32.xlu0 %v164
  %v166 = vpop.xlane.xlu0 %165
  %v167 = vadd.f32 %v130, %v131
  %v168 = vadd.f32 %v167, %v132
  %v169 = vadd.f32 %v168, %v133
  %v170 = vadd.f32 %v169, %v134
  %v171 = vadd.f32 %v170, %v135
  %v172 = vadd.f32 %v171, %v136
  %v173 = vadd.f32 %v172, %v137
  %v174 = vadd.f32 %v173, %v138
  %175 = vadd.xlane.f32.xlu0 %v174
  %v176 = vpop.xlane.xlu0 %175
  %v177 = vadd.f32 %v139, %v140
  %v178 = vadd.f32 %v177, %v141
  %v179 = vadd.f32 %v178, %v142
  %v180 = vadd.f32 %v179, %v143
  %v181 = vadd.f32 %v180, %v144
  %v182 = vadd.f32 %v181, %v145
  %v183 = vadd.f32 %v182, %v146
  %v184 = vadd.f32 %v183, %v147
  %185 = vadd.xlane.f32.xlu0 %v184
  %v186 = vpop.xlane.xlu0 %185
  %v187 = vadd.f32 %v148, %v149
  %v188 = vadd.f32 %v187, %v150
  %v189 = vadd.f32 %v188, %v151
  %v190 = vadd.f32 %v189, %v152
  %v191 = vadd.f32 %v190, %v153
  %v192 = vadd.f32 %v191, %v154
  %v193 = vadd.f32 %v192, %v155
  %v194 = vadd.f32 %v193, %v156
  %195 = vadd.xlane.f32.xlu0 %v194
  %v196 = vpop.xlane.xlu0 %195
  %v197 = vld [vmem:[#allocation2] sm:$0x1]
  %v199 = vlaneseq
  %v200 = vshrl.u32 %v199, 7
  %v201 = vsub.s32 0, %v200
  %v202 = vrot.slane %v197, %v201
  %v204 = vadd.f32 %v166, %v202
  %v205 = vadd.f32 %v176, %v202
  %v206 = vadd.f32 %v186, %v202
  %v207 = vadd.f32 %v196, %v202
  %vm208 = vcmask 7168
  %209 = vst.msk [vmem:[%s3] sm:$0xff] %vm208, %v204
  %210 = vst.msk [vmem:[%s3 + $0x8] sm:$0xff] %vm208, %v205
  %211 = vst.msk [vmem:[%s3 + $0x10] sm:$0xff] %vm208, %v206
  %212 = vst.msk [vmem:[%s3 + $0x18] sm:$0xff] %vm208, %v207
  // Predicated region
  $region14: #{vq_discriminator_forward.7} parent=0 // pred_check
    _
  $region15: #{vq_discriminator_forward.7} parent=0 // pred_check_branch
    %214 = sbr.rel (0) target = $region17
  $region16: #{vq_discriminator_forward.7} parent=0 // pred_region
    _
  $region17: #{vq_discriminator_forward.7} parent=0 // pred_fallthru
    _
  // Predicated region
  $region18: #{vq_discriminator_forward.7} parent=0 // pred_check
    _
  $region19: #{vq_discriminator_forward.7} parent=0 // pred_check_branch
    %216 = sbr.rel (0) target = $region21
  $region20: #{vq_discriminator_forward.7} parent=0 // pred_region
    _
  $region21: #{vq_discriminator_forward.7} parent=0 // pred_fallthru
    _

// kernel: vq_discriminator_forward.6
$region0: #{vq_discriminator_forward.6}
  #allocation0 [shape = 'u32[]', space=smem, size = 0x4, offset = 0x4, fixed_abs, tag = 'smem constant byte address 0x4 - core index']
  #allocation1 [shape = 'u32[144,128]{1,0:T(1,128)}', space=vmem, size = 0x12000, scoped, tag = 'internal scratch']
  %s0 = inlined_call_operand.vmem [shape: bf16[32,2048], index: 0, kind: input, shape index: {}]
  %s1 = inlined_call_operand.vmem [shape: bf16[2048,128], index: 1, kind: input, shape index: {}]
  %s2 = inlined_call_operand.vmem [shape: f32[1,128], index: 2, kind: input, shape index: {}]
  %s3 = inlined_call_operand.vmem [shape: f32[1,128], index: 3, kind: input, shape index: {}]
  %s4 = inlined_call_operand.vmem [shape: bf16[32,128], index: 4, kind: output, shape index: {}]
  %s5 = sld [smem:[#allocation0]]
  $region26: #{vq_discriminator_forward.6} parent=0
    _
  %s7 = ssub.s32 1, %s5
  %s8 = scalar_select 0, %s7, %s5
  // Predicated region
  $region2: #{vq_discriminator_forward.6} parent=0 // pred_check
    _
  $region3: #{vq_discriminator_forward.6} parent=0 // pred_check_branch
    %10 = sbr.rel (0) target = $region5
  $region4: #{vq_discriminator_forward.6} parent=0 // pred_region
    _
  $region5: #{vq_discriminator_forward.6} parent=0 // pred_fallthru
    _
  // Predicated region
  $region6: #{vq_discriminator_forward.6} parent=0 // pred_check
    _
  $region7: #{vq_discriminator_forward.6} parent=0 // pred_check_branch
    %12 = sbr.rel (0) target = $region9
  $region8: #{vq_discriminator_forward.6} parent=0 // pred_region
    _
  $region9: #{vq_discriminator_forward.6} parent=0 // pred_fallthru
    _
  // Predicated region
  $region10: #{vq_discriminator_forward.6} parent=0 // pred_check
    _
  $region11: #{vq_discriminator_forward.6} parent=0 // pred_check_branch
    %14 = sbr.rel (0) target = $region13
  $region12: #{vq_discriminator_forward.6} parent=0 // pred_region
    _
  $region13: #{vq_discriminator_forward.6} parent=0 // pred_fallthru
    _
  // Predicated region
  $region14: #{vq_discriminator_forward.6} parent=0 // pred_check
    _
  $region15: #{vq_discriminator_forward.6} parent=0 // pred_check_branch
    %16 = sbr.rel (0) target = $region17
  $region16: #{vq_discriminator_forward.6} parent=0 // pred_region
    _
  $region17: #{vq_discriminator_forward.6} parent=0 // pred_fallthru
    _
  %v18 = vld [vmem:[%s0] sm:$0xff]
  %v19 = vld [vmem:[%s0 + $0x8] sm:$0xff]
  %v20 = vld [vmem:[%s0 + $0x10] sm:$0xff]
  %v21 = vld [vmem:[%s0 + $0x18] sm:$0xff]
  %v22 = vld [vmem:[%s0 + $0x20] sm:$0xff]
  %v23 = vld [vmem:[%s0 + $0x28] sm:$0xff]
  %v24 = vld [vmem:[%s0 + $0x30] sm:$0xff]
  %v25 = vld [vmem:[%s0 + $0x38] sm:$0xff]
  %v26 = vld [vmem:[%s0 + $0x40] sm:$0xff]
  %v27 = vld [vmem:[%s0 + $0x48] sm:$0xff]
  %v28 = vld [vmem:[%s0 + $0x50] sm:$0xff]
  %v29 = vld [vmem:[%s0 + $0x58] sm:$0xff]
  %v30 = vld [vmem:[%s0 + $0x60] sm:$0xff]
  %v31 = vld [vmem:[%s0 + $0x68] sm:$0xff]
  %v32 = vld [vmem:[%s0 + $0x70] sm:$0xff]
  %v33 = vld [vmem:[%s0 + $0x78] sm:$0xff]
  %v34 = vld [vmem:[%s0 + $0x80] sm:$0xff]
  %v35 = vld [vmem:[%s0 + $0x88] sm:$0xff]
  %v36 = vld [vmem:[%s0 + $0x90] sm:$0xff]
  %v37 = vld [vmem:[%s0 + $0x98] sm:$0xff]
  %v38 = vld [vmem:[%s0 + $0xa0] sm:$0xff]
  %v39 = vld [vmem:[%s0 + $0xa8] sm:$0xff]
  %v40 = vld [vmem:[%s0 + $0xb0] sm:$0xff]
  %v41 = vld [vmem:[%s0 + $0xb8] sm:$0xff]
  %v42 = vld [vmem:[%s0 + $0xc0] sm:$0xff]
  %v43 = vld [vmem:[%s0 + $0xc8] sm:$0xff]
  %v44 = vld [vmem:[%s0 + $0xd0] sm:$0xff]
  %v45 = vld [vmem:[%s0 + $0xd8] sm:$0xff]
  %v46 = vld [vmem:[%s0 + $0xe0] sm:$0xff]
  %v47 = vld [vmem:[%s0 + $0xe8] sm:$0xff]
  %v48 = vld [vmem:[%s0 + $0xf0] sm:$0xff]
  %v49 = vld [vmem:[%s0 + $0xf8] sm:$0xff]
  %v50 = vld [vmem:[%s1] sm:$0xf]
  %v51 = vld [vmem:[%s1 + $0x4] sm:$0xf]
  %v52 = vld [vmem:[%s1 + $0x8] sm:$0xf]
  %v53 = vld [vmem:[%s1 + $0xc] sm:$0xf]
  %v54 = vld [vmem:[%s1 + $0x10] sm:$0xf]
  %v55 = vld [vmem:[%s1 + $0x14] sm:$0xf]
  %v56 = vld [vmem:[%s1 + $0x18] sm:$0xf]
  %v57 = vld [vmem:[%s1 + $0x1c] sm:$0xf]
  %v58 = vld [vmem:[%s1 + $0x20] sm:$0xf]
  %v59 = vld [vmem:[%s1 + $0x24] sm:$0xf]
  %v60 = vld [vmem:[%s1 + $0x28] sm:$0xf]
  %v61 = vld [vmem:[%s1 + $0x2c] sm:$0xf]
  %v62 = vld [vmem:[%s1 + $0x30] sm:$0xf]
  %v63 = vld [vmem:[%s1 + $0x34] sm:$0xf]
  %v64 = vld [vmem:[%s1 + $0x38] sm:$0xf]
  %v65 = vld [vmem:[%s1 + $0x3c] sm:$0xf]
  %v66 = vld [vmem:[%s1 + $0x40] sm:$0xf]
  %v67 = vld [vmem:[%s1 + $0x44] sm:$0xf]
  %v68 = vld [vmem:[%s1 + $0x48] sm:$0xf]
  %v69 = vld [vmem:[%s1 + $0x4c] sm:$0xf]
  %v70 = vld [vmem:[%s1 + $0x50] sm:$0xf]
  %v71 = vld [vmem:[%s1 + $0x54] sm:$0xf]
  %v72 = vld [vmem:[%s1 + $0x58] sm:$0xf]
  %v73 = vld [vmem:[%s1 + $0x5c] sm:$0xf]
  %v74 = vld [vmem:[%s1 + $0x60] sm:$0xf]
  %v75 = vld [vmem:[%s1 + $0x64] sm:$0xf]
  %v76 = vld [vmem:[%s1 + $0x68] sm:$0xf]
  %v77 = vld [vmem:[%s1 + $0x6c] sm:$0xf]
  %v78 = vld [vmem:[%s1 + $0x70] sm:$0xf]
  %v79 = vld [vmem:[%s1 + $0x74] sm:$0xf]
  %v80 = vld [vmem:[%s1 + $0x78] sm:$0xf]
  %v81 = vld [vmem:[%s1 + $0x7c] sm:$0xf]
  %v82 = vld [vmem:[%s1 + $0x80] sm:$0xf]
  %v83 = vld [vmem:[%s1 + $0x84] sm:$0xf]
  %v84 = vld [vmem:[%s1 + $0x88] sm:$0xf]
  %v85 = vld [vmem:[%s1 + $0x8c] sm:$0xf]
  %v86 = vld [vmem:[%s1 + $0x90] sm:$0xf]
  %v87 = vld [vmem:[%s1 + $0x94] sm:$0xf]
  %v88 = vld [vmem:[%s1 + $0x98] sm:$0xf]
  %v89 = vld [vmem:[%s1 + $0x9c] sm:$0xf]
  %v90 = vld [vmem:[%s1 + $0xa0] sm:$0xf]
  %v91 = vld [vmem:[%s1 + $0xa4] sm:$0xf]
  %v92 = vld [vmem:[%s1 + $0xa8] sm:$0xf]
  %v93 = vld [vmem:[%s1 + $0xac] sm:$0xf]
  %v94 = vld [vmem:[%s1 + $0xb0] sm:$0xf]
  %v95 = vld [vmem:[%s1 + $0xb4] sm:$0xf]
  %v96 = vld [vmem:[%s1 + $0xb8] sm:$0xf]
  %v97 = vld [vmem:[%s1 + $0xbc] sm:$0xf]
  %v98 = vld [vmem:[%s1 + $0xc0] sm:$0xf]
  %v99 = vld [vmem:[%s1 + $0xc4] sm:$0xf]
  %v100 = vld [vmem:[%s1 + $0xc8] sm:$0xf]
  %v101 = vld [vmem:[%s1 + $0xcc] sm:$0xf]
  %v102 = vld [vmem:[%s1 + $0xd0] sm:$0xf]
  %v103 = vld [vmem:[%s1 + $0xd4] sm:$0xf]
  %v104 = vld [vmem:[%s1 + $0xd8] sm:$0xf]
  %v105 = vld [vmem:[%s1 + $0xdc] sm:$0xf]
  %v106 = vld [vmem:[%s1 + $0xe0] sm:$0xf]
  %v107 = vld [vmem:[%s1 + $0xe4] sm:$0xf]
  %v108 = vld [vmem:[%s1 + $0xe8] sm:$0xf]
  %v109 = vld [vmem:[%s1 + $0xec] sm:$0xf]
  %v110 = vld [vmem:[%s1 + $0xf0] sm:$0xf]
  %v111 = vld [vmem:[%s1 + $0xf4] sm:$0xf]
  %v112 = vld [vmem:[%s1 + $0xf8] sm:$0xf]
  %v113 = vld [vmem:[%s1 + $0xfc] sm:$0xf]
  %v114 = vld [vmem:[%s1 + $0x100] sm:$0xf]
  %v115 = vld [vmem:[%s1 + $0x104] sm:$0xf]
  %v116 = vld [vmem:[%s1 + $0x108] sm:$0xf]
  %v117 = vld [vmem:[%s1 + $0x10c] sm:$0xf]
  %v118 = vld [vmem:[%s1 + $0x110] sm:$0xf]
  %v119 = vld [vmem:[%s1 + $0x114] sm:$0xf]
  %v120 = vld [vmem:[%s1 + $0x118] sm:$0xf]
  %v121 = vld [vmem:[%s1 + $0x11c] sm:$0xf]
  %v122 = vld [vmem:[%s1 + $0x120] sm:$0xf]
  %v123 = vld [vmem:[%s1 + $0x124] sm:$0xf]
  %v124 = vld [vmem:[%s1 + $0x128] sm:$0xf]
  %v125 = vld [vmem:[%s1 + $0x12c] sm:$0xf]
  %v126 = vld [vmem:[%s1 + $0x130] sm:$0xf]
  %v127 = vld [vmem:[%s1 + $0x134] sm:$0xf]
  %v128 = vld [vmem:[%s1 + $0x138] sm:$0xf]
  %v129 = vld [vmem:[%s1 + $0x13c] sm:$0xf]
  %v130 = vld [vmem:[%s1 + $0x140] sm:$0xf]
  %v131 = vld [vmem:[%s1 + $0x144] sm:$0xf]
  %v132 = vld [vmem:[%s1 + $0x148] sm:$0xf]
  %v133 = vld [vmem:[%s1 + $0x14c] sm:$0xf]
  %v134 = vld [vmem:[%s1 + $0x150] sm:$0xf]
  %v135 = vld [vmem:[%s1 + $0x154] sm:$0xf]
  %v136 = vld [vmem:[%s1 + $0x158] sm:$0xf]
  %v137 = vld [vmem:[%s1 + $0x15c] sm:$0xf]
  %v138 = vld [vmem:[%s1 + $0x160] sm:$0xf]
  %v139 = vld [vmem:[%s1 + $0x164] sm:$0xf]
  %v140 = vld [vmem:[%s1 + $0x168] sm:$0xf]
  %v141 = vld [vmem:[%s1 + $0x16c] sm:$0xf]
  %v142 = vld [vmem:[%s1 + $0x170] sm:$0xf]
  %v143 = vld [vmem:[%s1 + $0x174] sm:$0xf]
  %v144 = vld [vmem:[%s1 + $0x178] sm:$0xf]
  %v145 = vld [vmem:[%s1 + $0x17c] sm:$0xf]
  %v146 = vld [vmem:[%s1 + $0x180] sm:$0xf]
  %v147 = vld [vmem:[%s1 + $0x184] sm:$0xf]
  %v148 = vld [vmem:[%s1 + $0x188] sm:$0xf]
  %v149 = vld [vmem:[%s1 + $0x18c] sm:$0xf]
  %v150 = vld [vmem:[%s1 + $0x190] sm:$0xf]
  %v151 = vld [vmem:[%s1 + $0x194] sm:$0xf]
  %v152 = vld [vmem:[%s1 + $0x198] sm:$0xf]
  %v153 = vld [vmem:[%s1 + $0x19c] sm:$0xf]
  %v154 = vld [vmem:[%s1 + $0x1a0] sm:$0xf]
  %v155 = vld [vmem:[%s1 + $0x1a4] sm:$0xf]
  %v156 = vld [vmem:[%s1 + $0x1a8] sm:$0xf]
  %v157 = vld [vmem:[%s1 + $0x1ac] sm:$0xf]
  %v158 = vld [vmem:[%s1 + $0x1b0] sm:$0xf]
  %v159 = vld [vmem:[%s1 + $0x1b4] sm:$0xf]
  %v160 = vld [vmem:[%s1 + $0x1b8] sm:$0xf]
  %v161 = vld [vmem:[%s1 + $0x1bc] sm:$0xf]
  %v162 = vld [vmem:[%s1 + $0x1c0] sm:$0xf]
  %v163 = vld [vmem:[%s1 + $0x1c4] sm:$0xf]
  %v164 = vld [vmem:[%s1 + $0x1c8] sm:$0xf]
  %v165 = vld [vmem:[%s1 + $0x1cc] sm:$0xf]
  %v166 = vld [vmem:[%s1 + $0x1d0] sm:$0xf]
  %v167 = vld [vmem:[%s1 + $0x1d4] sm:$0xf]
  %v168 = vld [vmem:[%s1 + $0x1d8] sm:$0xf]
  %v169 = vld [vmem:[%s1 + $0x1dc] sm:$0xf]
  %v170 = vld [vmem:[%s1 + $0x1e0] sm:$0xf]
  %v171 = vld [vmem:[%s1 + $0x1e4] sm:$0xf]
  %v172 = vld [vmem:[%s1 + $0x1e8] sm:$0xf]
  %v173 = vld [vmem:[%s1 + $0x1ec] sm:$0xf]
  %v174 = vld [vmem:[%s1 + $0x1f0] sm:$0xf]
  %v175 = vld [vmem:[%s1 + $0x1f4] sm:$0xf]
  %v176 = vld [vmem:[%s1 + $0x1f8] sm:$0xf]
  %v177 = vld [vmem:[%s1 + $0x1fc] sm:$0xf]
  %v178 = vld [vmem:[%s1 + $0x200] sm:$0xf]
  %v179 = vld [vmem:[%s1 + $0x204] sm:$0xf]
  %v180 = vld [vmem:[%s1 + $0x208] sm:$0xf]
  %v181 = vld [vmem:[%s1 + $0x20c] sm:$0xf]
  %v182 = vld [vmem:[%s1 + $0x210] sm:$0xf]
  %v183 = vld [vmem:[%s1 + $0x214] sm:$0xf]
  %v184 = vld [vmem:[%s1 + $0x218] sm:$0xf]
  %v185 = vld [vmem:[%s1 + $0x21c] sm:$0xf]
  %v186 = vld [vmem:[%s1 + $0x220] sm:$0xf]
  %v187 = vld [vmem:[%s1 + $0x224] sm:$0xf]
  %v188 = vld [vmem:[%s1 + $0x228] sm:$0xf]
  %v189 = vld [vmem:[%s1 + $0x22c] sm:$0xf]
  %v190 = vld [vmem:[%s1 + $0x230] sm:$0xf]
  %v191 = vld [vmem:[%s1 + $0x234] sm:$0xf]
  %v192 = vld [vmem:[%s1 + $0x238] sm:$0xf]
  %v193 = vld [vmem:[%s1 + $0x23c] sm:$0xf]
  %v194 = vld [vmem:[%s1 + $0x240] sm:$0xf]
  %v195 = vld [vmem:[%s1 + $0x244] sm:$0xf]
  %v196 = vld [vmem:[%s1 + $0x248] sm:$0xf]
  %v197 = vld [vmem:[%s1 + $0x24c] sm:$0xf]
  %v198 = vld [vmem:[%s1 + $0x250] sm:$0xf]
  %v199 = vld [vmem:[%s1 + $0x254] sm:$0xf]
  %v200 = vld [vmem:[%s1 + $0x258] sm:$0xf]
  %v201 = vld [vmem:[%s1 + $0x25c] sm:$0xf]
  %v202 = vld [vmem:[%s1 + $0x260] sm:$0xf]
  %v203 = vld [vmem:[%s1 + $0x264] sm:$0xf]
  %v204 = vld [vmem:[%s1 + $0x268] sm:$0xf]
  %v205 = vld [vmem:[%s1 + $0x26c] sm:$0xf]
  %v206 = vld [vmem:[%s1 + $0x270] sm:$0xf]
  %v207 = vld [vmem:[%s1 + $0x274] sm:$0xf]
  %v208 = vld [vmem:[%s1 + $0x278] sm:$0xf]
  %v209 = vld [vmem:[%s1 + $0x27c] sm:$0xf]
  %v210 = vld [vmem:[%s1 + $0x280] sm:$0xf]
  %v211 = vld [vmem:[%s1 + $0x284] sm:$0xf]
  %v212 = vld [vmem:[%s1 + $0x288] sm:$0xf]
  %v213 = vld [vmem:[%s1 + $0x28c] sm:$0xf]
  %v214 = vld [vmem:[%s1 + $0x290] sm:$0xf]
  %v215 = vld [vmem:[%s1 + $0x294] sm:$0xf]
  %v216 = vld [vmem:[%s1 + $0x298] sm:$0xf]
  %v217 = vld [vmem:[%s1 + $0x29c] sm:$0xf]
  %v218 = vld [vmem:[%s1 + $0x2a0] sm:$0xf]
  %v219 = vld [vmem:[%s1 + $0x2a4] sm:$0xf]
  %v220 = vld [vmem:[%s1 + $0x2a8] sm:$0xf]
  %v221 = vld [vmem:[%s1 + $0x2ac] sm:$0xf]
  %v222 = vld [vmem:[%s1 + $0x2b0] sm:$0xf]
  %v223 = vld [vmem:[%s1 + $0x2b4] sm:$0xf]
  %v224 = vld [vmem:[%s1 + $0x2b8] sm:$0xf]
  %v225 = vld [vmem:[%s1 + $0x2bc] sm:$0xf]
  %v226 = vld [vmem:[%s1 + $0x2c0] sm:$0xf]
  %v227 = vld [vmem:[%s1 + $0x2c4] sm:$0xf]
  %v228 = vld [vmem:[%s1 + $0x2c8] sm:$0xf]
  %v229 = vld [vmem:[%s1 + $0x2cc] sm:$0xf]
  %v230 = vld [vmem:[%s1 + $0x2d0] sm:$0xf]
  %v231 = vld [vmem:[%s1 + $0x2d4] sm:$0xf]
  %v232 = vld [vmem:[%s1 + $0x2d8] sm:$0xf]
  %v233 = vld [vmem:[%s1 + $0x2dc] sm:$0xf]
  %v234 = vld [vmem:[%s1 + $0x2e0] sm:$0xf]
  %v235 = vld [vmem:[%s1 + $0x2e4] sm:$0xf]
  %v236 = vld [vmem:[%s1 + $0x2e8] sm:$0xf]
  %v237 = vld [vmem:[%s1 + $0x2ec] sm:$0xf]
  %v238 = vld [vmem:[%s1 + $0x2f0] sm:$0xf]
  %v239 = vld [vmem:[%s1 + $0x2f4] sm:$0xf]
  %v240 = vld [vmem:[%s1 + $0x2f8] sm:$0xf]
  %v241 = vld [vmem:[%s1 + $0x2fc] sm:$0xf]
  %v242 = vld [vmem:[%s1 + $0x300] sm:$0xf]
  %v243 = vld [vmem:[%s1 + $0x304] sm:$0xf]
  %v244 = vld [vmem:[%s1 + $0x308] sm:$0xf]
  %v245 = vld [vmem:[%s1 + $0x30c] sm:$0xf]
  %v246 = vld [vmem:[%s1 + $0x310] sm:$0xf]
  %v247 = vld [vmem:[%s1 + $0x314] sm:$0xf]
  %v248 = vld [vmem:[%s1 + $0x318] sm:$0xf]
  %v249 = vld [vmem:[%s1 + $0x31c] sm:$0xf]
  %v250 = vld [vmem:[%s1 + $0x320] sm:$0xf]
  %v251 = vld [vmem:[%s1 + $0x324] sm:$0xf]
  %v252 = vld [vmem:[%s1 + $0x328] sm:$0xf]
  %v253 = vld [vmem:[%s1 + $0x32c] sm:$0xf]
  %v254 = vld [vmem:[%s1 + $0x330] sm:$0xf]
  %v255 = vld [vmem:[%s1 + $0x334] sm:$0xf]
  %v256 = vld [vmem:[%s1 + $0x338] sm:$0xf]
  %v257 = vld [vmem:[%s1 + $0x33c] sm:$0xf]
  %v258 = vld [vmem:[%s1 + $0x340] sm:$0xf]
  %v259 = vld [vmem:[%s1 + $0x344] sm:$0xf]
  %v260 = vld [vmem:[%s1 + $0x348] sm:$0xf]
  %v261 = vld [vmem:[%s1 + $0x34c] sm:$0xf]
  %v262 = vld [vmem:[%s1 + $0x350] sm:$0xf]
  %v263 = vld [vmem:[%s1 + $0x354] sm:$0xf]
  %v264 = vld [vmem:[%s1 + $0x358] sm:$0xf]
  %v265 = vld [vmem:[%s1 + $0x35c] sm:$0xf]
  %v266 = vld [vmem:[%s1 + $0x360] sm:$0xf]
  %v267 = vld [vmem:[%s1 + $0x364] sm:$0xf]
  %v268 = vld [vmem:[%s1 + $0x368] sm:$0xf]
  %v269 = vld [vmem:[%s1 + $0x36c] sm:$0xf]
  %v270 = vld [vmem:[%s1 + $0x370] sm:$0xf]
  %v271 = vld [vmem:[%s1 + $0x374] sm:$0xf]
  %v272 = vld [vmem:[%s1 + $0x378] sm:$0xf]
  %v273 = vld [vmem:[%s1 + $0x37c] sm:$0xf]
  %v274 = vld [vmem:[%s1 + $0x380] sm:$0xf]
  %v275 = vld [vmem:[%s1 + $0x384] sm:$0xf]
  %v276 = vld [vmem:[%s1 + $0x388] sm:$0xf]
  %v277 = vld [vmem:[%s1 + $0x38c] sm:$0xf]
  %v278 = vld [vmem:[%s1 + $0x390] sm:$0xf]
  %v279 = vld [vmem:[%s1 + $0x394] sm:$0xf]
  %v280 = vld [vmem:[%s1 + $0x398] sm:$0xf]
  %v281 = vld [vmem:[%s1 + $0x39c] sm:$0xf]
  %v282 = vld [vmem:[%s1 + $0x3a0] sm:$0xf]
  %v283 = vld [vmem:[%s1 + $0x3a4] sm:$0xf]
  %v284 = vld [vmem:[%s1 + $0x3a8] sm:$0xf]
  %v285 = vld [vmem:[%s1 + $0x3ac] sm:$0xf]
  %v286 = vld [vmem:[%s1 + $0x3b0] sm:$0xf]
  %v287 = vld [vmem:[%s1 + $0x3b4] sm:$0xf]
  %v288 = vld [vmem:[%s1 + $0x3b8] sm:$0xf]
  %v289 = vld [vmem:[%s1 + $0x3bc] sm:$0xf]
  %v290 = vld [vmem:[%s1 + $0x3c0] sm:$0xf]
  %v291 = vld [vmem:[%s1 + $0x3c4] sm:$0xf]
  %v292 = vld [vmem:[%s1 + $0x3c8] sm:$0xf]
  %v293 = vld [vmem:[%s1 + $0x3cc] sm:$0xf]
  %v294 = vld [vmem:[%s1 + $0x3d0] sm:$0xf]
  %v295 = vld [vmem:[%s1 + $0x3d4] sm:$0xf]
  %v296 = vld [vmem:[%s1 + $0x3d8] sm:$0xf]
  %v297 = vld [vmem:[%s1 + $0x3dc] sm:$0xf]
  %v298 = vld [vmem:[%s1 + $0x3e0] sm:$0xf]
  %v299 = vld [vmem:[%s1 + $0x3e4] sm:$0xf]
  %v300 = vld [vmem:[%s1 + $0x3e8] sm:$0xf]
  %v301 = vld [vmem:[%s1 + $0x3ec] sm:$0xf]
  %v302 = vld [vmem:[%s1 + $0x3f0] sm:$0xf]
  %v303 = vld [vmem:[%s1 + $0x3f4] sm:$0xf]
  %v304 = vld [vmem:[%s1 + $0x3f8] sm:$0xf]
  %v305 = vld [vmem:[%s1 + $0x3fc] sm:$0xf]
  %v338 = vunpack.c.l.b16 %v18
  %v339 = vunpack.c.h.b16 %v18
  %v340 = vunpack.c.l.b16 %v19
  %v341 = vunpack.c.h.b16 %v19
  %v342 = vunpack.c.l.b16 %v20
  %v343 = vunpack.c.h.b16 %v20
  %v344 = vunpack.c.l.b16 %v21
  %v345 = vunpack.c.h.b16 %v21
  %v346 = vunpack.c.l.b16 %v22
  %v347 = vunpack.c.h.b16 %v22
  %v348 = vunpack.c.l.b16 %v23
  %v349 = vunpack.c.h.b16 %v23
  %v350 = vunpack.c.l.b16 %v24
  %v351 = vunpack.c.h.b16 %v24
  %v352 = vunpack.c.l.b16 %v25
  %v353 = vunpack.c.h.b16 %v25
  %v354 = vunpack.c.l.b16 %v26
  %v355 = vunpack.c.h.b16 %v26
  %v356 = vunpack.c.l.b16 %v27
  %v357 = vunpack.c.h.b16 %v27
  %v358 = vunpack.c.l.b16 %v28
  %v359 = vunpack.c.h.b16 %v28
  %v360 = vunpack.c.l.b16 %v29
  %v361 = vunpack.c.h.b16 %v29
  %v362 = vunpack.c.l.b16 %v30
  %v363 = vunpack.c.h.b16 %v30
  %v364 = vunpack.c.l.b16 %v31
  %v365 = vunpack.c.h.b16 %v31
  %v366 = vunpack.c.l.b16 %v32
  %v367 = vunpack.c.h.b16 %v32
  %v368 = vunpack.c.l.b16 %v33
  %v369 = vunpack.c.h.b16 %v33
  %v370 = vunpack.c.l.b16 %v34
  %v371 = vunpack.c.h.b16 %v34
  %v372 = vunpack.c.l.b16 %v35
  %v373 = vunpack.c.h.b16 %v35
  %v374 = vunpack.c.l.b16 %v36
  %v375 = vunpack.c.h.b16 %v36
  %v376 = vunpack.c.l.b16 %v37
  %v377 = vunpack.c.h.b16 %v37
  %v378 = vunpack.c.l.b16 %v38
  %v379 = vunpack.c.h.b16 %v38
  %v380 = vunpack.c.l.b16 %v39
  %v381 = vunpack.c.h.b16 %v39
  %v382 = vunpack.c.l.b16 %v40
  %v383 = vunpack.c.h.b16 %v40
  %v384 = vunpack.c.l.b16 %v41
  %v385 = vunpack.c.h.b16 %v41
  %v386 = vunpack.c.l.b16 %v42
  %v387 = vunpack.c.h.b16 %v42
  %v388 = vunpack.c.l.b16 %v43
  %v389 = vunpack.c.h.b16 %v43
  %v390 = vunpack.c.l.b16 %v44
  %v391 = vunpack.c.h.b16 %v44
  %v392 = vunpack.c.l.b16 %v45
  %v393 = vunpack.c.h.b16 %v45
  %v394 = vunpack.c.l.b16 %v46
  %v395 = vunpack.c.h.b16 %v46
  %v396 = vunpack.c.l.b16 %v47
  %v397 = vunpack.c.h.b16 %v47
  %v398 = vunpack.c.l.b16 %v48
  %v399 = vunpack.c.h.b16 %v48
  %v400 = vunpack.c.l.b16 %v49
  %v401 = vunpack.c.h.b16 %v49
  %v402 = vpack.c.b16 %v354, %v338
  %v403 = vpack.c.b16 %v355, %v339
  %v404 = vpack.c.b16 %v356, %v340
  %v405 = vpack.c.b16 %v357, %v341
  %v406 = vpack.c.b16 %v358, %v342
  %v407 = vpack.c.b16 %v359, %v343
  %v408 = vpack.c.b16 %v360, %v344
  %v409 = vpack.c.b16 %v361, %v345
  %v410 = vpack.c.b16 %v362, %v346
  %v411 = vpack.c.b16 %v363, %v347
  %v412 = vpack.c.b16 %v364, %v348
  %v413 = vpack.c.b16 %v365, %v349
  %v414 = vpack.c.b16 %v366, %v350
  %v415 = vpack.c.b16 %v367, %v351
  %v416 = vpack.c.b16 %v368, %v352
  %v417 = vpack.c.b16 %v369, %v353
  %v418 = vpack.c.b16 %v386, %v370
  %v419 = vpack.c.b16 %v387, %v371
  %v420 = vpack.c.b16 %v388, %v372
  %v421 = vpack.c.b16 %v389, %v373
  %v422 = vpack.c.b16 %v390, %v374
  %v423 = vpack.c.b16 %v391, %v375
  %v424 = vpack.c.b16 %v392, %v376
  %v425 = vpack.c.b16 %v393, %v377
  %v426 = vpack.c.b16 %v394, %v378
  %v427 = vpack.c.b16 %v395, %v379
  %v428 = vpack.c.b16 %v396, %v380
  %v429 = vpack.c.b16 %v397, %v381
  %v430 = vpack.c.b16 %v398, %v382
  %v431 = vpack.c.b16 %v399, %v383
  %v432 = vpack.c.b16 %v400, %v384
  %v433 = vpack.c.b16 %v401, %v385
  %v722 = vunpack.c.l.b16 %v50
  %v723 = vunpack.c.l.b16 %v51
  %v724 = vunpack.c.l.b16 %v52
  %v725 = vunpack.c.l.b16 %v53
  %v726 = vunpack.c.l.b16 %v54
  %v727 = vunpack.c.l.b16 %v55
  %v728 = vunpack.c.l.b16 %v56
  %v729 = vunpack.c.l.b16 %v57
  %v730 = vunpack.c.l.b16 %v58
  %v731 = vunpack.c.l.b16 %v59
  %v732 = vunpack.c.l.b16 %v60
  %v733 = vunpack.c.l.b16 %v61
  %v734 = vunpack.c.l.b16 %v62
  %v735 = vunpack.c.l.b16 %v63
  %v736 = vunpack.c.l.b16 %v64
  %v737 = vunpack.c.l.b16 %v65
  %v738 = vunpack.c.l.b16 %v66
  %v739 = vunpack.c.l.b16 %v67
  %v740 = vunpack.c.l.b16 %v68
  %v741 = vunpack.c.l.b16 %v69
  %v742 = vunpack.c.l.b16 %v70
  %v743 = vunpack.c.l.b16 %v71
  %v744 = vunpack.c.l.b16 %v72
  %v745 = vunpack.c.l.b16 %v73
  %v746 = vunpack.c.l.b16 %v74
  %v747 = vunpack.c.l.b16 %v75
  %v748 = vunpack.c.l.b16 %v76
  %v749 = vunpack.c.l.b16 %v77
  %v750 = vunpack.c.l.b16 %v78
  %v751 = vunpack.c.l.b16 %v79
  %v752 = vunpack.c.l.b16 %v80
  %v753 = vunpack.c.l.b16 %v81
  %v754 = vunpack.c.l.b16 %v82
  %v755 = vunpack.c.l.b16 %v83
  %v756 = vunpack.c.l.b16 %v84
  %v757 = vunpack.c.l.b16 %v85
  %v758 = vunpack.c.l.b16 %v86
  %v759 = vunpack.c.l.b16 %v87
  %v760 = vunpack.c.l.b16 %v88
  %v761 = vunpack.c.l.b16 %v89
  %v762 = vunpack.c.l.b16 %v90
  %v763 = vunpack.c.l.b16 %v91
  %v764 = vunpack.c.l.b16 %v92
  %v765 = vunpack.c.l.b16 %v93
  %v766 = vunpack.c.l.b16 %v94
  %v767 = vunpack.c.l.b16 %v95
  %v768 = vunpack.c.l.b16 %v96
  %v769 = vunpack.c.l.b16 %v97
  %v770 = vunpack.c.l.b16 %v98
  %v771 = vunpack.c.l.b16 %v99
  %v772 = vunpack.c.l.b16 %v100
  %v773 = vunpack.c.l.b16 %v101
  %v774 = vunpack.c.l.b16 %v102
  %v775 = vunpack.c.l.b16 %v103
  %v776 = vunpack.c.l.b16 %v104
  %v777 = vunpack.c.l.b16 %v105
  %v778 = vunpack.c.l.b16 %v106
  %v779 = vunpack.c.l.b16 %v107
  %v780 = vunpack.c.l.b16 %v108
  %v781 = vunpack.c.l.b16 %v109
  %v782 = vunpack.c.l.b16 %v110
  %v783 = vunpack.c.l.b16 %v111
  %v784 = vunpack.c.l.b16 %v112
  %v785 = vunpack.c.l.b16 %v113
  %v786 = vunpack.c.l.b16 %v114
  %v787 = vunpack.c.l.b16 %v115
  %v788 = vunpack.c.l.b16 %v116
  %v789 = vunpack.c.l.b16 %v117
  %v790 = vunpack.c.l.b16 %v118
  %v791 = vunpack.c.l.b16 %v119
  %v792 = vunpack.c.l.b16 %v120
  %v793 = vunpack.c.l.b16 %v121
  %v794 = vunpack.c.l.b16 %v122
  %v795 = vunpack.c.l.b16 %v123
  %v796 = vunpack.c.l.b16 %v124
  %v797 = vunpack.c.l.b16 %v125
  %v798 = vunpack.c.l.b16 %v126
  %v799 = vunpack.c.l.b16 %v127
  %v800 = vunpack.c.l.b16 %v128
  %v801 = vunpack.c.l.b16 %v129
  %v802 = vunpack.c.l.b16 %v130
  %v803 = vunpack.c.l.b16 %v131
  %v804 = vunpack.c.l.b16 %v132
  %v805 = vunpack.c.l.b16 %v133
  %v806 = vunpack.c.l.b16 %v134
  %v807 = vunpack.c.l.b16 %v135
  %v808 = vunpack.c.l.b16 %v136
  %v809 = vunpack.c.l.b16 %v137
  %v810 = vunpack.c.l.b16 %v138
  %v811 = vunpack.c.l.b16 %v139
  %v812 = vunpack.c.l.b16 %v140
  %v813 = vunpack.c.l.b16 %v141
  %v814 = vunpack.c.l.b16 %v142
  %v815 = vunpack.c.l.b16 %v143
  %v816 = vunpack.c.l.b16 %v144
  %v817 = vunpack.c.l.b16 %v145
  %v818 = vunpack.c.l.b16 %v146
  %v819 = vunpack.c.l.b16 %v147
  %v820 = vunpack.c.l.b16 %v148
  %v821 = vunpack.c.l.b16 %v149
  %v822 = vunpack.c.l.b16 %v150
  %v823 = vunpack.c.l.b16 %v151
  %v824 = vunpack.c.l.b16 %v152
  %v825 = vunpack.c.l.b16 %v153
  %v826 = vunpack.c.l.b16 %v154
  %v827 = vunpack.c.l.b16 %v155
  %v828 = vunpack.c.l.b16 %v156
  %v829 = vunpack.c.l.b16 %v157
  %v830 = vunpack.c.l.b16 %v158
  %v831 = vunpack.c.l.b16 %v159
  %v832 = vunpack.c.l.b16 %v160
  %v833 = vunpack.c.l.b16 %v161
  %v834 = vunpack.c.l.b16 %v162
  %v835 = vunpack.c.l.b16 %v163
  %v836 = vunpack.c.l.b16 %v164
  %v837 = vunpack.c.l.b16 %v165
  %v838 = vunpack.c.l.b16 %v166
  %v839 = vunpack.c.l.b16 %v167
  %v840 = vunpack.c.l.b16 %v168
  %v841 = vunpack.c.l.b16 %v169
  %v842 = vunpack.c.l.b16 %v170
  %v843 = vunpack.c.l.b16 %v171
  %v844 = vunpack.c.l.b16 %v172
  %v845 = vunpack.c.l.b16 %v173
  %v846 = vunpack.c.l.b16 %v174
  %v847 = vunpack.c.l.b16 %v175
  %v848 = vunpack.c.l.b16 %v176
  %v849 = vunpack.c.l.b16 %v177
  %v850 = vunpack.c.l.b16 %v178
  %v851 = vunpack.c.l.b16 %v179
  %v852 = vunpack.c.l.b16 %v180
  %v853 = vunpack.c.l.b16 %v181
  %v854 = vunpack.c.l.b16 %v182
  %v855 = vunpack.c.l.b16 %v183
  %v856 = vunpack.c.l.b16 %v184
  %v857 = vunpack.c.l.b16 %v185
  %v858 = vunpack.c.l.b16 %v186
  %v859 = vunpack.c.l.b16 %v187
  %v860 = vunpack.c.l.b16 %v188
  %v861 = vunpack.c.l.b16 %v189
  %v862 = vunpack.c.l.b16 %v190
  %v863 = vunpack.c.l.b16 %v191
  %v864 = vunpack.c.l.b16 %v192
  %v865 = vunpack.c.l.b16 %v193
  %v866 = vunpack.c.l.b16 %v194
  %v867 = vunpack.c.l.b16 %v195
  %v868 = vunpack.c.l.b16 %v196
  %v869 = vunpack.c.l.b16 %v197
  %v870 = vunpack.c.l.b16 %v198
  %v871 = vunpack.c.l.b16 %v199
  %v872 = vunpack.c.l.b16 %v200
  %v873 = vunpack.c.l.b16 %v201
  %v874 = vunpack.c.l.b16 %v202
  %v875 = vunpack.c.l.b16 %v203
  %v876 = vunpack.c.l.b16 %v204
  %v877 = vunpack.c.l.b16 %v205
  %v878 = vunpack.c.l.b16 %v206
  %v879 = vunpack.c.l.b16 %v207
  %v880 = vunpack.c.l.b16 %v208
  %v881 = vunpack.c.l.b16 %v209
  %v882 = vunpack.c.l.b16 %v210
  %v883 = vunpack.c.l.b16 %v211
  %v884 = vunpack.c.l.b16 %v212
  %v885 = vunpack.c.l.b16 %v213
  %v886 = vunpack.c.l.b16 %v214
  %v887 = vunpack.c.l.b16 %v215
  %v888 = vunpack.c.l.b16 %v216
  %v889 = vunpack.c.l.b16 %v217
  %v890 = vunpack.c.l.b16 %v218
  %v891 = vunpack.c.l.b16 %v219
  %v892 = vunpack.c.l.b16 %v220
  %v893 = vunpack.c.l.b16 %v221
  %v894 = vunpack.c.l.b16 %v222
  %v895 = vunpack.c.l.b16 %v223
  %v896 = vunpack.c.l.b16 %v224
  %v897 = vunpack.c.l.b16 %v225
  %v898 = vunpack.c.l.b16 %v226
  %v899 = vunpack.c.l.b16 %v227
  %v900 = vunpack.c.l.b16 %v228
  %v901 = vunpack.c.l.b16 %v229
  %v902 = vunpack.c.l.b16 %v230
  %v903 = vunpack.c.l.b16 %v231
  %v904 = vunpack.c.l.b16 %v232
  %v905 = vunpack.c.l.b16 %v233
  %v906 = vunpack.c.l.b16 %v234
  %v907 = vunpack.c.l.b16 %v235
  %v908 = vunpack.c.l.b16 %v236
  %v909 = vunpack.c.l.b16 %v237
  %v910 = vunpack.c.l.b16 %v238
  %v911 = vunpack.c.l.b16 %v239
  %v912 = vunpack.c.l.b16 %v240
  %v913 = vunpack.c.l.b16 %v241
  %v914 = vunpack.c.l.b16 %v242
  %v915 = vunpack.c.l.b16 %v243
  %v916 = vunpack.c.l.b16 %v244
  %v917 = vunpack.c.l.b16 %v245
  %v918 = vunpack.c.l.b16 %v246
  %v919 = vunpack.c.l.b16 %v247
  %v920 = vunpack.c.l.b16 %v248
  %v921 = vunpack.c.l.b16 %v249
  %v922 = vunpack.c.l.b16 %v250
  %v923 = vunpack.c.l.b16 %v251
  %v924 = vunpack.c.l.b16 %v252
  %v925 = vunpack.c.l.b16 %v253
  %v926 = vunpack.c.l.b16 %v254
  %v927 = vunpack.c.l.b16 %v255
  %v928 = vunpack.c.l.b16 %v256
  %v929 = vunpack.c.l.b16 %v257
  %v930 = vunpack.c.l.b16 %v258
  %v931 = vunpack.c.l.b16 %v259
  %v932 = vunpack.c.l.b16 %v260
  %v933 = vunpack.c.l.b16 %v261
  %v934 = vunpack.c.l.b16 %v262
  %v935 = vunpack.c.l.b16 %v263
  %v936 = vunpack.c.l.b16 %v264
  %v937 = vunpack.c.l.b16 %v265
  %v938 = vunpack.c.l.b16 %v266
  %v939 = vunpack.c.l.b16 %v267
  %v940 = vunpack.c.l.b16 %v268
  %v941 = vunpack.c.l.b16 %v269
  %v942 = vunpack.c.l.b16 %v270
  %v943 = vunpack.c.l.b16 %v271
  %v944 = vunpack.c.l.b16 %v272
  %v945 = vunpack.c.l.b16 %v273
  %v946 = vunpack.c.l.b16 %v274
  %v947 = vunpack.c.l.b16 %v275
  %v948 = vunpack.c.l.b16 %v276
  %v949 = vunpack.c.l.b16 %v277
  %v950 = vunpack.c.l.b16 %v278
  %v951 = vunpack.c.l.b16 %v279
  %v952 = vunpack.c.l.b16 %v280
  %v953 = vunpack.c.l.b16 %v281
  %v954 = vunpack.c.l.b16 %v282
  %v955 = vunpack.c.l.b16 %v283
  %v956 = vunpack.c.l.b16 %v284
  %v957 = vunpack.c.l.b16 %v285
  %v958 = vunpack.c.l.b16 %v286
  %v959 = vunpack.c.l.b16 %v287
  %v960 = vunpack.c.l.b16 %v288
  %v961 = vunpack.c.l.b16 %v289
  %v962 = vunpack.c.l.b16 %v290
  %v963 = vunpack.c.l.b16 %v291
  %v964 = vunpack.c.l.b16 %v292
  %v965 = vunpack.c.l.b16 %v293
  %v966 = vunpack.c.l.b16 %v294
  %v967 = vunpack.c.l.b16 %v295
  %v968 = vunpack.c.l.b16 %v296
  %v969 = vunpack.c.l.b16 %v297
  %v970 = vunpack.c.l.b16 %v298
  %v971 = vunpack.c.l.b16 %v299
  %v972 = vunpack.c.l.b16 %v300
  %v973 = vunpack.c.l.b16 %v301
  %v974 = vunpack.c.l.b16 %v302
  %v975 = vunpack.c.l.b16 %v303
  %v976 = vunpack.c.l.b16 %v304
  %v977 = vunpack.c.l.b16 %v305
  %v978 = vpack.c.b16 %v723, %v722
  %v979 = vpack.c.b16 %v725, %v724
  %v980 = vpack.c.b16 %v727, %v726
  %v981 = vpack.c.b16 %v729, %v728
  %v982 = vpack.c.b16 %v731, %v730
  %v983 = vpack.c.b16 %v733, %v732
  %v984 = vpack.c.b16 %v735, %v734
  %v985 = vpack.c.b16 %v737, %v736
  %v986 = vpack.c.b16 %v739, %v738
  %v987 = vpack.c.b16 %v741, %v740
  %v988 = vpack.c.b16 %v743, %v742
  %v989 = vpack.c.b16 %v745, %v744
  %v990 = vpack.c.b16 %v747, %v746
  %v991 = vpack.c.b16 %v749, %v748
  %v992 = vpack.c.b16 %v751, %v750
  %v993 = vpack.c.b16 %v753, %v752
  %v994 = vpack.c.b16 %v755, %v754
  %v995 = vpack.c.b16 %v757, %v756
  %v996 = vpack.c.b16 %v759, %v758
  %v997 = vpack.c.b16 %v761, %v760
  %v998 = vpack.c.b16 %v763, %v762
  %v999 = vpack.c.b16 %v765, %v764
  %v1000 = vpack.c.b16 %v767, %v766
  %v1001 = vpack.c.b16 %v769, %v768
  %v1002 = vpack.c.b16 %v771, %v770
  %v1003 = vpack.c.b16 %v773, %v772
  %v1004 = vpack.c.b16 %v775, %v774
  %v1005 = vpack.c.b16 %v777, %v776
  %v1006 = vpack.c.b16 %v779, %v778
  %v1007 = vpack.c.b16 %v781, %v780
  %v1008 = vpack.c.b16 %v783, %v782
  %v1009 = vpack.c.b16 %v785, %v784
  %v1010 = vpack.c.b16 %v787, %v786
  %v1011 = vpack.c.b16 %v789, %v788
  %v1012 = vpack.c.b16 %v791, %v790
  %v1013 = vpack.c.b16 %v793, %v792
  %v1014 = vpack.c.b16 %v795, %v794
  %v1015 = vpack.c.b16 %v797, %v796
  %v1016 = vpack.c.b16 %v799, %v798
  %v1017 = vpack.c.b16 %v801, %v800
  %v1018 = vpack.c.b16 %v803, %v802
  %v1019 = vpack.c.b16 %v805, %v804
  %v1020 = vpack.c.b16 %v807, %v806
  %v1021 = vpack.c.b16 %v809, %v808
  %v1022 = vpack.c.b16 %v811, %v810
  %v1023 = vpack.c.b16 %v813, %v812
  %v1024 = vpack.c.b16 %v815, %v814
  %v1025 = vpack.c.b16 %v817, %v816
  %v1026 = vpack.c.b16 %v819, %v818
  %v1027 = vpack.c.b16 %v821, %v820
  %v1028 = vpack.c.b16 %v823, %v822
  %v1029 = vpack.c.b16 %v825, %v824
  %v1030 = vpack.c.b16 %v827, %v826
  %v1031 = vpack.c.b16 %v829, %v828
  %v1032 = vpack.c.b16 %v831, %v830
  %v1033 = vpack.c.b16 %v833, %v832
  %v1034 = vpack.c.b16 %v835, %v834
  %v1035 = vpack.c.b16 %v837, %v836
  %v1036 = vpack.c.b16 %v839, %v838
  %v1037 = vpack.c.b16 %v841, %v840
  %v1038 = vpack.c.b16 %v843, %v842
  %v1039 = vpack.c.b16 %v845, %v844
  %v1040 = vpack.c.b16 %v847, %v846
  %v1041 = vpack.c.b16 %v849, %v848
  %v1042 = vpack.c.b16 %v851, %v850
  %v1043 = vpack.c.b16 %v853, %v852
  %v1044 = vpack.c.b16 %v855, %v854
  %v1045 = vpack.c.b16 %v857, %v856
  %v1046 = vpack.c.b16 %v859, %v858
  %v1047 = vpack.c.b16 %v861, %v860
  %v1048 = vpack.c.b16 %v863, %v862
  %v1049 = vpack.c.b16 %v865, %v864
  %v1050 = vpack.c.b16 %v867, %v866
  %v1051 = vpack.c.b16 %v869, %v868
  %v1052 = vpack.c.b16 %v871, %v870
  %v1053 = vpack.c.b16 %v873, %v872
  %v1054 = vpack.c.b16 %v875, %v874
  %v1055 = vpack.c.b16 %v877, %v876
  %v1056 = vpack.c.b16 %v879, %v878
  %v1057 = vpack.c.b16 %v881, %v880
  %v1058 = vpack.c.b16 %v883, %v882
  %v1059 = vpack.c.b16 %v885, %v884
  %v1060 = vpack.c.b16 %v887, %v886
  %v1061 = vpack.c.b16 %v889, %v888
  %v1062 = vpack.c.b16 %v891, %v890
  %v1063 = vpack.c.b16 %v893, %v892
  %v1064 = vpack.c.b16 %v895, %v894
  %v1065 = vpack.c.b16 %v897, %v896
  %v1066 = vpack.c.b16 %v899, %v898
  %v1067 = vpack.c.b16 %v901, %v900
  %v1068 = vpack.c.b16 %v903, %v902
  %v1069 = vpack.c.b16 %v905, %v904
  %v1070 = vpack.c.b16 %v907, %v906
  %v1071 = vpack.c.b16 %v909, %v908
  %v1072 = vpack.c.b16 %v911, %v910
  %v1073 = vpack.c.b16 %v913, %v912
  %v1074 = vpack.c.b16 %v915, %v914
  %v1075 = vpack.c.b16 %v917, %v916
  %v1076 = vpack.c.b16 %v919, %v918
  %v1077 = vpack.c.b16 %v921, %v920
  %v1078 = vpack.c.b16 %v923, %v922
  %v1079 = vpack.c.b16 %v925, %v924
  %v1080 = vpack.c.b16 %v927, %v926
  %v1081 = vpack.c.b16 %v929, %v928
  %v1082 = vpack.c.b16 %v931, %v930
  %v1083 = vpack.c.b16 %v933, %v932
  %v1084 = vpack.c.b16 %v935, %v934
  %v1085 = vpack.c.b16 %v937, %v936
  %v1086 = vpack.c.b16 %v939, %v938
  %v1087 = vpack.c.b16 %v941, %v940
  %v1088 = vpack.c.b16 %v943, %v942
  %v1089 = vpack.c.b16 %v945, %v944
  %v1090 = vpack.c.b16 %v947, %v946
  %v1091 = vpack.c.b16 %v949, %v948
  %v1092 = vpack.c.b16 %v951, %v950
  %v1093 = vpack.c.b16 %v953, %v952
  %v1094 = vpack.c.b16 %v955, %v954
  %v1095 = vpack.c.b16 %v957, %v956
  %v1096 = vpack.c.b16 %v959, %v958
  %v1097 = vpack.c.b16 %v961, %v960
  %v1098 = vpack.c.b16 %v963, %v962
  %v1099 = vpack.c.b16 %v965, %v964
  %v1100 = vpack.c.b16 %v967, %v966
  %v1101 = vpack.c.b16 %v969, %v968
  %v1102 = vpack.c.b16 %v971, %v970
  %v1103 = vpack.c.b16 %v973, %v972
  %v1104 = vpack.c.b16 %v975, %v974
  %v1105 = vpack.c.b16 %v977, %v976
  %1234 = vmatprep.subr.bf16.mxu0 0
  %1235 = vmatpush1.bf16.msra.mxu0 %v978
  %1236 = vmatprep.subr.bf16.mxu0 0
  %1237 = vmatpush1.bf16.msra.mxu0 %v979
  %1238 = vmatprep.subr.bf16.mxu0 0
  %1239 = vmatpush1.bf16.msra.mxu0 %v980
  %1240 = vmatprep.subr.bf16.mxu0 0
  %1241 = vmatpush1.bf16.msra.mxu0 %v981
  %1242 = vmatprep.subr.bf16.mxu0 0
  %1243 = vmatpush1.bf16.msra.mxu0 %v982
  %1244 = vmatprep.subr.bf16.mxu0 0
  %1245 = vmatpush1.bf16.msra.mxu0 %v983
  %1246 = vmatprep.subr.bf16.mxu0 0
  %1247 = vmatpush1.bf16.msra.mxu0 %v984
  %1248 = vmatprep.subr.bf16.mxu0 0
  %1249 = vmatpush1.bf16.msra.mxu0 %v985
  %1250 = vmatprep.subr.bf16.mxu0 0
  %1251 = vmatpush1.bf16.msra.mxu0 %v986
  %1252 = vmatprep.subr.bf16.mxu0 0
  %1253 = vmatpush1.bf16.msra.mxu0 %v987
  %1254 = vmatprep.subr.bf16.mxu0 0
  %1255 = vmatpush1.bf16.msra.mxu0 %v988
  %1256 = vmatprep.subr.bf16.mxu0 0
  %1257 = vmatpush1.bf16.msra.mxu0 %v989
  %1258 = vmatprep.subr.bf16.mxu0 0
  %1259 = vmatpush1.bf16.msra.mxu0 %v990
  %1260 = vmatprep.subr.bf16.mxu0 0
  %1261 = vmatpush1.bf16.msra.mxu0 %v991
  %1262 = vmatprep.subr.bf16.mxu0 0
  %1263 = vmatpush1.bf16.msra.mxu0 %v992
  %1264 = vmatprep.subr.bf16.mxu0 0
  %1265 = vmatpush1.bf16.msra.mxu0 %v993
  %1266 = vmatprep.mubr.bf16.mxu0 %v403
  %1267 = vmatmul.mubr.bf16.gmra.mrb[0].mxu0 %v402
  %v1268 = vpop.f32.mrb[0].mxu0
  %v1269 = vadd.f32 0.0, %v1268
  %v1270 = vpop.f32.mrb[0].mxu0
  %v1271 = vpop.f32.mrb[0].mxu0
  %v1272 = vadd.f32 0.0, %v1271
  %v1273 = vpop.f32.mrb[0].mxu0
  %1274 = vmatprep.mubr.bf16.mxu0 %v419
  %1275 = vmatmul.mubr.bf16.gmra.mrb[0].mxu0 %v418
  %v1276 = vpop.f32.mrb[0].mxu0
  %v1277 = vadd.f32 0.0, %v1276
  %v1278 = vpop.f32.mrb[0].mxu0
  %v1279 = vpop.f32.mrb[0].mxu0
  %v1280 = vadd.f32 0.0, %v1279
  %v1281 = vpop.f32.mrb[0].mxu0
  %1282 = vdwg.mxu0
  %1283 = vmatprep.subr.bf16.mxu0 0
  %1284 = vmatpush1.bf16.msra.mxu0 %v994
  %1285 = vmatprep.subr.bf16.mxu0 0
  %1286 = vmatpush1.bf16.msra.mxu0 %v995
  %1287 = vmatprep.subr.bf16.mxu0 0
  %1288 = vmatpush1.bf16.msra.mxu0 %v996
  %1289 = vmatprep.subr.bf16.mxu0 0
  %1290 = vmatpush1.bf16.msra.mxu0 %v997
  %1291 = vmatprep.subr.bf16.mxu0 0
  %1292 = vmatpush1.bf16.msra.mxu0 %v998
  %1293 = vmatprep.subr.bf16.mxu0 0
  %1294 = vmatpush1.bf16.msra.mxu0 %v999
  %1295 = vmatprep.subr.bf16.mxu0 0
  %1296 = vmatpush1.bf16.msra.mxu0 %v1000
  %1297 = vmatprep.subr.bf16.mxu0 0
  %1298 = vmatpush1.bf16.msra.mxu0 %v1001
  %1299 = vmatprep.subr.bf16.mxu0 0
  %1300 = vmatpush1.bf16.msra.mxu0 %v1002
  %1301 = vmatprep.subr.bf16.mxu0 0
  %1302 = vmatpush1.bf16.msra.mxu0 %v1003
  %1303 = vmatprep.subr.bf16.mxu0 0
  %1304 = vmatpush1.bf16.msra.mxu0 %v1004
  %1305 = vmatprep.subr.bf16.mxu0 0
  %1306 = vmatpush1.bf16.msra.mxu0 %v1005
  %1307 = vmatprep.subr.bf16.mxu0 0
  %1308 = vmatpush1.bf16.msra.mxu0 %v1006
  %1309 = vmatprep.subr.bf16.mxu0 0
  %1310 = vmatpush1.bf16.msra.mxu0 %v1007
  %1311 = vmatprep.subr.bf16.mxu0 0
  %1312 = vmatpush1.bf16.msra.mxu0 %v1008
  %1313 = vmatprep.subr.bf16.mxu0 0
  %1314 = vmatpush1.bf16.msra.mxu0 %v1009
  %1315 = vmatprep.mubr.bf16.mxu0 %v405
  %1316 = vmatmul.mubr.bf16.gmra.mrb[0].mxu0 %v404
  %v1317 = vpop.f32.mrb[0].mxu0
  %v1318 = vadd.f32 %v1269, %v1317
  %v1319 = vpop.f32.mrb[0].mxu0
  %v1320 = vpop.f32.mrb[0].mxu0
  %v1321 = vadd.f32 %v1272, %v1320
  %v1322 = vpop.f32.mrb[0].mxu0
  %1323 = vmatprep.mubr.bf16.mxu0 %v421
  %1324 = vmatmul.mubr.bf16.gmra.mrb[0].mxu0 %v420
  %v1325 = vpop.f32.mrb[0].mxu0
  %v1326 = vadd.f32 %v1277, %v1325
  %v1327 = vpop.f32.mrb[0].mxu0
  %v1328 = vpop.f32.mrb[0].mxu0
  %v1329 = vadd.f32 %v1280, %v1328
  %v1330 = vpop.f32.mrb[0].mxu0
  %1331 = vdwg.mxu0
  %1332 = vmatprep.subr.bf16.mxu0 0
  %1333 = vmatpush1.bf16.msra.mxu0 %v1010
  %1334 = vmatprep.subr.bf16.mxu0 0
  %1335 = vmatpush1.bf16.msra.mxu0 %v1011
  %1336 = vmatprep.subr.bf16.mxu0 0
  %1337 = vmatpush1.bf16.msra.mxu0 %v1012
  %1338 = vmatprep.subr.bf16.mxu0 0
  %1339 = vmatpush1.bf16.msra.mxu0 %v1013
  %1340 = vmatprep.subr.bf16.mxu0 0
  %1341 = vmatpush1.bf16.msra.mxu0 %v1014
  %1342 = vmatprep.subr.bf16.mxu0 0
  %1343 = vmatpush1.bf16.msra.mxu0 %v1015
  %1344 = vmatprep.subr.bf16.mxu0 0
  %1345 = vmatpush1.bf16.msra.mxu0 %v1016
  %1346 = vmatprep.subr.bf16.mxu0 0
  %1347 = vmatpush1.bf16.msra.mxu0 %v1017
  %1348 = vmatprep.subr.bf16.mxu0 0
  %1349 = vmatpush1.bf16.msra.mxu0 %v1018
  %1350 = vmatprep.subr.bf16.mxu0 0
  %1351 = vmatpush1.bf16.msra.mxu0 %v1019
  %1352 = vmatprep.subr.bf16.mxu0 0
  %1353 = vmatpush1.bf16.msra.mxu0 %v1020
  %1354 = vmatprep.subr.bf16.mxu0 0
  %1355 = vmatpush1.bf16.msra.mxu0 %v1021
  %1356 = vmatprep.subr.bf16.mxu0 0
  %1357 = vmatpush1.bf16.msra.mxu0 %v1022
  %1358 = vmatprep.subr.bf16.mxu0 0
  %1359 = vmatpush1.bf16.msra.mxu0 %v1023
  %1360 = vmatprep.subr.bf16.mxu0 0
  %1361 = vmatpush1.bf16.msra.mxu0 %v1024
  %1362 = vmatprep.subr.bf16.mxu0 0
  %1363 = vmatpush1.bf16.msra.mxu0 %v1025
  %1364 = vmatprep.mubr.bf16.mxu0 %v407
  %1365 = vmatmul.mubr.bf16.gmra.mrb[0].mxu0 %v406
  %v1366 = vpop.f32.mrb[0].mxu0
  %v1367 = vadd.f32 %v1318, %v1366
  %v1368 = vpop.f32.mrb[0].mxu0
  %v1369 = vpop.f32.mrb[0].mxu0
  %v1370 = vadd.f32 %v1321, %v1369
  %v1371 = vpop.f32.mrb[0].mxu0
  %1372 = vmatprep.mubr.bf16.mxu0 %v423
  %1373 = vmatmul.mubr.bf16.gmra.mrb[0].mxu0 %v422
  %v1374 = vpop.f32.mrb[0].mxu0
  %v1375 = vadd.f32 %v1326, %v1374
  %v1376 = vpop.f32.mrb[0].mxu0
  %v1377 = vpop.f32.mrb[0].mxu0
  %v1378 = vadd.f32 %v1329, %v1377
  %v1379 = vpop.f32.mrb[0].mxu0
  %1380 = vdwg.mxu0
  %1381 = vmatprep.subr.bf16.mxu0 0
  %1382 = vmatpush1.bf16.msra.mxu0 %v1026
  %1383 = vmatprep.subr.bf16.mxu0 0
  %1384 = vmatpush1.bf16.msra.mxu0 %v1027
  %1385 = vmatprep.subr.bf16.mxu0 0
  %1386 = vmatpush1.bf16.msra.mxu0 %v1028
  %1387 = vmatprep.subr.bf16.mxu0 0
  %1388 = vmatpush1.bf16.msra.mxu0 %v1029
  %1389 = vmatprep.subr.bf16.mxu0 0
  %1390 = vmatpush1.bf16.msra.mxu0 %v1030
  %1391 = vmatprep.subr.bf16.mxu0 0
  %1392 = vmatpush1.bf16.msra.mxu0 %v1031
  %1393 = vmatprep.subr.bf16.mxu0 0
  %1394 = vmatpush1.bf16.msra.mxu0 %v1032
  %1395 = vmatprep.subr.bf16.mxu0 0
  %1396 = vmatpush1.bf16.msra.mxu0 %v1033
  %1397 = vmatprep.subr.bf16.mxu0 0
  %1398 = vmatpush1.bf16.msra.mxu0 %v1034
  %1399 = vmatprep.subr.bf16.mxu0 0
  %1400 = vmatpush1.bf16.msra.mxu0 %v1035
  %1401 = vmatprep.subr.bf16.mxu0 0
  %1402 = vmatpush1.bf16.msra.mxu0 %v1036
  %1403 = vmatprep.subr.bf16.mxu0 0
  %1404 = vmatpush1.bf16.msra.mxu0 %v1037
  %1405 = vmatprep.subr.bf16.mxu0 0
  %1406 = vmatpush1.bf16.msra.mxu0 %v1038
  %1407 = vmatprep.subr.bf16.mxu0 0
  %1408 = vmatpush1.bf16.msra.mxu0 %v1039
  %1409 = vmatprep.subr.bf16.mxu0 0
  %1410 = vmatpush1.bf16.msra.mxu0 %v1040
  %1411 = vmatprep.subr.bf16.mxu0 0
  %1412 = vmatpush1.bf16.msra.mxu0 %v1041
  %1413 = vmatprep.mubr.bf16.mxu0 %v409
  %1414 = vmatmul.mubr.bf16.gmra.mrb[0].mxu0 %v408
  %v1415 = vpop.f32.mrb[0].mxu0
  %v1416 = vadd.f32 %v1367, %v1415
  %v1417 = vpop.f32.mrb[0].mxu0
  %v1418 = vpop.f32.mrb[0].mxu0
  %v1419 = vadd.f32 %v1370, %v1418
  %v1420 = vpop.f32.mrb[0].mxu0
  %1421 = vmatprep.mubr.bf16.mxu0 %v425
  %1422 = vmatmul.mubr.bf16.gmra.mrb[0].mxu0 %v424
  %v1423 = vpop.f32.mrb[0].mxu0
  %v1424 = vadd.f32 %v1375, %v1423
  %v1425 = vpop.f32.mrb[0].mxu0
  %v1426 = vpop.f32.mrb[0].mxu0
  %v1427 = vadd.f32 %v1378, %v1426
  %v1428 = vpop.f32.mrb[0].mxu0
  %1429 = vdwg.mxu0
  %1430 = vmatprep.subr.bf16.mxu0 0
  %1431 = vmatpush1.bf16.msra.mxu0 %v1042
  %1432 = vmatprep.subr.bf16.mxu0 0
  %1433 = vmatpush1.bf16.msra.mxu0 %v1043
  %1434 = vmatprep.subr.bf16.mxu0 0
  %1435 = vmatpush1.bf16.msra.mxu0 %v1044
  %1436 = vmatprep.subr.bf16.mxu0 0
  %1437 = vmatpush1.bf16.msra.mxu0 %v1045
  %1438 = vmatprep.subr.bf16.mxu0 0
  %1439 = vmatpush1.bf16.msra.mxu0 %v1046
  %1440 = vmatprep.subr.bf16.mxu0 0
  %1441 = vmatpush1.bf16.msra.mxu0 %v1047
  %1442 = vmatprep.subr.bf16.mxu0 0
  %1443 = vmatpush1.bf16.msra.mxu0 %v1048
  %1444 = vmatprep.subr.bf16.mxu0 0
  %1445 = vmatpush1.bf16.msra.mxu0 %v1049
  %1446 = vmatprep.subr.bf16.mxu0 0
  %1447 = vmatpush1.bf16.msra.mxu0 %v1050
  %1448 = vmatprep.subr.bf16.mxu0 0
  %1449 = vmatpush1.bf16.msra.mxu0 %v1051
  %1450 = vmatprep.subr.bf16.mxu0 0
  %1451 = vmatpush1.bf16.msra.mxu0 %v1052
  %1452 = vmatprep.subr.bf16.mxu0 0
  %1453 = vmatpush1.bf16.msra.mxu0 %v1053
  %1454 = vmatprep.subr.bf16.mxu0 0
  %1455 = vmatpush1.bf16.msra.mxu0 %v1054
  %1456 = vmatprep.subr.bf16.mxu0 0
  %1457 = vmatpush1.bf16.msra.mxu0 %v1055
  %1458 = vmatprep.subr.bf16.mxu0 0
  %1459 = vmatpush1.bf16.msra.mxu0 %v1056
  %1460 = vmatprep.subr.bf16.mxu0 0
  %1461 = vmatpush1.bf16.msra.mxu0 %v1057
  %1462 = vmatprep.mubr.bf16.mxu0 %v411
  %1463 = vmatmul.mubr.bf16.gmra.mrb[0].mxu0 %v410
  %v1464 = vpop.f32.mrb[0].mxu0
  %v1465 = vadd.f32 %v1416, %v1464
  %v1466 = vpop.f32.mrb[0].mxu0
  %v1467 = vpop.f32.mrb[0].mxu0
  %v1468 = vadd.f32 %v1419, %v1467
  %v1469 = vpop.f32.mrb[0].mxu0
  %1470 = vmatprep.mubr.bf16.mxu0 %v427
  %1471 = vmatmul.mubr.bf16.gmra.mrb[0].mxu0 %v426
  %v1472 = vpop.f32.mrb[0].mxu0
  %v1473 = vadd.f32 %v1424, %v1472
  %v1474 = vpop.f32.mrb[0].mxu0
  %v1475 = vpop.f32.mrb[0].mxu0
  %v1476 = vadd.f32 %v1427, %v1475
  %v1477 = vpop.f32.mrb[0].mxu0
  %1478 = vdwg.mxu0
  %1479 = vmatprep.subr.bf16.mxu0 0
  %1480 = vmatpush1.bf16.msra.mxu0 %v1058
  %1481 = vmatprep.subr.bf16.mxu0 0
  %1482 = vmatpush1.bf16.msra.mxu0 %v1059
  %1483 = vmatprep.subr.bf16.mxu0 0
  %1484 = vmatpush1.bf16.msra.mxu0 %v1060
  %1485 = vmatprep.subr.bf16.mxu0 0
  %1486 = vmatpush1.bf16.msra.mxu0 %v1061
  %1487 = vmatprep.subr.bf16.mxu0 0
  %1488 = vmatpush1.bf16.msra.mxu0 %v1062
  %1489 = vmatprep.subr.bf16.mxu0 0
  %1490 = vmatpush1.bf16.msra.mxu0 %v1063
  %1491 = vmatprep.subr.bf16.mxu0 0
  %1492 = vmatpush1.bf16.msra.mxu0 %v1064
  %1493 = vmatprep.subr.bf16.mxu0 0
  %1494 = vmatpush1.bf16.msra.mxu0 %v1065
  %1495 = vmatprep.subr.bf16.mxu0 0
  %1496 = vmatpush1.bf16.msra.mxu0 %v1066
  %1497 = vmatprep.subr.bf16.mxu0 0
  %1498 = vmatpush1.bf16.msra.mxu0 %v1067
  %1499 = vmatprep.subr.bf16.mxu0 0
  %1500 = vmatpush1.bf16.msra.mxu0 %v1068
  %1501 = vmatprep.subr.bf16.mxu0 0
  %1502 = vmatpush1.bf16.msra.mxu0 %v1069
  %1503 = vmatprep.subr.bf16.mxu0 0
  %1504 = vmatpush1.bf16.msra.mxu0 %v1070
  %1505 = vmatprep.subr.bf16.mxu0 0
  %1506 = vmatpush1.bf16.msra.mxu0 %v1071
  %1507 = vmatprep.subr.bf16.mxu0 0
  %1508 = vmatpush1.bf16.msra.mxu0 %v1072
  %1509 = vmatprep.subr.bf16.mxu0 0
  %1510 = vmatpush1.bf16.msra.mxu0 %v1073
  %1511 = vmatprep.mubr.bf16.mxu0 %v413
  %1512 = vmatmul.mubr.bf16.gmra.mrb[0].mxu0 %v412
  %v1513 = vpop.f32.mrb[0].mxu0
  %v1514 = vadd.f32 %v1465, %v1513
  %v1515 = vpop.f32.mrb[0].mxu0
  %v1516 = vpop.f32.mrb[0].mxu0
  %v1517 = vadd.f32 %v1468, %v1516
  %v1518 = vpop.f32.mrb[0].mxu0
  %1519 = vmatprep.mubr.bf16.mxu0 %v429
  %1520 = vmatmul.mubr.bf16.gmra.mrb[0].mxu0 %v428
  %v1521 = vpop.f32.mrb[0].mxu0
  %v1522 = vadd.f32 %v1473, %v1521
  %v1523 = vpop.f32.mrb[0].mxu0
  %v1524 = vpop.f32.mrb[0].mxu0
  %v1525 = vadd.f32 %v1476, %v1524
  %v1526 = vpop.f32.mrb[0].mxu0
  %1527 = vdwg.mxu0
  %1528 = vmatprep.subr.bf16.mxu0 0
  %1529 = vmatpush1.bf16.msra.mxu0 %v1074
  %1530 = vmatprep.subr.bf16.mxu0 0
  %1531 = vmatpush1.bf16.msra.mxu0 %v1075
  %1532 = vmatprep.subr.bf16.mxu0 0
  %1533 = vmatpush1.bf16.msra.mxu0 %v1076
  %1534 = vmatprep.subr.bf16.mxu0 0
  %1535 = vmatpush1.bf16.msra.mxu0 %v1077
  %1536 = vmatprep.subr.bf16.mxu0 0
  %1537 = vmatpush1.bf16.msra.mxu0 %v1078
  %1538 = vmatprep.subr.bf16.mxu0 0
  %1539 = vmatpush1.bf16.msra.mxu0 %v1079
  %1540 = vmatprep.subr.bf16.mxu0 0
  %1541 = vmatpush1.bf16.msra.mxu0 %v1080
  %1542 = vmatprep.subr.bf16.mxu0 0
  %1543 = vmatpush1.bf16.msra.mxu0 %v1081
  %1544 = vmatprep.subr.bf16.mxu0 0
  %1545 = vmatpush1.bf16.msra.mxu0 %v1082
  %1546 = vmatprep.subr.bf16.mxu0 0
  %1547 = vmatpush1.bf16.msra.mxu0 %v1083
  %1548 = vmatprep.subr.bf16.mxu0 0
  %1549 = vmatpush1.bf16.msra.mxu0 %v1084
  %1550 = vmatprep.subr.bf16.mxu0 0
  %1551 = vmatpush1.bf16.msra.mxu0 %v1085
  %1552 = vmatprep.subr.bf16.mxu0 0
  %1553 = vmatpush1.bf16.msra.mxu0 %v1086
  %1554 = vmatprep.subr.bf16.mxu0 0
  %1555 = vmatpush1.bf16.msra.mxu0 %v1087
  %1556 = vmatprep.subr.bf16.mxu0 0
  %1557 = vmatpush1.bf16.msra.mxu0 %v1088
  %1558 = vmatprep.subr.bf16.mxu0 0
  %1559 = vmatpush1.bf16.msra.mxu0 %v1089
  %1560 = vmatprep.mubr.bf16.mxu0 %v415
  %1561 = vmatmul.mubr.bf16.gmra.mrb[0].mxu0 %v414
  %v1562 = vpop.f32.mrb[0].mxu0
  %v1563 = vadd.f32 %v1514, %v1562
  %v1564 = vpop.f32.mrb[0].mxu0
  %v1565 = vpop.f32.mrb[0].mxu0
  %v1566 = vadd.f32 %v1517, %v1565
  %v1567 = vpop.f32.mrb[0].mxu0
  %1568 = vmatprep.mubr.bf16.mxu0 %v431
  %1569 = vmatmul.mubr.bf16.gmra.mrb[0].mxu0 %v430
  %v1570 = vpop.f32.mrb[0].mxu0
  %v1571 = vadd.f32 %v1522, %v1570
  %v1572 = vpop.f32.mrb[0].mxu0
  %v1573 = vpop.f32.mrb[0].mxu0
  %v1574 = vadd.f32 %v1525, %v1573
  %v1575 = vpop.f32.mrb[0].mxu0
  %1576 = vdwg.mxu0
  %1577 = vmatprep.subr.bf16.mxu0 0
  %1578 = vmatpush1.bf16.msra.mxu0 %v1090
  %1579 = vmatprep.subr.bf16.mxu0 0
  %1580 = vmatpush1.bf16.msra.mxu0 %v1091
  %1581 = vmatprep.subr.bf16.mxu0 0
  %1582 = vmatpush1.bf16.msra.mxu0 %v1092
  %1583 = vmatprep.subr.bf16.mxu0 0
  %1584 = vmatpush1.bf16.msra.mxu0 %v1093
  %1585 = vmatprep.subr.bf16.mxu0 0
  %1586 = vmatpush1.bf16.msra.mxu0 %v1094
  %1587 = vmatprep.subr.bf16.mxu0 0
  %1588 = vmatpush1.bf16.msra.mxu0 %v1095
  %1589 = vmatprep.subr.bf16.mxu0 0
  %1590 = vmatpush1.bf16.msra.mxu0 %v1096
  %1591 = vmatprep.subr.bf16.mxu0 0
  %1592 = vmatpush1.bf16.msra.mxu0 %v1097
  %1593 = vmatprep.subr.bf16.mxu0 0
  %1594 = vmatpush1.bf16.msra.mxu0 %v1098
  %1595 = vmatprep.subr.bf16.mxu0 0
  %1596 = vmatpush1.bf16.msra.mxu0 %v1099
  %1597 = vmatprep.subr.bf16.mxu0 0
  %1598 = vmatpush1.bf16.msra.mxu0 %v1100
  %1599 = vmatprep.subr.bf16.mxu0 0
  %1600 = vmatpush1.bf16.msra.mxu0 %v1101
  %1601 = vmatprep.subr.bf16.mxu0 0
  %1602 = vmatpush1.bf16.msra.mxu0 %v1102
  %1603 = vmatprep.subr.bf16.mxu0 0
  %1604 = vmatpush1.bf16.msra.mxu0 %v1103
  %1605 = vmatprep.subr.bf16.mxu0 0
  %1606 = vmatpush1.bf16.msra.mxu0 %v1104
  %1607 = vmatprep.subr.bf16.mxu0 0
  %1608 = vmatpush1.bf16.msra.mxu0 %v1105
  %1609 = vmatprep.mubr.bf16.mxu0 %v417
  %1610 = vmatmul.mubr.bf16.gmra.mrb[0].mxu0 %v416
  %v1611 = vpop.f32.mrb[0].mxu0
  %v1612 = vadd.f32 %v1563, %v1611
  %v1613 = vpop.f32.mrb[0].mxu0
  %v1614 = vpop.f32.mrb[0].mxu0
  %v1615 = vadd.f32 %v1566, %v1614
  %v1616 = vpop.f32.mrb[0].mxu0
  %1617 = vmatprep.mubr.bf16.mxu0 %v433
  %1618 = vmatmul.mubr.bf16.gmra.mrb[0].mxu0 %v432
  %v1619 = vpop.f32.mrb[0].mxu0
  %v1620 = vadd.f32 %v1571, %v1619
  %v1621 = vpop.f32.mrb[0].mxu0
  %v1622 = vpop.f32.mrb[0].mxu0
  %v1623 = vadd.f32 %v1574, %v1622
  %v1624 = vpop.f32.mrb[0].mxu0
  %1625 = vdwg.mxu0
  %v1626 = vadd.f32 %v1612, %v1615
  %v1627 = vadd.f32 %v1626, %v1620
  %v1628 = vadd.f32 %v1627, %v1623
  %v1629 = vrot.slane %v1628, 4
  %v1630 = vadd.f32 %v1628, %v1629
  %v1631 = vrot.slane %v1630, 2
  %v1632 = vadd.f32 %v1630, %v1631
  %v1633 = vrot.slane %v1632, 1
  %v1634 = vadd.f32 %v1632, %v1633
  %v1635 = vmul.f32 %v1634, 0.03125
  %v1636 = vsub.f32 %v1612, %v1635
  %v1637 = vsub.f32 %v1615, %v1635
  %v1638 = vsub.f32 %v1620, %v1635
  %v1639 = vsub.f32 %v1623, %v1635
  %v1640 = vmul.f32 %v1636, %v1636
  %v1641 = vmul.f32 %v1637, %v1637
  %v1642 = vmul.f32 %v1638, %v1638
  %v1643 = vmul.f32 %v1639, %v1639
  %v1644 = vadd.f32 %v1640, %v1641
  %v1645 = vadd.f32 %v1644, %v1642
  %v1646 = vadd.f32 %v1645, %v1643
  %v1647 = vrot.slane %v1646, 4
  %v1648 = vadd.f32 %v1646, %v1647
  %v1649 = vrot.slane %v1648, 2
  %v1650 = vadd.f32 %v1648, %v1649
  %v1651 = vrot.slane %v1650, 1
  %v1652 = vadd.f32 %v1650, %v1651
  %v1653 = vmul.f32 %v1652, 0.03125
  %v1654 = vadd.f32 %v1653, 1e-05
  %v1655 = vrsqrt.pop %v1654
  %v1656 = vmul.f32 %v1636, %v1655
  %v1657 = vmul.f32 %v1637, %v1655
  %v1658 = vmul.f32 %v1638, %v1655
  %v1659 = vmul.f32 %v1639, %v1655
  %v1660 = vld [vmem:[%s2] sm:$0x1]
  %v1662 = vlaneseq
  %v1663 = vshrl.u32 %v1662, 7
  %v1664 = vsub.s32 0, %v1663
  %v1665 = vrot.slane %v1660, %v1664
  %v1667 = vmul.f32 %v1656, %v1665
  %v1668 = vmul.f32 %v1657, %v1665
  %v1669 = vmul.f32 %v1658, %v1665
  %v1670 = vmul.f32 %v1659, %v1665
  %v1671 = vld [vmem:[%s3] sm:$0x1]
  %v1673 = vlaneseq
  %v1674 = vshrl.u32 %v1673, 7
  %v1675 = vsub.s32 0, %v1674
  %v1676 = vrot.slane %v1671, %v1675
  %v1678 = vadd.f32 %v1667, %v1676
  %v1679 = vadd.f32 %v1668, %v1676
  %v1680 = vadd.f32 %v1669, %v1676
  %v1681 = vadd.f32 %v1670, %v1676
  %vm1682 = vcmp.gt.f32.partialorder %v1678, 0.0
  %vm1683 = vcmp.gt.f32.partialorder %v1679, 0.0
  %vm1684 = vcmp.gt.f32.partialorder %v1680, 0.0
  %vm1685 = vcmp.gt.f32.partialorder %v1681, 0.0
  %v1686 = vmul.f32 %v1678, 0.2
  %v1687 = vmul.f32 %v1679, 0.2
  %v1688 = vmul.f32 %v1680, 0.2
  %v1689 = vmul.f32 %v1681, 0.2
  %v1690 = vsel %vm1682, %v1678, %v1686
  %v1691 = vsel %vm1683, %v1679, %v1687
  %v1692 = vsel %vm1684, %v1680, %v1688
  %v1693 = vsel %vm1685, %v1681, %v1689
  %v1694 = vpack.c.bf16 %v1691, %v1690
  %v1695 = vpack.c.bf16 %v1693, %v1692
  %v1698 = vunpack.c.l.b16 %v1694
  %v1699 = vunpack.c.h.b16 %v1694
  %v1700 = vunpack.c.l.b16 %v1695
  %v1701 = vunpack.c.h.b16 %v1695
  %v1702 = vpack.c.b16 %v1698, %v1698
  %v1703 = vpack.c.b16 %v1699, %v1699
  %v1704 = vpack.c.b16 %v1700, %v1700
  %v1705 = vpack.c.b16 %v1701, %v1701
  %1710 = vst [vmem:[%s4] sm:$0xf] %v1702
  %1711 = vst [vmem:[%s4 + $0x4] sm:$0xf] %v1703
  %1712 = vst [vmem:[%s4 + $0x8] sm:$0xf] %v1704
  %1713 = vst [vmem:[%s4 + $0xc] sm:$0xf] %v1705
  // Predicated region
  $region18: #{vq_discriminator_forward.6} parent=0 // pred_check
    _
  $region19: #{vq_discriminator_forward.6} parent=0 // pred_check_branch
    %1715 = sbr.rel (0) target = $region21
  $region20: #{vq_discriminator_forward.6} parent=0 // pred_region
    _
  $region21: #{vq_discriminator_forward.6} parent=0 // pred_fallthru
    _
  // Predicated region
  $region22: #{vq_discriminator_forward.6} parent=0 // pred_check
    _
  $region23: #{vq_discriminator_forward.6} parent=0 // pred_check_branch
    %1717 = sbr.rel (0) target = $region25
  $region24: #{vq_discriminator_forward.6} parent=0 // pred_region
    _
  $region25: #{vq_discriminator_forward.6} parent=0 // pred_fallthru
    _

</llo_original>
